<compile_context>
chip_gen: v7x
topology: tpu7x:2x2x1
jax: 0.10.0
libtpu: 0.0.40
codegen_flags: <defaults>
</compile_context>

<pallas_src>
import jax
import jax.numpy as jnp
from jax import lax
from jax.experimental import pallas as pl
from jax.experimental.pallas import tpu as pltpu

IN_DIM = 4096
H1 = 256
H2 = 128
OUT_DIM = 40
OUT_PAD = 128          # lane-dense padded output width
MAX_TILE_M = 1024      # VMEM-safe cap (f32 x tiles, v7x 64 MiB per-TC budget)


def mlp_kernel(x_ref, w1_ref, b1_ref, w2_ref, b2_ref, w3_ref, b3_ref, o_ref):
    # In-kernel f32 -> bf16 cast (VPU) avoids an extra HBM cast/pad pass.
    x = x_ref[...].astype(jnp.bfloat16)
    h1 = jnp.dot(x, w1_ref[...], preferred_element_type=jnp.float32)
    h1 = jnp.maximum(h1 + b1_ref[...], 0.0)
    h2 = jnp.dot(h1.astype(jnp.bfloat16), w2_ref[...],
                 preferred_element_type=jnp.float32)
    h2 = jnp.maximum(h2 + b2_ref[...], 0.0)
    out = jnp.dot(h2.astype(jnp.bfloat16), w3_ref[...],
                  preferred_element_type=jnp.float32)
    o_ref[...] = (out + b3_ref[...]).astype(o_ref.dtype)


def prepare_params(params):
    """One-time parameter prep (do NOT call per forward).

    Takes PyTorch-layout tensors (w: (out, in), b: (out,)) and returns
    transposed bf16 weights, f32 biases, with fc3 padded 40 -> 128 lanes.
    """
    w1, b1, w2, b2, w3, b3 = params
    w1t = jnp.asarray(w1).T.astype(jnp.bfloat16)                 # (4096, 256)
    w2t = jnp.asarray(w2).T.astype(jnp.bfloat16)                 # (256, 128)
    w3t = jnp.zeros((H2, OUT_PAD), jnp.float32).at[:, :OUT_DIM].set(
        jnp.asarray(w3).T).astype(jnp.bfloat16)                  # (128, 128)
    b1r = jnp.asarray(b1).reshape(1, H1).astype(jnp.float32)
    b2r = jnp.asarray(b2).reshape(1, H2).astype(jnp.float32)
    b3r = jnp.zeros((1, OUT_PAD), jnp.float32).at[:, :OUT_DIM].set(
        jnp.asarray(b3).reshape(1, OUT_DIM))
    return w1t, b1r, w2t, b2r, w3t, b3r


def _round_up(v, m):
    return ((v + m - 1) // m) * m


def _choose_tile(batch, tile_m):
    # Multiple of 16 (bf16 sublane packing), capped for VMEM, never larger
    # than the (rounded-up) batch.
    tm = max(16, _round_up(int(tile_m), 16))
    tm = min(tm, MAX_TILE_M)
    tm = min(tm, _round_up(batch, 16))
    # Engage both v7x TensorCores: ensure >= 2 grid tiles when batch allows.
    if batch >= 32 and pl.cdiv(batch, tm) < 2:
        tm = max(16, _round_up(pl.cdiv(batch, 2), 16))
    return tm


def base_model_forward(x, prepped_params, *, tile_m=512):
    """Forward pass of BaseModel.

    x: (B, 4096) float32 (or bfloat16).
    prepped_params: output of prepare_params().
    """
    w1t, b1r, w2t, b2r, w3t, b3r = prepped_params
    if x.dtype not in (jnp.float32, jnp.bfloat16):
        x = x.astype(jnp.float32)
    B = x.shape[0]

    tm = _choose_tile(B, tile_m)
    n_tiles = pl.cdiv(B, tm)
    b_pad = n_tiles * tm
    xp = x if b_pad == B else jnp.pad(x, ((0, b_pad - B), (0, 0)))

    x_bytes = xp.dtype.itemsize
    flops = 2 * b_pad * (IN_DIM * H1 + H1 * H2 + H2 * OUT_PAD)
    bytes_accessed = (
        b_pad * IN_DIM * x_bytes                          # x read
        + (IN_DIM * H1 + H1 * H2 + H2 * OUT_PAD) * 2      # bf16 weights
        + (H1 + H2 + OUT_PAD) * 4                         # f32 biases
        + b_pad * OUT_PAD * 2                             # bf16 padded output
    )

    # VMEM budget: double-buffered x/out tiles + single-buffered weights.
    vmem_needed = (
        2 * tm * IN_DIM * x_bytes
        + 2 * tm * OUT_PAD * 2
        + (IN_DIM * H1 + H1 * H2 + H2 * OUT_PAD) * 2
        + (H1 + H2 + OUT_PAD) * 4
    )
    vmem_limit = min(vmem_needed + (8 << 20), 48 << 20)

    pinned = lambda i: (0, 0)   # weights/biases resident across batch tiles

    def wspec(shape):
        # Block index never changes -> single buffer, saves ~2 MiB VMEM.
        return pl.BlockSpec(shape, pinned, pipeline_mode=pl.Buffered(1))

    out_padded = pl.pallas_call(
        mlp_kernel,
        out_shape=jax.ShapeDtypeStruct((b_pad, OUT_PAD), jnp.bfloat16),
        grid=(n_tiles,),
        in_specs=[
            pl.BlockSpec((tm, IN_DIM), lambda i: (i, 0)),   # x tile (pipelined)
            wspec((IN_DIM, H1)),                            # w1
            wspec((1, H1)),                                 # b1
            wspec((H1, H2)),                                # w2
            wspec((1, H2)),                                 # b2
            wspec((H2, OUT_PAD)),                           # w3 (padded)
            wspec((1, OUT_PAD)),                            # b3 (padded)
        ],
        out_specs=pl.BlockSpec((tm, OUT_PAD), lambda i: (i, 0)),
        compiler_params=pltpu.CompilerParams(
            dimension_semantics=("parallel",),
            vmem_limit_bytes=vmem_limit,
        ),
        cost_estimate=pl.CostEstimate(
            flops=flops, transcendentals=0, bytes_accessed=bytes_accessed),
    )(xp, w1t, b1r, w2t, b2r, w3t, b3r)

    return out_padded[:B, :OUT_DIM].astype(jnp.float32)


def init_linear(key, fan_in, fan_out):
    # PyTorch nn.Linear default init: U(-1/sqrt(fan_in), 1/sqrt(fan_in)),
    # stored in PyTorch layout: w (out, in), b (out,).
    kw, kb = jax.random.split(key)
    bound = 1.0 / (fan_in ** 0.5)
    w = jax.random.uniform(kw, (fan_out, fan_in), jnp.float32, -bound, bound)
    b = jax.random.uniform(kb, (fan_out,), jnp.float32, -bound, bound)
    return w, b


def ref_forward(x, params):
    # Reference computed with the same bf16-rounded operands and f32 accum.
    w1, b1, w2, b2, w3, b3 = params
    q = lambda a: a.astype(jnp.bfloat16).astype(jnp.float32)
    hp = lax.Precision.HIGHEST
    h = jnp.maximum(jnp.dot(q(x), q(w1.T), precision=hp) + b1, 0.0)
    h = jnp.maximum(jnp.dot(q(h), q(w2.T), precision=hp) + b2, 0.0)
    return jnp.dot(q(h), q(w3.T), precision=hp) + b3


if __name__ == "__main__":
    key = jax.random.PRNGKey(0)
    k_x, k1, k2, k3 = jax.random.split(key, 4)

    batch = 16  # small demo batch; real deployments should use tile_m=512-1024

    x = jax.random.normal(k_x, (batch, IN_DIM), jnp.float32)
    params = (*init_linear(k1, IN_DIM, H1),
              *init_linear(k2, H1, H2),
              *init_linear(k3, H2, OUT_DIM))

    prepped = prepare_params(params)            # one-time parameter prep
    out = base_model_forward(x, prepped)        # default tile_m=512 -> tm=16 here
    out = jax.block_until_ready(out)

    ref = ref_forward(x, params)
    assert out.shape == (batch, OUT_DIM), out.shape
    assert jnp.allclose(out, ref, atol=1e-2, rtol=1e-2), "mismatch vs reference"

    print("KERNEL_OK")
</pallas_src>

<mosaic_0001>
module attributes {stable_mosaic.version = 11 : i64} {
  func.func @mlp_kernel(%arg0: i32, %arg1: memref<16x4096xf32, #tpu.memory_space<vmem>>, %arg2: memref<4096x256xbf16, #tpu.memory_space<vmem>>, %arg3: memref<1x256xf32, #tpu.memory_space<vmem>>, %arg4: memref<256x128xbf16, #tpu.memory_space<vmem>>, %arg5: memref<1x128xf32, #tpu.memory_space<vmem>>, %arg6: memref<128x128xbf16, #tpu.memory_space<vmem>>, %arg7: memref<1x128xf32, #tpu.memory_space<vmem>>, %arg8: memref<16x128xbf16, #tpu.memory_space<vmem>>) attributes {dimension_semantics = [#tpu.dimension_semantics<parallel>], iteration_bounds = array<i64: 1>, scalar_prefetch = 0 : i64, scratch_operands = 0 : i64, tpu.core_type = #tpu.core_type<tc>, window_params = [{transform_indices = @transform_0, window_bounds = array<i64: 16, 4096>}, {pipeline_mode = #tpu.pipeline_mode<synchronous>, transform_indices = @transform_1, window_bounds = array<i64: 4096, 256>}, {pipeline_mode = #tpu.pipeline_mode<synchronous>, transform_indices = @transform_2, window_bounds = array<i64: 1, 256>}, {pipeline_mode = #tpu.pipeline_mode<synchronous>, transform_indices = @transform_3, window_bounds = array<i64: 256, 128>}, {pipeline_mode = #tpu.pipeline_mode<synchronous>, transform_indices = @transform_4, window_bounds = array<i64: 1, 128>}, {pipeline_mode = #tpu.pipeline_mode<synchronous>, transform_indices = @transform_5, window_bounds = array<i64: 128, 128>}, {pipeline_mode = #tpu.pipeline_mode<synchronous>, transform_indices = @transform_6, window_bounds = array<i64: 1, 128>}, {transform_indices = @transform_7, window_bounds = array<i64: 16, 128>}]} {
    %c0 = arith.constant 0 : index
    %c0_0 = arith.constant 0 : index
    %0 = vector.load %arg1[%c0, %c0_0] : memref<16x4096xf32, #tpu.memory_space<vmem>>, vector<16x4096xf32>
    %1 = arith.truncf %0 : vector<16x4096xf32> to vector<16x4096xbf16>
    %c0_1 = arith.constant 0 : index
    %c0_2 = arith.constant 0 : index
    %2 = vector.load %arg2[%c0_1, %c0_2] : memref<4096x256xbf16, #tpu.memory_space<vmem>>, vector<4096x256xbf16>
    %cst = arith.constant dense<0.000000e+00> : vector<16x256xf32>
    %3 = tpu.matmul %1, %2, %cst {dimension_numbers = #tpu.dot_dimension_numbers<[1], [0], [0], [1], [0, 0, 1, 1], [], []>} : vector<16x4096xbf16>, vector<4096x256xbf16>, vector<16x256xf32> -> vector<16x256xf32>
    %c0_3 = arith.constant 0 : index
    %c0_4 = arith.constant 0 : index
    %4 = vector.load %arg3[%c0_3, %c0_4] : memref<1x256xf32, #tpu.memory_space<vmem>>, vector<1x256xf32>
    %5 = vector.broadcast %4 : vector<1x256xf32> to vector<16x256xf32>
    %6 = arith.addf %3, %5 : vector<16x256xf32>
    %cst_5 = arith.constant 0.000000e+00 : f32
    %7 = vector.broadcast %cst_5 : f32 to vector<16x256xf32>
    %8 = arith.maximumf %6, %7 : vector<16x256xf32>
    %9 = arith.truncf %8 : vector<16x256xf32> to vector<16x256xbf16>
    %c0_6 = arith.constant 0 : index
    %c0_7 = arith.constant 0 : index
    %10 = vector.load %arg4[%c0_6, %c0_7] : memref<256x128xbf16, #tpu.memory_space<vmem>>, vector<256x128xbf16>
    %cst_8 = arith.constant dense<0.000000e+00> : vector<16x128xf32>
    %11 = tpu.matmul %9, %10, %cst_8 {dimension_numbers = #tpu.dot_dimension_numbers<[1], [0], [0], [1], [0, 0, 1, 1], [], []>} : vector<16x256xbf16>, vector<256x128xbf16>, vector<16x128xf32> -> vector<16x128xf32>
    %c0_9 = arith.constant 0 : index
    %c0_10 = arith.constant 0 : index
    %12 = vector.load %arg5[%c0_9, %c0_10] : memref<1x128xf32, #tpu.memory_space<vmem>>, vector<1x128xf32>
    %13 = vector.broadcast %12 : vector<1x128xf32> to vector<16x128xf32>
    %14 = arith.addf %11, %13 : vector<16x128xf32>
    %cst_11 = arith.constant 0.000000e+00 : f32
    %15 = vector.broadcast %cst_11 : f32 to vector<16x128xf32>
    %16 = arith.maximumf %14, %15 : vector<16x128xf32>
    %17 = arith.truncf %16 : vector<16x128xf32> to vector<16x128xbf16>
    %c0_12 = arith.constant 0 : index
    %c0_13 = arith.constant 0 : index
    %18 = vector.load %arg6[%c0_12, %c0_13] : memref<128x128xbf16, #tpu.memory_space<vmem>>, vector<128x128xbf16>
    %cst_14 = arith.constant dense<0.000000e+00> : vector<16x128xf32>
    %19 = tpu.matmul %17, %18, %cst_14 {dimension_numbers = #tpu.dot_dimension_numbers<[1], [0], [0], [1], [0, 0, 1, 1], [], []>} : vector<16x128xbf16>, vector<128x128xbf16>, vector<16x128xf32> -> vector<16x128xf32>
    %c0_15 = arith.constant 0 : index
    %c0_16 = arith.constant 0 : index
    %20 = vector.load %arg7[%c0_15, %c0_16] : memref<1x128xf32, #tpu.memory_space<vmem>>, vector<1x128xf32>
    %21 = vector.broadcast %20 : vector<1x128xf32> to vector<16x128xf32>
    %22 = arith.addf %19, %21 : vector<16x128xf32>
    %23 = arith.truncf %22 : vector<16x128xf32> to vector<16x128xbf16>
    %c0_17 = arith.constant 0 : index
    %c0_18 = arith.constant 0 : index
    %24 = vector.load %arg8[%c0_17, %c0_18] : memref<16x128xbf16, #tpu.memory_space<vmem>>, vector<16x128xbf16>
    tpu.vector_store %arg8[%c0_17, %c0_18], %23 {strides = array<i32>} : memref<16x128xbf16, #tpu.memory_space<vmem>>, vector<16x128xbf16>,
    return
  }
  func.func @transform_0(%arg0: i32) -> (i32, i32) {
    %c0_i32 = arith.constant 0 : i32
    %c0_i32_0 = arith.constant 0 : i32
    return %arg0, %c0_i32 : i32, i32
  }
  func.func @transform_1(%arg0: i32) -> (i32, i32) {
    %c0_i32 = arith.constant 0 : i32
    %c0_i32_0 = arith.constant 0 : i32
    %c0_i32_1 = arith.constant 0 : i32
    return %c0_i32, %c0_i32_0 : i32, i32
  }
  func.func @transform_2(%arg0: i32) -> (i32, i32) {
    %c0_i32 = arith.constant 0 : i32
    %c0_i32_0 = arith.constant 0 : i32
    %c0_i32_1 = arith.constant 0 : i32
    return %c0_i32, %c0_i32_0 : i32, i32
  }
  func.func @transform_3(%arg0: i32) -> (i32, i32) {
    %c0_i32 = arith.constant 0 : i32
    %c0_i32_0 = arith.constant 0 : i32
    %c0_i32_1 = arith.constant 0 : i32
    return %c0_i32, %c0_i32_0 : i32, i32
  }
  func.func @transform_4(%arg0: i32) -> (i32, i32) {
    %c0_i32 = arith.constant 0 : i32
    %c0_i32_0 = arith.constant 0 : i32
    %c0_i32_1 = arith.constant 0 : i32
    return %c0_i32, %c0_i32_0 : i32, i32
  }
  func.func @transform_5(%arg0: i32) -> (i32, i32) {
    %c0_i32 = arith.constant 0 : i32
    %c0_i32_0 = arith.constant 0 : i32
    %c0_i32_1 = arith.constant 0 : i32
    return %c0_i32, %c0_i32_0 : i32, i32
  }
  func.func @transform_6(%arg0: i32) -> (i32, i32) {
    %c0_i32 = arith.constant 0 : i32
    %c0_i32_0 = arith.constant 0 : i32
    %c0_i32_1 = arith.constant 0 : i32
    return %c0_i32, %c0_i32_0 : i32, i32
  }
  func.func @transform_7(%arg0: i32) -> (i32, i32) {
    %c0_i32 = arith.constant 0 : i32
    %c0_i32_0 = arith.constant 0 : i32
    return %arg0, %c0_i32 : i32, i32
  }
}

</mosaic_0001>

<llo_original>
// kernel: tpu_custom_call.1
$region0: #{tpu_custom_call.1}
  #allocation0 [shape = 'u32[]', space=smem, size = 0x4, offset = 0x4, fixed_abs, tag = 'smem constant byte address 0x4 - core index']
  #allocation1 [shape = 'u32[144,128]{1,0:T(1,128)}', space=vmem, size = 0x12000, scoped, tag = 'internal scratch']
  %s0 = inlined_call_operand.hbm [shape: f32[16,4096], index: 0, kind: input, shape index: {}]
  %s1 = inlined_call_operand.hbm [shape: bf16[4096,256], index: 1, kind: input, shape index: {}]
  %s2 = inlined_call_operand.hbm [shape: f32[1,256], index: 2, kind: input, shape index: {}]
  %s3 = inlined_call_operand.hbm [shape: bf16[256,128], index: 3, kind: input, shape index: {}]
  %s4 = inlined_call_operand.hbm [shape: f32[1,128], index: 4, kind: input, shape index: {}]
  %s5 = inlined_call_operand.hbm [shape: bf16[128,128], index: 5, kind: input, shape index: {}]
  %s6 = inlined_call_operand.hbm [shape: f32[1,128], index: 6, kind: input, shape index: {}]
  %s7 = inlined_call_operand.hbm [shape: bf16[16,128], index: 7, kind: output, shape index: {}]
  %s8 = sld [smem:[#allocation0]]
  $region66: #{tpu_custom_call.1} parent=0
    _
  %s10 = ssub.s32 1, %s8
  %s11 = scalar_select 0, %s10, %s8
  $region1: #{tpu_custom_call.1} parent=0
    #allocation2 [shape = 'u8[262144]{0}', space=vmem, size = 0x40000, scoped, tag = 'input window, operand 0, single buffered']
    #allocation3 [shape = 's32[1]{0}', space=sflag, size = 0x4, scoped, tag = 'scoped memory for tpu_custom_call.1']
    #allocation4 [shape = 's32[1]{0}', space=sflag, size = 0x4, scoped, tag = 'scoped memory for tpu_custom_call.1']
    #allocation5 [shape = 'u8[2097152]{0}', space=vmem, size = 0x200000, scoped, tag = 'input window, operand 1, single buffered']
    #allocation6 [shape = 's32[1]{0}', space=sflag, size = 0x4, scoped, tag = 'scoped memory for tpu_custom_call.1']
    #allocation7 [shape = 'u8[1024]{0}', space=vmem, size = 0x400, scoped, tag = 'input window, operand 2, single buffered']
    #allocation8 [shape = 'u8[65536]{0}', space=vmem, size = 0x10000, scoped, tag = 'input window, operand 3, single buffered']
    #allocation9 [shape = 's32[1]{0}', space=sflag, size = 0x4, scoped, tag = 'scoped memory for tpu_custom_call.1']
    #allocation10 [shape = 'u8[512]{0}', space=vmem, size = 0x400, scoped, tag = 'input window, operand 4, single buffered']
    #allocation11 [shape = 'u8[32768]{0}', space=vmem, size = 0x8000, scoped, tag = 'input window, operand 5, single buffered']
    #allocation12 [shape = 's32[1]{0}', space=sflag, size = 0x4, scoped, tag = 'scoped memory for tpu_custom_call.1']
    #allocation13 [shape = 'u8[512]{0}', space=vmem, size = 0x400, scoped, tag = 'input window, operand 6, single buffered']
    #allocation14 [shape = 'u8[4096]{0}', space=vmem, size = 0x1000, scoped, tag = 'output window, operand 0, single buffered']
    %12 = vsyncpa [#allocation3], 0
    %13 = vsyncpa [#allocation6], 0
    %14 = vsyncpa [#allocation9], 0
    %15 = vsyncpa [#allocation12], 0
    %16 = vsyncpa [#allocation4], 0
    // Predicated region
    $region2: #{tpu_custom_call.1} parent=1 // pred_check
      _
    $region3: #{tpu_custom_call.1} parent=1 // pred_check_branch
      %18 = sbr.rel (0) target = $region5
    $region4: #{tpu_custom_call.1} parent=1 // pred_region
      %s20 = ssub.s32 8192, 8192
      %21 = vsyncadd [#allocation3], %s20
      %s22 = sshll.u32 [#allocation2], 4
      %s23 = int_to_ptr.vmem [resolvable:$true] %s22
      %28 = dma.hbm_to_vmem [thread:$0]  %s0, 8192, %s23, [#allocation3], 4096, 4096, 256
    $region5: #{tpu_custom_call.1} parent=1 // pred_fallthru
      _
    // Predicated region
    $region6: #{tpu_custom_call.1} parent=1 // pred_check
      _
    $region7: #{tpu_custom_call.1} parent=1 // pred_check_branch
      %30 = sbr.rel (0) target = $region9
    $region8: #{tpu_custom_call.1} parent=1 // pred_region
      %s32 = ssub.s32 65536, 65536
      %33 = vsyncadd [#allocation6], %s32
      %s34 = sshll.u32 [#allocation5], 4
      %s35 = int_to_ptr.vmem [resolvable:$true] %s34
      %40 = dma.hbm_to_vmem [thread:$0]  %s1, 65536, %s35, [#allocation6], 128, 128, 8
    $region9: #{tpu_custom_call.1} parent=1 // pred_fallthru
      _
    // Predicated region
    $region10: #{tpu_custom_call.1} parent=1 // pred_check
      _
    $region11: #{tpu_custom_call.1} parent=1 // pred_check_branch
      %42 = sbr.rel (0) target = $region13
    $region12: #{tpu_custom_call.1} parent=1 // pred_region
      %s44 = ssub.s32 32, 32
      %45 = vsyncadd [#allocation6], %s44
      %s47 = sshll.u32 [#allocation7], 4
      %s48 = int_to_ptr.vmem [resolvable:$true] %s47
      %50 = dma.hbm_to_vmem [thread:$0]  %s2, 32, %s48, [#allocation6]
    $region13: #{tpu_custom_call.1} parent=1 // pred_fallthru
      _
    // Predicated region
    $region14: #{tpu_custom_call.1} parent=1 // pred_check
      _
    $region15: #{tpu_custom_call.1} parent=1 // pred_check_branch
      %52 = sbr.rel (0) target = $region17
    $region16: #{tpu_custom_call.1} parent=1 // pred_region
      %s54 = ssub.s32 2048, 2048
      %55 = vsyncadd [#allocation9], %s54
      %s56 = sshll.u32 [#allocation8], 4
      %s57 = int_to_ptr.vmem [resolvable:$true] %s56
      %62 = dma.hbm_to_vmem [thread:$0]  %s3, 2048, %s57, [#allocation9], 64, 64, 4
    $region17: #{tpu_custom_call.1} parent=1 // pred_fallthru
      _
    // Predicated region
    $region18: #{tpu_custom_call.1} parent=1 // pred_check
      _
    $region19: #{tpu_custom_call.1} parent=1 // pred_check_branch
      %64 = sbr.rel (0) target = $region21
    $region20: #{tpu_custom_call.1} parent=1 // pred_region
      %s66 = ssub.s32 16, 16
      %67 = vsyncadd [#allocation9], %s66
      %s69 = sshll.u32 [#allocation10], 4
      %s70 = int_to_ptr.vmem [resolvable:$true] %s69
      %72 = dma.hbm_to_vmem [thread:$0]  %s4, 16, %s70, [#allocation9]
    $region21: #{tpu_custom_call.1} parent=1 // pred_fallthru
      _
    // Predicated region
    $region22: #{tpu_custom_call.1} parent=1 // pred_check
      _
    $region23: #{tpu_custom_call.1} parent=1 // pred_check_branch
      %74 = sbr.rel (0) target = $region25
    $region24: #{tpu_custom_call.1} parent=1 // pred_region
      %s76 = ssub.s32 1024, 1024
      %77 = vsyncadd [#allocation12], %s76
      %s78 = sshll.u32 [#allocation11], 4
      %s79 = int_to_ptr.vmem [resolvable:$true] %s78
      %84 = dma.hbm_to_vmem [thread:$0]  %s5, 1024, %s79, [#allocation12], 64, 64, 4
    $region25: #{tpu_custom_call.1} parent=1 // pred_fallthru
      _
    // Predicated region
    $region26: #{tpu_custom_call.1} parent=1 // pred_check
      _
    $region27: #{tpu_custom_call.1} parent=1 // pred_check_branch
      %86 = sbr.rel (0) target = $region29
    $region28: #{tpu_custom_call.1} parent=1 // pred_region
      %s88 = ssub.s32 16, 16
      %89 = vsyncadd [#allocation12], %s88
      %s91 = sshll.u32 [#allocation13], 4
      %s92 = int_to_ptr.vmem [resolvable:$true] %s91
      %94 = dma.hbm_to_vmem [thread:$0]  %s6, 16, %s92, [#allocation12]
    $region29: #{tpu_custom_call.1} parent=1 // pred_fallthru
      _
    // Predicated region
    $region30: #{tpu_custom_call.1} parent=1 // pred_check
      _
    $region31: #{tpu_custom_call.1} parent=1 // pred_check_branch
      %96 = sbr.rel (0) target = $region33
    $region32: #{tpu_custom_call.1} parent=1 // pred_region
      %97 = dma.done [#allocation3], 8192
    $region33: #{tpu_custom_call.1} parent=1 // pred_fallthru
      _
    // Predicated region
    $region34: #{tpu_custom_call.1} parent=1 // pred_check
      _
    $region35: #{tpu_custom_call.1} parent=1 // pred_check_branch
      %99 = sbr.rel (0) target = $region37
    $region36: #{tpu_custom_call.1} parent=1 // pred_region
      %100 = dma.done [#allocation6], 65536
    $region37: #{tpu_custom_call.1} parent=1 // pred_fallthru
      _
    // Predicated region
    $region38: #{tpu_custom_call.1} parent=1 // pred_check
      _
    $region39: #{tpu_custom_call.1} parent=1 // pred_check_branch
      %102 = sbr.rel (0) target = $region41
    $region40: #{tpu_custom_call.1} parent=1 // pred_region
      %103 = dma.done [#allocation6], 32
    $region41: #{tpu_custom_call.1} parent=1 // pred_fallthru
      _
    // Predicated region
    $region42: #{tpu_custom_call.1} parent=1 // pred_check
      _
    $region43: #{tpu_custom_call.1} parent=1 // pred_check_branch
      %105 = sbr.rel (0) target = $region45
    $region44: #{tpu_custom_call.1} parent=1 // pred_region
      %106 = dma.done [#allocation9], 2048
    $region45: #{tpu_custom_call.1} parent=1 // pred_fallthru
      _
    // Predicated region
    $region46: #{tpu_custom_call.1} parent=1 // pred_check
      _
    $region47: #{tpu_custom_call.1} parent=1 // pred_check_branch
      %108 = sbr.rel (0) target = $region49
    $region48: #{tpu_custom_call.1} parent=1 // pred_region
      %109 = dma.done [#allocation9], 16
    $region49: #{tpu_custom_call.1} parent=1 // pred_fallthru
      _
    // Predicated region
    $region50: #{tpu_custom_call.1} parent=1 // pred_check
      _
    $region51: #{tpu_custom_call.1} parent=1 // pred_check_branch
      %111 = sbr.rel (0) target = $region53
    $region52: #{tpu_custom_call.1} parent=1 // pred_region
      %112 = dma.done [#allocation12], 1024
    $region53: #{tpu_custom_call.1} parent=1 // pred_fallthru
      _
    // Predicated region
    $region54: #{tpu_custom_call.1} parent=1 // pred_check
      _
    $region55: #{tpu_custom_call.1} parent=1 // pred_check_branch
      %114 = sbr.rel (0) target = $region57
    $region56: #{tpu_custom_call.1} parent=1 // pred_region
      %115 = dma.done [#allocation12], 16
    $region57: #{tpu_custom_call.1} parent=1 // pred_fallthru
      _
    %v117 = vld [vmem:[#allocation2] sm:$0xff]
    %v118 = vld [vmem:[#allocation2 + $0x8] sm:$0xff]
    %v119 = vld [vmem:[#allocation2 + $0x10] sm:$0xff]
    %v120 = vld [vmem:[#allocation2 + $0x18] sm:$0xff]
    %v121 = vld [vmem:[#allocation2 + $0x20] sm:$0xff]
    %v122 = vld [vmem:[#allocation2 + $0x28] sm:$0xff]
    %v123 = vld [vmem:[#allocation2 + $0x30] sm:$0xff]
    %v124 = vld [vmem:[#allocation2 + $0x38] sm:$0xff]
    %v125 = vld [vmem:[#allocation2 + $0x40] sm:$0xff]
    %v126 = vld [vmem:[#allocation2 + $0x48] sm:$0xff]
    %v127 = vld [vmem:[#allocation2 + $0x50] sm:$0xff]
    %v128 = vld [vmem:[#allocation2 + $0x58] sm:$0xff]
    %v129 = vld [vmem:[#allocation2 + $0x60] sm:$0xff]
    %v130 = vld [vmem:[#allocation2 + $0x68] sm:$0xff]
    %v131 = vld [vmem:[#allocation2 + $0x70] sm:$0xff]
    %v132 = vld [vmem:[#allocation2 + $0x78] sm:$0xff]
    %v133 = vld [vmem:[#allocation2 + $0x80] sm:$0xff]
    %v134 = vld [vmem:[#allocation2 + $0x88] sm:$0xff]
    %v135 = vld [vmem:[#allocation2 + $0x90] sm:$0xff]
    %v136 = vld [vmem:[#allocation2 + $0x98] sm:$0xff]
    %v137 = vld [vmem:[#allocation2 + $0xa0] sm:$0xff]
    %v138 = vld [vmem:[#allocation2 + $0xa8] sm:$0xff]
    %v139 = vld [vmem:[#allocation2 + $0xb0] sm:$0xff]
    %v140 = vld [vmem:[#allocation2 + $0xb8] sm:$0xff]
    %v141 = vld [vmem:[#allocation2 + $0xc0] sm:$0xff]
    %v142 = vld [vmem:[#allocation2 + $0xc8] sm:$0xff]
    %v143 = vld [vmem:[#allocation2 + $0xd0] sm:$0xff]
    %v144 = vld [vmem:[#allocation2 + $0xd8] sm:$0xff]
    %v145 = vld [vmem:[#allocation2 + $0xe0] sm:$0xff]
    %v146 = vld [vmem:[#allocation2 + $0xe8] sm:$0xff]
    %v147 = vld [vmem:[#allocation2 + $0xf0] sm:$0xff]
    %v148 = vld [vmem:[#allocation2 + $0xf8] sm:$0xff]
    %v149 = vld [vmem:[#allocation2 + $0x100] sm:$0xff]
    %v150 = vld [vmem:[#allocation2 + $0x108] sm:$0xff]
    %v151 = vld [vmem:[#allocation2 + $0x110] sm:$0xff]
    %v152 = vld [vmem:[#allocation2 + $0x118] sm:$0xff]
    %v153 = vld [vmem:[#allocation2 + $0x120] sm:$0xff]
    %v154 = vld [vmem:[#allocation2 + $0x128] sm:$0xff]
    %v155 = vld [vmem:[#allocation2 + $0x130] sm:$0xff]
    %v156 = vld [vmem:[#allocation2 + $0x138] sm:$0xff]
    %v157 = vld [vmem:[#allocation2 + $0x140] sm:$0xff]
    %v158 = vld [vmem:[#allocation2 + $0x148] sm:$0xff]
    %v159 = vld [vmem:[#allocation2 + $0x150] sm:$0xff]
    %v160 = vld [vmem:[#allocation2 + $0x158] sm:$0xff]
    %v161 = vld [vmem:[#allocation2 + $0x160] sm:$0xff]
    %v162 = vld [vmem:[#allocation2 + $0x168] sm:$0xff]
    %v163 = vld [vmem:[#allocation2 + $0x170] sm:$0xff]
    %v164 = vld [vmem:[#allocation2 + $0x178] sm:$0xff]
    %v165 = vld [vmem:[#allocation2 + $0x180] sm:$0xff]
    %v166 = vld [vmem:[#allocation2 + $0x188] sm:$0xff]
    %v167 = vld [vmem:[#allocation2 + $0x190] sm:$0xff]
    %v168 = vld [vmem:[#allocation2 + $0x198] sm:$0xff]
    %v169 = vld [vmem:[#allocation2 + $0x1a0] sm:$0xff]
    %v170 = vld [vmem:[#allocation2 + $0x1a8] sm:$0xff]
    %v171 = vld [vmem:[#allocation2 + $0x1b0] sm:$0xff]
    %v172 = vld [vmem:[#allocation2 + $0x1b8] sm:$0xff]
    %v173 = vld [vmem:[#allocation2 + $0x1c0] sm:$0xff]
    %v174 = vld [vmem:[#allocation2 + $0x1c8] sm:$0xff]
    %v175 = vld [vmem:[#allocation2 + $0x1d0] sm:$0xff]
    %v176 = vld [vmem:[#allocation2 + $0x1d8] sm:$0xff]
    %v177 = vld [vmem:[#allocation2 + $0x1e0] sm:$0xff]
    %v178 = vld [vmem:[#allocation2 + $0x1e8] sm:$0xff]
    %v179 = vld [vmem:[#allocation2 + $0x1f0] sm:$0xff]
    %v180 = vld [vmem:[#allocation2 + $0x1f8] sm:$0xff]
    %v181 = vpack.c.bf16 %v149, %v117
    %v182 = vpack.c.bf16 %v150, %v118
    %v183 = vpack.c.bf16 %v151, %v119
    %v184 = vpack.c.bf16 %v152, %v120
    %v185 = vpack.c.bf16 %v153, %v121
    %v186 = vpack.c.bf16 %v154, %v122
    %v187 = vpack.c.bf16 %v155, %v123
    %v188 = vpack.c.bf16 %v156, %v124
    %v189 = vpack.c.bf16 %v157, %v125
    %v190 = vpack.c.bf16 %v158, %v126
    %v191 = vpack.c.bf16 %v159, %v127
    %v192 = vpack.c.bf16 %v160, %v128
    %v193 = vpack.c.bf16 %v161, %v129
    %v194 = vpack.c.bf16 %v162, %v130
    %v195 = vpack.c.bf16 %v163, %v131
    %v196 = vpack.c.bf16 %v164, %v132
    %v197 = vpack.c.bf16 %v165, %v133
    %v198 = vpack.c.bf16 %v166, %v134
    %v199 = vpack.c.bf16 %v167, %v135
    %v200 = vpack.c.bf16 %v168, %v136
    %v201 = vpack.c.bf16 %v169, %v137
    %v202 = vpack.c.bf16 %v170, %v138
    %v203 = vpack.c.bf16 %v171, %v139
    %v204 = vpack.c.bf16 %v172, %v140
    %v205 = vpack.c.bf16 %v173, %v141
    %v206 = vpack.c.bf16 %v174, %v142
    %v207 = vpack.c.bf16 %v175, %v143
    %v208 = vpack.c.bf16 %v176, %v144
    %v209 = vpack.c.bf16 %v177, %v145
    %v210 = vpack.c.bf16 %v178, %v146
    %v211 = vpack.c.bf16 %v179, %v147
    %v212 = vpack.c.bf16 %v180, %v148
    %v213 = vld [vmem:[#allocation5] sm:$0xff]
    %v214 = vld [vmem:[#allocation5 + $0x8] sm:$0xff]
    %v215 = vld [vmem:[#allocation5 + $0x10] sm:$0xff]
    %v216 = vld [vmem:[#allocation5 + $0x18] sm:$0xff]
    %v217 = vld [vmem:[#allocation5 + $0x20] sm:$0xff]
    %v218 = vld [vmem:[#allocation5 + $0x28] sm:$0xff]
    %v219 = vld [vmem:[#allocation5 + $0x30] sm:$0xff]
    %v220 = vld [vmem:[#allocation5 + $0x38] sm:$0xff]
    %v221 = vld [vmem:[#allocation5 + $0x40] sm:$0xff]
    %v222 = vld [vmem:[#allocation5 + $0x48] sm:$0xff]
    %v223 = vld [vmem:[#allocation5 + $0x50] sm:$0xff]
    %v224 = vld [vmem:[#allocation5 + $0x58] sm:$0xff]
    %v225 = vld [vmem:[#allocation5 + $0x60] sm:$0xff]
    %v226 = vld [vmem:[#allocation5 + $0x68] sm:$0xff]
    %v227 = vld [vmem:[#allocation5 + $0x70] sm:$0xff]
    %v228 = vld [vmem:[#allocation5 + $0x78] sm:$0xff]
    %v229 = vld [vmem:[#allocation5 + $0x80] sm:$0xff]
    %v230 = vld [vmem:[#allocation5 + $0x88] sm:$0xff]
    %v231 = vld [vmem:[#allocation5 + $0x90] sm:$0xff]
    %v232 = vld [vmem:[#allocation5 + $0x98] sm:$0xff]
    %v233 = vld [vmem:[#allocation5 + $0xa0] sm:$0xff]
    %v234 = vld [vmem:[#allocation5 + $0xa8] sm:$0xff]
    %v235 = vld [vmem:[#allocation5 + $0xb0] sm:$0xff]
    %v236 = vld [vmem:[#allocation5 + $0xb8] sm:$0xff]
    %v237 = vld [vmem:[#allocation5 + $0xc0] sm:$0xff]
    %v238 = vld [vmem:[#allocation5 + $0xc8] sm:$0xff]
    %v239 = vld [vmem:[#allocation5 + $0xd0] sm:$0xff]
    %v240 = vld [vmem:[#allocation5 + $0xd8] sm:$0xff]
    %v241 = vld [vmem:[#allocation5 + $0xe0] sm:$0xff]
    %v242 = vld [vmem:[#allocation5 + $0xe8] sm:$0xff]
    %v243 = vld [vmem:[#allocation5 + $0xf0] sm:$0xff]
    %v244 = vld [vmem:[#allocation5 + $0xf8] sm:$0xff]
    %v245 = vld [vmem:[#allocation5 + $0x100] sm:$0xff]
    %v246 = vld [vmem:[#allocation5 + $0x108] sm:$0xff]
    %v247 = vld [vmem:[#allocation5 + $0x110] sm:$0xff]
    %v248 = vld [vmem:[#allocation5 + $0x118] sm:$0xff]
    %v249 = vld [vmem:[#allocation5 + $0x120] sm:$0xff]
    %v250 = vld [vmem:[#allocation5 + $0x128] sm:$0xff]
    %v251 = vld [vmem:[#allocation5 + $0x130] sm:$0xff]
    %v252 = vld [vmem:[#allocation5 + $0x138] sm:$0xff]
    %v253 = vld [vmem:[#allocation5 + $0x140] sm:$0xff]
    %v254 = vld [vmem:[#allocation5 + $0x148] sm:$0xff]
    %v255 = vld [vmem:[#allocation5 + $0x150] sm:$0xff]
    %v256 = vld [vmem:[#allocation5 + $0x158] sm:$0xff]
    %v257 = vld [vmem:[#allocation5 + $0x160] sm:$0xff]
    %v258 = vld [vmem:[#allocation5 + $0x168] sm:$0xff]
    %v259 = vld [vmem:[#allocation5 + $0x170] sm:$0xff]
    %v260 = vld [vmem:[#allocation5 + $0x178] sm:$0xff]
    %v261 = vld [vmem:[#allocation5 + $0x180] sm:$0xff]
    %v262 = vld [vmem:[#allocation5 + $0x188] sm:$0xff]
    %v263 = vld [vmem:[#allocation5 + $0x190] sm:$0xff]
    %v264 = vld [vmem:[#allocation5 + $0x198] sm:$0xff]
    %v265 = vld [vmem:[#allocation5 + $0x1a0] sm:$0xff]
    %v266 = vld [vmem:[#allocation5 + $0x1a8] sm:$0xff]
    %v267 = vld [vmem:[#allocation5 + $0x1b0] sm:$0xff]
    %v268 = vld [vmem:[#allocation5 + $0x1b8] sm:$0xff]
    %v269 = vld [vmem:[#allocation5 + $0x1c0] sm:$0xff]
    %v270 = vld [vmem:[#allocation5 + $0x1c8] sm:$0xff]
    %v271 = vld [vmem:[#allocation5 + $0x1d0] sm:$0xff]
    %v272 = vld [vmem:[#allocation5 + $0x1d8] sm:$0xff]
    %v273 = vld [vmem:[#allocation5 + $0x1e0] sm:$0xff]
    %v274 = vld [vmem:[#allocation5 + $0x1e8] sm:$0xff]
    %v275 = vld [vmem:[#allocation5 + $0x1f0] sm:$0xff]
    %v276 = vld [vmem:[#allocation5 + $0x1f8] sm:$0xff]
    %v277 = vld [vmem:[#allocation5 + $0x200] sm:$0xff]
    %v278 = vld [vmem:[#allocation5 + $0x208] sm:$0xff]
    %v279 = vld [vmem:[#allocation5 + $0x210] sm:$0xff]
    %v280 = vld [vmem:[#allocation5 + $0x218] sm:$0xff]
    %v281 = vld [vmem:[#allocation5 + $0x220] sm:$0xff]
    %v282 = vld [vmem:[#allocation5 + $0x228] sm:$0xff]
    %v283 = vld [vmem:[#allocation5 + $0x230] sm:$0xff]
    %v284 = vld [vmem:[#allocation5 + $0x238] sm:$0xff]
    %v285 = vld [vmem:[#allocation5 + $0x240] sm:$0xff]
    %v286 = vld [vmem:[#allocation5 + $0x248] sm:$0xff]
    %v287 = vld [vmem:[#allocation5 + $0x250] sm:$0xff]
    %v288 = vld [vmem:[#allocation5 + $0x258] sm:$0xff]
    %v289 = vld [vmem:[#allocation5 + $0x260] sm:$0xff]
    %v290 = vld [vmem:[#allocation5 + $0x268] sm:$0xff]
    %v291 = vld [vmem:[#allocation5 + $0x270] sm:$0xff]
    %v292 = vld [vmem:[#allocation5 + $0x278] sm:$0xff]
    %v293 = vld [vmem:[#allocation5 + $0x280] sm:$0xff]
    %v294 = vld [vmem:[#allocation5 + $0x288] sm:$0xff]
    %v295 = vld [vmem:[#allocation5 + $0x290] sm:$0xff]
    %v296 = vld [vmem:[#allocation5 + $0x298] sm:$0xff]
    %v297 = vld [vmem:[#allocation5 + $0x2a0] sm:$0xff]
    %v298 = vld [vmem:[#allocation5 + $0x2a8] sm:$0xff]
    %v299 = vld [vmem:[#allocation5 + $0x2b0] sm:$0xff]
    %v300 = vld [vmem:[#allocation5 + $0x2b8] sm:$0xff]
    %v301 = vld [vmem:[#allocation5 + $0x2c0] sm:$0xff]
    %v302 = vld [vmem:[#allocation5 + $0x2c8] sm:$0xff]
    %v303 = vld [vmem:[#allocation5 + $0x2d0] sm:$0xff]
    %v304 = vld [vmem:[#allocation5 + $0x2d8] sm:$0xff]
    %v305 = vld [vmem:[#allocation5 + $0x2e0] sm:$0xff]
    %v306 = vld [vmem:[#allocation5 + $0x2e8] sm:$0xff]
    %v307 = vld [vmem:[#allocation5 + $0x2f0] sm:$0xff]
    %v308 = vld [vmem:[#allocation5 + $0x2f8] sm:$0xff]
    %v309 = vld [vmem:[#allocation5 + $0x300] sm:$0xff]
    %v310 = vld [vmem:[#allocation5 + $0x308] sm:$0xff]
    %v311 = vld [vmem:[#allocation5 + $0x310] sm:$0xff]
    %v312 = vld [vmem:[#allocation5 + $0x318] sm:$0xff]
    %v313 = vld [vmem:[#allocation5 + $0x320] sm:$0xff]
    %v314 = vld [vmem:[#allocation5 + $0x328] sm:$0xff]
    %v315 = vld [vmem:[#allocation5 + $0x330] sm:$0xff]
    %v316 = vld [vmem:[#allocation5 + $0x338] sm:$0xff]
    %v317 = vld [vmem:[#allocation5 + $0x340] sm:$0xff]
    %v318 = vld [vmem:[#allocation5 + $0x348] sm:$0xff]
    %v319 = vld [vmem:[#allocation5 + $0x350] sm:$0xff]
    %v320 = vld [vmem:[#allocation5 + $0x358] sm:$0xff]
    %v321 = vld [vmem:[#allocation5 + $0x360] sm:$0xff]
    %v322 = vld [vmem:[#allocation5 + $0x368] sm:$0xff]
    %v323 = vld [vmem:[#allocation5 + $0x370] sm:$0xff]
    %v324 = vld [vmem:[#allocation5 + $0x378] sm:$0xff]
    %v325 = vld [vmem:[#allocation5 + $0x380] sm:$0xff]
    %v326 = vld [vmem:[#allocation5 + $0x388] sm:$0xff]
    %v327 = vld [vmem:[#allocation5 + $0x390] sm:$0xff]
    %v328 = vld [vmem:[#allocation5 + $0x398] sm:$0xff]
    %v329 = vld [vmem:[#allocation5 + $0x3a0] sm:$0xff]
    %v330 = vld [vmem:[#allocation5 + $0x3a8] sm:$0xff]
    %v331 = vld [vmem:[#allocation5 + $0x3b0] sm:$0xff]
    %v332 = vld [vmem:[#allocation5 + $0x3b8] sm:$0xff]
    %v333 = vld [vmem:[#allocation5 + $0x3c0] sm:$0xff]
    %v334 = vld [vmem:[#allocation5 + $0x3c8] sm:$0xff]
    %v335 = vld [vmem:[#allocation5 + $0x3d0] sm:$0xff]
    %v336 = vld [vmem:[#allocation5 + $0x3d8] sm:$0xff]
    %v337 = vld [vmem:[#allocation5 + $0x3e0] sm:$0xff]
    %v338 = vld [vmem:[#allocation5 + $0x3e8] sm:$0xff]
    %v339 = vld [vmem:[#allocation5 + $0x3f0] sm:$0xff]
    %v340 = vld [vmem:[#allocation5 + $0x3f8] sm:$0xff]
    %v341 = vld [vmem:[#allocation5 + $0x400] sm:$0xff]
    %v342 = vld [vmem:[#allocation5 + $0x408] sm:$0xff]
    %v343 = vld [vmem:[#allocation5 + $0x410] sm:$0xff]
    %v344 = vld [vmem:[#allocation5 + $0x418] sm:$0xff]
    %v345 = vld [vmem:[#allocation5 + $0x420] sm:$0xff]
    %v346 = vld [vmem:[#allocation5 + $0x428] sm:$0xff]
    %v347 = vld [vmem:[#allocation5 + $0x430] sm:$0xff]
    %v348 = vld [vmem:[#allocation5 + $0x438] sm:$0xff]
    %v349 = vld [vmem:[#allocation5 + $0x440] sm:$0xff]
    %v350 = vld [vmem:[#allocation5 + $0x448] sm:$0xff]
    %v351 = vld [vmem:[#allocation5 + $0x450] sm:$0xff]
    %v352 = vld [vmem:[#allocation5 + $0x458] sm:$0xff]
    %v353 = vld [vmem:[#allocation5 + $0x460] sm:$0xff]
    %v354 = vld [vmem:[#allocation5 + $0x468] sm:$0xff]
    %v355 = vld [vmem:[#allocation5 + $0x470] sm:$0xff]
    %v356 = vld [vmem:[#allocation5 + $0x478] sm:$0xff]
    %v357 = vld [vmem:[#allocation5 + $0x480] sm:$0xff]
    %v358 = vld [vmem:[#allocation5 + $0x488] sm:$0xff]
    %v359 = vld [vmem:[#allocation5 + $0x490] sm:$0xff]
    %v360 = vld [vmem:[#allocation5 + $0x498] sm:$0xff]
    %v361 = vld [vmem:[#allocation5 + $0x4a0] sm:$0xff]
    %v362 = vld [vmem:[#allocation5 + $0x4a8] sm:$0xff]
    %v363 = vld [vmem:[#allocation5 + $0x4b0] sm:$0xff]
    %v364 = vld [vmem:[#allocation5 + $0x4b8] sm:$0xff]
    %v365 = vld [vmem:[#allocation5 + $0x4c0] sm:$0xff]
    %v366 = vld [vmem:[#allocation5 + $0x4c8] sm:$0xff]
    %v367 = vld [vmem:[#allocation5 + $0x4d0] sm:$0xff]
    %v368 = vld [vmem:[#allocation5 + $0x4d8] sm:$0xff]
    %v369 = vld [vmem:[#allocation5 + $0x4e0] sm:$0xff]
    %v370 = vld [vmem:[#allocation5 + $0x4e8] sm:$0xff]
    %v371 = vld [vmem:[#allocation5 + $0x4f0] sm:$0xff]
    %v372 = vld [vmem:[#allocation5 + $0x4f8] sm:$0xff]
    %v373 = vld [vmem:[#allocation5 + $0x500] sm:$0xff]
    %v374 = vld [vmem:[#allocation5 + $0x508] sm:$0xff]
    %v375 = vld [vmem:[#allocation5 + $0x510] sm:$0xff]
    %v376 = vld [vmem:[#allocation5 + $0x518] sm:$0xff]
    %v377 = vld [vmem:[#allocation5 + $0x520] sm:$0xff]
    %v378 = vld [vmem:[#allocation5 + $0x528] sm:$0xff]
    %v379 = vld [vmem:[#allocation5 + $0x530] sm:$0xff]
    %v380 = vld [vmem:[#allocation5 + $0x538] sm:$0xff]
    %v381 = vld [vmem:[#allocation5 + $0x540] sm:$0xff]
    %v382 = vld [vmem:[#allocation5 + $0x548] sm:$0xff]
    %v383 = vld [vmem:[#allocation5 + $0x550] sm:$0xff]
    %v384 = vld [vmem:[#allocation5 + $0x558] sm:$0xff]
    %v385 = vld [vmem:[#allocation5 + $0x560] sm:$0xff]
    %v386 = vld [vmem:[#allocation5 + $0x568] sm:$0xff]
    %v387 = vld [vmem:[#allocation5 + $0x570] sm:$0xff]
    %v388 = vld [vmem:[#allocation5 + $0x578] sm:$0xff]
    %v389 = vld [vmem:[#allocation5 + $0x580] sm:$0xff]
    %v390 = vld [vmem:[#allocation5 + $0x588] sm:$0xff]
    %v391 = vld [vmem:[#allocation5 + $0x590] sm:$0xff]
    %v392 = vld [vmem:[#allocation5 + $0x598] sm:$0xff]
    %v393 = vld [vmem:[#allocation5 + $0x5a0] sm:$0xff]
    %v394 = vld [vmem:[#allocation5 + $0x5a8] sm:$0xff]
    %v395 = vld [vmem:[#allocation5 + $0x5b0] sm:$0xff]
    %v396 = vld [vmem:[#allocation5 + $0x5b8] sm:$0xff]
    %v397 = vld [vmem:[#allocation5 + $0x5c0] sm:$0xff]
    %v398 = vld [vmem:[#allocation5 + $0x5c8] sm:$0xff]
    %v399 = vld [vmem:[#allocation5 + $0x5d0] sm:$0xff]
    %v400 = vld [vmem:[#allocation5 + $0x5d8] sm:$0xff]
    %v401 = vld [vmem:[#allocation5 + $0x5e0] sm:$0xff]
    %v402 = vld [vmem:[#allocation5 + $0x5e8] sm:$0xff]
    %v403 = vld [vmem:[#allocation5 + $0x5f0] sm:$0xff]
    %v404 = vld [vmem:[#allocation5 + $0x5f8] sm:$0xff]
    %v405 = vld [vmem:[#allocation5 + $0x600] sm:$0xff]
    %v406 = vld [vmem:[#allocation5 + $0x608] sm:$0xff]
    %v407 = vld [vmem:[#allocation5 + $0x610] sm:$0xff]
    %v408 = vld [vmem:[#allocation5 + $0x618] sm:$0xff]
    %v409 = vld [vmem:[#allocation5 + $0x620] sm:$0xff]
    %v410 = vld [vmem:[#allocation5 + $0x628] sm:$0xff]
    %v411 = vld [vmem:[#allocation5 + $0x630] sm:$0xff]
    %v412 = vld [vmem:[#allocation5 + $0x638] sm:$0xff]
    %v413 = vld [vmem:[#allocation5 + $0x640] sm:$0xff]
    %v414 = vld [vmem:[#allocation5 + $0x648] sm:$0xff]
    %v415 = vld [vmem:[#allocation5 + $0x650] sm:$0xff]
    %v416 = vld [vmem:[#allocation5 + $0x658] sm:$0xff]
    %v417 = vld [vmem:[#allocation5 + $0x660] sm:$0xff]
    %v418 = vld [vmem:[#allocation5 + $0x668] sm:$0xff]
    %v419 = vld [vmem:[#allocation5 + $0x670] sm:$0xff]
    %v420 = vld [vmem:[#allocation5 + $0x678] sm:$0xff]
    %v421 = vld [vmem:[#allocation5 + $0x680] sm:$0xff]
    %v422 = vld [vmem:[#allocation5 + $0x688] sm:$0xff]
    %v423 = vld [vmem:[#allocation5 + $0x690] sm:$0xff]
    %v424 = vld [vmem:[#allocation5 + $0x698] sm:$0xff]
    %v425 = vld [vmem:[#allocation5 + $0x6a0] sm:$0xff]
    %v426 = vld [vmem:[#allocation5 + $0x6a8] sm:$0xff]
    %v427 = vld [vmem:[#allocation5 + $0x6b0] sm:$0xff]
    %v428 = vld [vmem:[#allocation5 + $0x6b8] sm:$0xff]
    %v429 = vld [vmem:[#allocation5 + $0x6c0] sm:$0xff]
    %v430 = vld [vmem:[#allocation5 + $0x6c8] sm:$0xff]
    %v431 = vld [vmem:[#allocation5 + $0x6d0] sm:$0xff]
    %v432 = vld [vmem:[#allocation5 + $0x6d8] sm:$0xff]
    %v433 = vld [vmem:[#allocation5 + $0x6e0] sm:$0xff]
    %v434 = vld [vmem:[#allocation5 + $0x6e8] sm:$0xff]
    %v435 = vld [vmem:[#allocation5 + $0x6f0] sm:$0xff]
    %v436 = vld [vmem:[#allocation5 + $0x6f8] sm:$0xff]
    %v437 = vld [vmem:[#allocation5 + $0x700] sm:$0xff]
    %v438 = vld [vmem:[#allocation5 + $0x708] sm:$0xff]
    %v439 = vld [vmem:[#allocation5 + $0x710] sm:$0xff]
    %v440 = vld [vmem:[#allocation5 + $0x718] sm:$0xff]
    %v441 = vld [vmem:[#allocation5 + $0x720] sm:$0xff]
    %v442 = vld [vmem:[#allocation5 + $0x728] sm:$0xff]
    %v443 = vld [vmem:[#allocation5 + $0x730] sm:$0xff]
    %v444 = vld [vmem:[#allocation5 + $0x738] sm:$0xff]
    %v445 = vld [vmem:[#allocation5 + $0x740] sm:$0xff]
    %v446 = vld [vmem:[#allocation5 + $0x748] sm:$0xff]
    %v447 = vld [vmem:[#allocation5 + $0x750] sm:$0xff]
    %v448 = vld [vmem:[#allocation5 + $0x758] sm:$0xff]
    %v449 = vld [vmem:[#allocation5 + $0x760] sm:$0xff]
    %v450 = vld [vmem:[#allocation5 + $0x768] sm:$0xff]
    %v451 = vld [vmem:[#allocation5 + $0x770] sm:$0xff]
    %v452 = vld [vmem:[#allocation5 + $0x778] sm:$0xff]
    %v453 = vld [vmem:[#allocation5 + $0x780] sm:$0xff]
    %v454 = vld [vmem:[#allocation5 + $0x788] sm:$0xff]
    %v455 = vld [vmem:[#allocation5 + $0x790] sm:$0xff]
    %v456 = vld [vmem:[#allocation5 + $0x798] sm:$0xff]
    %v457 = vld [vmem:[#allocation5 + $0x7a0] sm:$0xff]
    %v458 = vld [vmem:[#allocation5 + $0x7a8] sm:$0xff]
    %v459 = vld [vmem:[#allocation5 + $0x7b0] sm:$0xff]
    %v460 = vld [vmem:[#allocation5 + $0x7b8] sm:$0xff]
    %v461 = vld [vmem:[#allocation5 + $0x7c0] sm:$0xff]
    %v462 = vld [vmem:[#allocation5 + $0x7c8] sm:$0xff]
    %v463 = vld [vmem:[#allocation5 + $0x7d0] sm:$0xff]
    %v464 = vld [vmem:[#allocation5 + $0x7d8] sm:$0xff]
    %v465 = vld [vmem:[#allocation5 + $0x7e0] sm:$0xff]
    %v466 = vld [vmem:[#allocation5 + $0x7e8] sm:$0xff]
    %v467 = vld [vmem:[#allocation5 + $0x7f0] sm:$0xff]
    %v468 = vld [vmem:[#allocation5 + $0x7f8] sm:$0xff]
    %v469 = vld [vmem:[#allocation5 + $0x800] sm:$0xff]
    %v470 = vld [vmem:[#allocation5 + $0x808] sm:$0xff]
    %v471 = vld [vmem:[#allocation5 + $0x810] sm:$0xff]
    %v472 = vld [vmem:[#allocation5 + $0x818] sm:$0xff]
    %v473 = vld [vmem:[#allocation5 + $0x820] sm:$0xff]
    %v474 = vld [vmem:[#allocation5 + $0x828] sm:$0xff]
    %v475 = vld [vmem:[#allocation5 + $0x830] sm:$0xff]
    %v476 = vld [vmem:[#allocation5 + $0x838] sm:$0xff]
    %v477 = vld [vmem:[#allocation5 + $0x840] sm:$0xff]
    %v478 = vld [vmem:[#allocation5 + $0x848] sm:$0xff]
    %v479 = vld [vmem:[#allocation5 + $0x850] sm:$0xff]
    %v480 = vld [vmem:[#allocation5 + $0x858] sm:$0xff]
    %v481 = vld [vmem:[#allocation5 + $0x860] sm:$0xff]
    %v482 = vld [vmem:[#allocation5 + $0x868] sm:$0xff]
    %v483 = vld [vmem:[#allocation5 + $0x870] sm:$0xff]
    %v484 = vld [vmem:[#allocation5 + $0x878] sm:$0xff]
    %v485 = vld [vmem:[#allocation5 + $0x880] sm:$0xff]
    %v486 = vld [vmem:[#allocation5 + $0x888] sm:$0xff]
    %v487 = vld [vmem:[#allocation5 + $0x890] sm:$0xff]
    %v488 = vld [vmem:[#allocation5 + $0x898] sm:$0xff]
    %v489 = vld [vmem:[#allocation5 + $0x8a0] sm:$0xff]
    %v490 = vld [vmem:[#allocation5 + $0x8a8] sm:$0xff]
    %v491 = vld [vmem:[#allocation5 + $0x8b0] sm:$0xff]
    %v492 = vld [vmem:[#allocation5 + $0x8b8] sm:$0xff]
    %v493 = vld [vmem:[#allocation5 + $0x8c0] sm:$0xff]
    %v494 = vld [vmem:[#allocation5 + $0x8c8] sm:$0xff]
    %v495 = vld [vmem:[#allocation5 + $0x8d0] sm:$0xff]
    %v496 = vld [vmem:[#allocation5 + $0x8d8] sm:$0xff]
    %v497 = vld [vmem:[#allocation5 + $0x8e0] sm:$0xff]
    %v498 = vld [vmem:[#allocation5 + $0x8e8] sm:$0xff]
    %v499 = vld [vmem:[#allocation5 + $0x8f0] sm:$0xff]
    %v500 = vld [vmem:[#allocation5 + $0x8f8] sm:$0xff]
    %v501 = vld [vmem:[#allocation5 + $0x900] sm:$0xff]
    %v502 = vld [vmem:[#allocation5 + $0x908] sm:$0xff]
    %v503 = vld [vmem:[#allocation5 + $0x910] sm:$0xff]
    %v504 = vld [vmem:[#allocation5 + $0x918] sm:$0xff]
    %v505 = vld [vmem:[#allocation5 + $0x920] sm:$0xff]
    %v506 = vld [vmem:[#allocation5 + $0x928] sm:$0xff]
    %v507 = vld [vmem:[#allocation5 + $0x930] sm:$0xff]
    %v508 = vld [vmem:[#allocation5 + $0x938] sm:$0xff]
    %v509 = vld [vmem:[#allocation5 + $0x940] sm:$0xff]
    %v510 = vld [vmem:[#allocation5 + $0x948] sm:$0xff]
    %v511 = vld [vmem:[#allocation5 + $0x950] sm:$0xff]
    %v512 = vld [vmem:[#allocation5 + $0x958] sm:$0xff]
    %v513 = vld [vmem:[#allocation5 + $0x960] sm:$0xff]
    %v514 = vld [vmem:[#allocation5 + $0x968] sm:$0xff]
    %v515 = vld [vmem:[#allocation5 + $0x970] sm:$0xff]
    %v516 = vld [vmem:[#allocation5 + $0x978] sm:$0xff]
    %v517 = vld [vmem:[#allocation5 + $0x980] sm:$0xff]
    %v518 = vld [vmem:[#allocation5 + $0x988] sm:$0xff]
    %v519 = vld [vmem:[#allocation5 + $0x990] sm:$0xff]
    %v520 = vld [vmem:[#allocation5 + $0x998] sm:$0xff]
    %v521 = vld [vmem:[#allocation5 + $0x9a0] sm:$0xff]
    %v522 = vld [vmem:[#allocation5 + $0x9a8] sm:$0xff]
    %v523 = vld [vmem:[#allocation5 + $0x9b0] sm:$0xff]
    %v524 = vld [vmem:[#allocation5 + $0x9b8] sm:$0xff]
    %v525 = vld [vmem:[#allocation5 + $0x9c0] sm:$0xff]
    %v526 = vld [vmem:[#allocation5 + $0x9c8] sm:$0xff]
    %v527 = vld [vmem:[#allocation5 + $0x9d0] sm:$0xff]
    %v528 = vld [vmem:[#allocation5 + $0x9d8] sm:$0xff]
    %v529 = vld [vmem:[#allocation5 + $0x9e0] sm:$0xff]
    %v530 = vld [vmem:[#allocation5 + $0x9e8] sm:$0xff]
    %v531 = vld [vmem:[#allocation5 + $0x9f0] sm:$0xff]
    %v532 = vld [vmem:[#allocation5 + $0x9f8] sm:$0xff]
    %v533 = vld [vmem:[#allocation5 + $0xa00] sm:$0xff]
    %v534 = vld [vmem:[#allocation5 + $0xa08] sm:$0xff]
    %v535 = vld [vmem:[#allocation5 + $0xa10] sm:$0xff]
    %v536 = vld [vmem:[#allocation5 + $0xa18] sm:$0xff]
    %v537 = vld [vmem:[#allocation5 + $0xa20] sm:$0xff]
    %v538 = vld [vmem:[#allocation5 + $0xa28] sm:$0xff]
    %v539 = vld [vmem:[#allocation5 + $0xa30] sm:$0xff]
    %v540 = vld [vmem:[#allocation5 + $0xa38] sm:$0xff]
    %v541 = vld [vmem:[#allocation5 + $0xa40] sm:$0xff]
    %v542 = vld [vmem:[#allocation5 + $0xa48] sm:$0xff]
    %v543 = vld [vmem:[#allocation5 + $0xa50] sm:$0xff]
    %v544 = vld [vmem:[#allocation5 + $0xa58] sm:$0xff]
    %v545 = vld [vmem:[#allocation5 + $0xa60] sm:$0xff]
    %v546 = vld [vmem:[#allocation5 + $0xa68] sm:$0xff]
    %v547 = vld [vmem:[#allocation5 + $0xa70] sm:$0xff]
    %v548 = vld [vmem:[#allocation5 + $0xa78] sm:$0xff]
    %v549 = vld [vmem:[#allocation5 + $0xa80] sm:$0xff]
    %v550 = vld [vmem:[#allocation5 + $0xa88] sm:$0xff]
    %v551 = vld [vmem:[#allocation5 + $0xa90] sm:$0xff]
    %v552 = vld [vmem:[#allocation5 + $0xa98] sm:$0xff]
    %v553 = vld [vmem:[#allocation5 + $0xaa0] sm:$0xff]
    %v554 = vld [vmem:[#allocation5 + $0xaa8] sm:$0xff]
    %v555 = vld [vmem:[#allocation5 + $0xab0] sm:$0xff]
    %v556 = vld [vmem:[#allocation5 + $0xab8] sm:$0xff]
    %v557 = vld [vmem:[#allocation5 + $0xac0] sm:$0xff]
    %v558 = vld [vmem:[#allocation5 + $0xac8] sm:$0xff]
    %v559 = vld [vmem:[#allocation5 + $0xad0] sm:$0xff]
    %v560 = vld [vmem:[#allocation5 + $0xad8] sm:$0xff]
    %v561 = vld [vmem:[#allocation5 + $0xae0] sm:$0xff]
    %v562 = vld [vmem:[#allocation5 + $0xae8] sm:$0xff]
    %v563 = vld [vmem:[#allocation5 + $0xaf0] sm:$0xff]
    %v564 = vld [vmem:[#allocation5 + $0xaf8] sm:$0xff]
    %v565 = vld [vmem:[#allocation5 + $0xb00] sm:$0xff]
    %v566 = vld [vmem:[#allocation5 + $0xb08] sm:$0xff]
    %v567 = vld [vmem:[#allocation5 + $0xb10] sm:$0xff]
    %v568 = vld [vmem:[#allocation5 + $0xb18] sm:$0xff]
    %v569 = vld [vmem:[#allocation5 + $0xb20] sm:$0xff]
    %v570 = vld [vmem:[#allocation5 + $0xb28] sm:$0xff]
    %v571 = vld [vmem:[#allocation5 + $0xb30] sm:$0xff]
    %v572 = vld [vmem:[#allocation5 + $0xb38] sm:$0xff]
    %v573 = vld [vmem:[#allocation5 + $0xb40] sm:$0xff]
    %v574 = vld [vmem:[#allocation5 + $0xb48] sm:$0xff]
    %v575 = vld [vmem:[#allocation5 + $0xb50] sm:$0xff]
    %v576 = vld [vmem:[#allocation5 + $0xb58] sm:$0xff]
    %v577 = vld [vmem:[#allocation5 + $0xb60] sm:$0xff]
    %v578 = vld [vmem:[#allocation5 + $0xb68] sm:$0xff]
    %v579 = vld [vmem:[#allocation5 + $0xb70] sm:$0xff]
    %v580 = vld [vmem:[#allocation5 + $0xb78] sm:$0xff]
    %v581 = vld [vmem:[#allocation5 + $0xb80] sm:$0xff]
    %v582 = vld [vmem:[#allocation5 + $0xb88] sm:$0xff]
    %v583 = vld [vmem:[#allocation5 + $0xb90] sm:$0xff]
    %v584 = vld [vmem:[#allocation5 + $0xb98] sm:$0xff]
    %v585 = vld [vmem:[#allocation5 + $0xba0] sm:$0xff]
    %v586 = vld [vmem:[#allocation5 + $0xba8] sm:$0xff]
    %v587 = vld [vmem:[#allocation5 + $0xbb0] sm:$0xff]
    %v588 = vld [vmem:[#allocation5 + $0xbb8] sm:$0xff]
    %v589 = vld [vmem:[#allocation5 + $0xbc0] sm:$0xff]
    %v590 = vld [vmem:[#allocation5 + $0xbc8] sm:$0xff]
    %v591 = vld [vmem:[#allocation5 + $0xbd0] sm:$0xff]
    %v592 = vld [vmem:[#allocation5 + $0xbd8] sm:$0xff]
    %v593 = vld [vmem:[#allocation5 + $0xbe0] sm:$0xff]
    %v594 = vld [vmem:[#allocation5 + $0xbe8] sm:$0xff]
    %v595 = vld [vmem:[#allocation5 + $0xbf0] sm:$0xff]
    %v596 = vld [vmem:[#allocation5 + $0xbf8] sm:$0xff]
    %v597 = vld [vmem:[#allocation5 + $0xc00] sm:$0xff]
    %v598 = vld [vmem:[#allocation5 + $0xc08] sm:$0xff]
    %v599 = vld [vmem:[#allocation5 + $0xc10] sm:$0xff]
    %v600 = vld [vmem:[#allocation5 + $0xc18] sm:$0xff]
    %v601 = vld [vmem:[#allocation5 + $0xc20] sm:$0xff]
    %v602 = vld [vmem:[#allocation5 + $0xc28] sm:$0xff]
    %v603 = vld [vmem:[#allocation5 + $0xc30] sm:$0xff]
    %v604 = vld [vmem:[#allocation5 + $0xc38] sm:$0xff]
    %v605 = vld [vmem:[#allocation5 + $0xc40] sm:$0xff]
    %v606 = vld [vmem:[#allocation5 + $0xc48] sm:$0xff]
    %v607 = vld [vmem:[#allocation5 + $0xc50] sm:$0xff]
    %v608 = vld [vmem:[#allocation5 + $0xc58] sm:$0xff]
    %v609 = vld [vmem:[#allocation5 + $0xc60] sm:$0xff]
    %v610 = vld [vmem:[#allocation5 + $0xc68] sm:$0xff]
    %v611 = vld [vmem:[#allocation5 + $0xc70] sm:$0xff]
    %v612 = vld [vmem:[#allocation5 + $0xc78] sm:$0xff]
    %v613 = vld [vmem:[#allocation5 + $0xc80] sm:$0xff]
    %v614 = vld [vmem:[#allocation5 + $0xc88] sm:$0xff]
    %v615 = vld [vmem:[#allocation5 + $0xc90] sm:$0xff]
    %v616 = vld [vmem:[#allocation5 + $0xc98] sm:$0xff]
    %v617 = vld [vmem:[#allocation5 + $0xca0] sm:$0xff]
    %v618 = vld [vmem:[#allocation5 + $0xca8] sm:$0xff]
    %v619 = vld [vmem:[#allocation5 + $0xcb0] sm:$0xff]
    %v620 = vld [vmem:[#allocation5 + $0xcb8] sm:$0xff]
    %v621 = vld [vmem:[#allocation5 + $0xcc0] sm:$0xff]
    %v622 = vld [vmem:[#allocation5 + $0xcc8] sm:$0xff]
    %v623 = vld [vmem:[#allocation5 + $0xcd0] sm:$0xff]
    %v624 = vld [vmem:[#allocation5 + $0xcd8] sm:$0xff]
    %v625 = vld [vmem:[#allocation5 + $0xce0] sm:$0xff]
    %v626 = vld [vmem:[#allocation5 + $0xce8] sm:$0xff]
    %v627 = vld [vmem:[#allocation5 + $0xcf0] sm:$0xff]
    %v628 = vld [vmem:[#allocation5 + $0xcf8] sm:$0xff]
    %v629 = vld [vmem:[#allocation5 + $0xd00] sm:$0xff]
    %v630 = vld [vmem:[#allocation5 + $0xd08] sm:$0xff]
    %v631 = vld [vmem:[#allocation5 + $0xd10] sm:$0xff]
    %v632 = vld [vmem:[#allocation5 + $0xd18] sm:$0xff]
    %v633 = vld [vmem:[#allocation5 + $0xd20] sm:$0xff]
    %v634 = vld [vmem:[#allocation5 + $0xd28] sm:$0xff]
    %v635 = vld [vmem:[#allocation5 + $0xd30] sm:$0xff]
    %v636 = vld [vmem:[#allocation5 + $0xd38] sm:$0xff]
    %v637 = vld [vmem:[#allocation5 + $0xd40] sm:$0xff]
    %v638 = vld [vmem:[#allocation5 + $0xd48] sm:$0xff]
    %v639 = vld [vmem:[#allocation5 + $0xd50] sm:$0xff]
    %v640 = vld [vmem:[#allocation5 + $0xd58] sm:$0xff]
    %v641 = vld [vmem:[#allocation5 + $0xd60] sm:$0xff]
    %v642 = vld [vmem:[#allocation5 + $0xd68] sm:$0xff]
    %v643 = vld [vmem:[#allocation5 + $0xd70] sm:$0xff]
    %v644 = vld [vmem:[#allocation5 + $0xd78] sm:$0xff]
    %v645 = vld [vmem:[#allocation5 + $0xd80] sm:$0xff]
    %v646 = vld [vmem:[#allocation5 + $0xd88] sm:$0xff]
    %v647 = vld [vmem:[#allocation5 + $0xd90] sm:$0xff]
    %v648 = vld [vmem:[#allocation5 + $0xd98] sm:$0xff]
    %v649 = vld [vmem:[#allocation5 + $0xda0] sm:$0xff]
    %v650 = vld [vmem:[#allocation5 + $0xda8] sm:$0xff]
    %v651 = vld [vmem:[#allocation5 + $0xdb0] sm:$0xff]
    %v652 = vld [vmem:[#allocation5 + $0xdb8] sm:$0xff]
    %v653 = vld [vmem:[#allocation5 + $0xdc0] sm:$0xff]
    %v654 = vld [vmem:[#allocation5 + $0xdc8] sm:$0xff]
    %v655 = vld [vmem:[#allocation5 + $0xdd0] sm:$0xff]
    %v656 = vld [vmem:[#allocation5 + $0xdd8] sm:$0xff]
    %v657 = vld [vmem:[#allocation5 + $0xde0] sm:$0xff]
    %v658 = vld [vmem:[#allocation5 + $0xde8] sm:$0xff]
    %v659 = vld [vmem:[#allocation5 + $0xdf0] sm:$0xff]
    %v660 = vld [vmem:[#allocation5 + $0xdf8] sm:$0xff]
    %v661 = vld [vmem:[#allocation5 + $0xe00] sm:$0xff]
    %v662 = vld [vmem:[#allocation5 + $0xe08] sm:$0xff]
    %v663 = vld [vmem:[#allocation5 + $0xe10] sm:$0xff]
    %v664 = vld [vmem:[#allocation5 + $0xe18] sm:$0xff]
    %v665 = vld [vmem:[#allocation5 + $0xe20] sm:$0xff]
    %v666 = vld [vmem:[#allocation5 + $0xe28] sm:$0xff]
    %v667 = vld [vmem:[#allocation5 + $0xe30] sm:$0xff]
    %v668 = vld [vmem:[#allocation5 + $0xe38] sm:$0xff]
    %v669 = vld [vmem:[#allocation5 + $0xe40] sm:$0xff]
    %v670 = vld [vmem:[#allocation5 + $0xe48] sm:$0xff]
    %v671 = vld [vmem:[#allocation5 + $0xe50] sm:$0xff]
    %v672 = vld [vmem:[#allocation5 + $0xe58] sm:$0xff]
    %v673 = vld [vmem:[#allocation5 + $0xe60] sm:$0xff]
    %v674 = vld [vmem:[#allocation5 + $0xe68] sm:$0xff]
    %v675 = vld [vmem:[#allocation5 + $0xe70] sm:$0xff]
    %v676 = vld [vmem:[#allocation5 + $0xe78] sm:$0xff]
    %v677 = vld [vmem:[#allocation5 + $0xe80] sm:$0xff]
    %v678 = vld [vmem:[#allocation5 + $0xe88] sm:$0xff]
    %v679 = vld [vmem:[#allocation5 + $0xe90] sm:$0xff]
    %v680 = vld [vmem:[#allocation5 + $0xe98] sm:$0xff]
    %v681 = vld [vmem:[#allocation5 + $0xea0] sm:$0xff]
    %v682 = vld [vmem:[#allocation5 + $0xea8] sm:$0xff]
    %v683 = vld [vmem:[#allocation5 + $0xeb0] sm:$0xff]
    %v684 = vld [vmem:[#allocation5 + $0xeb8] sm:$0xff]
    %v685 = vld [vmem:[#allocation5 + $0xec0] sm:$0xff]
    %v686 = vld [vmem:[#allocation5 + $0xec8] sm:$0xff]
    %v687 = vld [vmem:[#allocation5 + $0xed0] sm:$0xff]
    %v688 = vld [vmem:[#allocation5 + $0xed8] sm:$0xff]
    %v689 = vld [vmem:[#allocation5 + $0xee0] sm:$0xff]
    %v690 = vld [vmem:[#allocation5 + $0xee8] sm:$0xff]
    %v691 = vld [vmem:[#allocation5 + $0xef0] sm:$0xff]
    %v692 = vld [vmem:[#allocation5 + $0xef8] sm:$0xff]
    %v693 = vld [vmem:[#allocation5 + $0xf00] sm:$0xff]
    %v694 = vld [vmem:[#allocation5 + $0xf08] sm:$0xff]
    %v695 = vld [vmem:[#allocation5 + $0xf10] sm:$0xff]
    %v696 = vld [vmem:[#allocation5 + $0xf18] sm:$0xff]
    %v697 = vld [vmem:[#allocation5 + $0xf20] sm:$0xff]
    %v698 = vld [vmem:[#allocation5 + $0xf28] sm:$0xff]
    %v699 = vld [vmem:[#allocation5 + $0xf30] sm:$0xff]
    %v700 = vld [vmem:[#allocation5 + $0xf38] sm:$0xff]
    %v701 = vld [vmem:[#allocation5 + $0xf40] sm:$0xff]
    %v702 = vld [vmem:[#allocation5 + $0xf48] sm:$0xff]
    %v703 = vld [vmem:[#allocation5 + $0xf50] sm:$0xff]
    %v704 = vld [vmem:[#allocation5 + $0xf58] sm:$0xff]
    %v705 = vld [vmem:[#allocation5 + $0xf60] sm:$0xff]
    %v706 = vld [vmem:[#allocation5 + $0xf68] sm:$0xff]
    %v707 = vld [vmem:[#allocation5 + $0xf70] sm:$0xff]
    %v708 = vld [vmem:[#allocation5 + $0xf78] sm:$0xff]
    %v709 = vld [vmem:[#allocation5 + $0xf80] sm:$0xff]
    %v710 = vld [vmem:[#allocation5 + $0xf88] sm:$0xff]
    %v711 = vld [vmem:[#allocation5 + $0xf90] sm:$0xff]
    %v712 = vld [vmem:[#allocation5 + $0xf98] sm:$0xff]
    %v713 = vld [vmem:[#allocation5 + $0xfa0] sm:$0xff]
    %v714 = vld [vmem:[#allocation5 + $0xfa8] sm:$0xff]
    %v715 = vld [vmem:[#allocation5 + $0xfb0] sm:$0xff]
    %v716 = vld [vmem:[#allocation5 + $0xfb8] sm:$0xff]
    %v717 = vld [vmem:[#allocation5 + $0xfc0] sm:$0xff]
    %v718 = vld [vmem:[#allocation5 + $0xfc8] sm:$0xff]
    %v719 = vld [vmem:[#allocation5 + $0xfd0] sm:$0xff]
    %v720 = vld [vmem:[#allocation5 + $0xfd8] sm:$0xff]
    %v721 = vld [vmem:[#allocation5 + $0xfe0] sm:$0xff]
    %v722 = vld [vmem:[#allocation5 + $0xfe8] sm:$0xff]
    %v723 = vld [vmem:[#allocation5 + $0xff0] sm:$0xff]
    %v724 = vld [vmem:[#allocation5 + $0xff8] sm:$0xff]
    %v725 = vld [vmem:[#allocation7] sm:$0x3]
    %v727 = vlaneseq
    %v728 = vshrl.u32 %v727, 7
    %v729 = vsub.s32 0, %v728
    %v730 = vrot.slane %v725, %v729
    %v731 = vlaneseq
    %v732 = vshrl.u32 %v731, 7
    %v733 = vsub.s32 1, %v732
    %v734 = vrot.slane %v725, %v733
    %v1249 = vunpack.c.l.b16 %v213
    %v1250 = vunpack.c.h.b16 %v213
    %v1251 = vunpack.c.l.b16 %v214
    %v1252 = vunpack.c.h.b16 %v214
    %v1253 = vunpack.c.l.b16 %v215
    %v1254 = vunpack.c.h.b16 %v215
    %v1255 = vunpack.c.l.b16 %v216
    %v1256 = vunpack.c.h.b16 %v216
    %v1257 = vunpack.c.l.b16 %v217
    %v1258 = vunpack.c.h.b16 %v217
    %v1259 = vunpack.c.l.b16 %v218
    %v1260 = vunpack.c.h.b16 %v218
    %v1261 = vunpack.c.l.b16 %v219
    %v1262 = vunpack.c.h.b16 %v219
    %v1263 = vunpack.c.l.b16 %v220
    %v1264 = vunpack.c.h.b16 %v220
    %v1265 = vunpack.c.l.b16 %v221
    %v1266 = vunpack.c.h.b16 %v221
    %v1267 = vunpack.c.l.b16 %v222
    %v1268 = vunpack.c.h.b16 %v222
    %v1269 = vunpack.c.l.b16 %v223
    %v1270 = vunpack.c.h.b16 %v223
    %v1271 = vunpack.c.l.b16 %v224
    %v1272 = vunpack.c.h.b16 %v224
    %v1273 = vunpack.c.l.b16 %v225
    %v1274 = vunpack.c.h.b16 %v225
    %v1275 = vunpack.c.l.b16 %v226
    %v1276 = vunpack.c.h.b16 %v226
    %v1277 = vunpack.c.l.b16 %v227
    %v1278 = vunpack.c.h.b16 %v227
    %v1279 = vunpack.c.l.b16 %v228
    %v1280 = vunpack.c.h.b16 %v228
    %v1281 = vunpack.c.l.b16 %v229
    %v1282 = vunpack.c.h.b16 %v229
    %v1283 = vunpack.c.l.b16 %v230
    %v1284 = vunpack.c.h.b16 %v230
    %v1285 = vunpack.c.l.b16 %v231
    %v1286 = vunpack.c.h.b16 %v231
    %v1287 = vunpack.c.l.b16 %v232
    %v1288 = vunpack.c.h.b16 %v232
    %v1289 = vunpack.c.l.b16 %v233
    %v1290 = vunpack.c.h.b16 %v233
    %v1291 = vunpack.c.l.b16 %v234
    %v1292 = vunpack.c.h.b16 %v234
    %v1293 = vunpack.c.l.b16 %v235
    %v1294 = vunpack.c.h.b16 %v235
    %v1295 = vunpack.c.l.b16 %v236
    %v1296 = vunpack.c.h.b16 %v236
    %v1297 = vunpack.c.l.b16 %v237
    %v1298 = vunpack.c.h.b16 %v237
    %v1299 = vunpack.c.l.b16 %v238
    %v1300 = vunpack.c.h.b16 %v238
    %v1301 = vunpack.c.l.b16 %v239
    %v1302 = vunpack.c.h.b16 %v239
    %v1303 = vunpack.c.l.b16 %v240
    %v1304 = vunpack.c.h.b16 %v240
    %v1305 = vunpack.c.l.b16 %v241
    %v1306 = vunpack.c.h.b16 %v241
    %v1307 = vunpack.c.l.b16 %v242
    %v1308 = vunpack.c.h.b16 %v242
    %v1309 = vunpack.c.l.b16 %v243
    %v1310 = vunpack.c.h.b16 %v243
    %v1311 = vunpack.c.l.b16 %v244
    %v1312 = vunpack.c.h.b16 %v244
    %v1313 = vunpack.c.l.b16 %v245
    %v1314 = vunpack.c.h.b16 %v245
    %v1315 = vunpack.c.l.b16 %v246
    %v1316 = vunpack.c.h.b16 %v246
    %v1317 = vunpack.c.l.b16 %v247
    %v1318 = vunpack.c.h.b16 %v247
    %v1319 = vunpack.c.l.b16 %v248
    %v1320 = vunpack.c.h.b16 %v248
    %v1321 = vunpack.c.l.b16 %v249
    %v1322 = vunpack.c.h.b16 %v249
    %v1323 = vunpack.c.l.b16 %v250
    %v1324 = vunpack.c.h.b16 %v250
    %v1325 = vunpack.c.l.b16 %v251
    %v1326 = vunpack.c.h.b16 %v251
    %v1327 = vunpack.c.l.b16 %v252
    %v1328 = vunpack.c.h.b16 %v252
    %v1329 = vunpack.c.l.b16 %v253
    %v1330 = vunpack.c.h.b16 %v253
    %v1331 = vunpack.c.l.b16 %v254
    %v1332 = vunpack.c.h.b16 %v254
    %v1333 = vunpack.c.l.b16 %v255
    %v1334 = vunpack.c.h.b16 %v255
    %v1335 = vunpack.c.l.b16 %v256
    %v1336 = vunpack.c.h.b16 %v256
    %v1337 = vunpack.c.l.b16 %v257
    %v1338 = vunpack.c.h.b16 %v257
    %v1339 = vunpack.c.l.b16 %v258
    %v1340 = vunpack.c.h.b16 %v258
    %v1341 = vunpack.c.l.b16 %v259
    %v1342 = vunpack.c.h.b16 %v259
    %v1343 = vunpack.c.l.b16 %v260
    %v1344 = vunpack.c.h.b16 %v260
    %v1345 = vunpack.c.l.b16 %v261
    %v1346 = vunpack.c.h.b16 %v261
    %v1347 = vunpack.c.l.b16 %v262
    %v1348 = vunpack.c.h.b16 %v262
    %v1349 = vunpack.c.l.b16 %v263
    %v1350 = vunpack.c.h.b16 %v263
    %v1351 = vunpack.c.l.b16 %v264
    %v1352 = vunpack.c.h.b16 %v264
    %v1353 = vunpack.c.l.b16 %v265
    %v1354 = vunpack.c.h.b16 %v265
    %v1355 = vunpack.c.l.b16 %v266
    %v1356 = vunpack.c.h.b16 %v266
    %v1357 = vunpack.c.l.b16 %v267
    %v1358 = vunpack.c.h.b16 %v267
    %v1359 = vunpack.c.l.b16 %v268
    %v1360 = vunpack.c.h.b16 %v268
    %v1361 = vunpack.c.l.b16 %v269
    %v1362 = vunpack.c.h.b16 %v269
    %v1363 = vunpack.c.l.b16 %v270
    %v1364 = vunpack.c.h.b16 %v270
    %v1365 = vunpack.c.l.b16 %v271
    %v1366 = vunpack.c.h.b16 %v271
    %v1367 = vunpack.c.l.b16 %v272
    %v1368 = vunpack.c.h.b16 %v272
    %v1369 = vunpack.c.l.b16 %v273
    %v1370 = vunpack.c.h.b16 %v273
    %v1371 = vunpack.c.l.b16 %v274
    %v1372 = vunpack.c.h.b16 %v274
    %v1373 = vunpack.c.l.b16 %v275
    %v1374 = vunpack.c.h.b16 %v275
    %v1375 = vunpack.c.l.b16 %v276
    %v1376 = vunpack.c.h.b16 %v276
    %v1377 = vunpack.c.l.b16 %v277
    %v1378 = vunpack.c.h.b16 %v277
    %v1379 = vunpack.c.l.b16 %v278
    %v1380 = vunpack.c.h.b16 %v278
    %v1381 = vunpack.c.l.b16 %v279
    %v1382 = vunpack.c.h.b16 %v279
    %v1383 = vunpack.c.l.b16 %v280
    %v1384 = vunpack.c.h.b16 %v280
    %v1385 = vunpack.c.l.b16 %v281
    %v1386 = vunpack.c.h.b16 %v281
    %v1387 = vunpack.c.l.b16 %v282
    %v1388 = vunpack.c.h.b16 %v282
    %v1389 = vunpack.c.l.b16 %v283
    %v1390 = vunpack.c.h.b16 %v283
    %v1391 = vunpack.c.l.b16 %v284
    %v1392 = vunpack.c.h.b16 %v284
    %v1393 = vunpack.c.l.b16 %v285
    %v1394 = vunpack.c.h.b16 %v285
    %v1395 = vunpack.c.l.b16 %v286
    %v1396 = vunpack.c.h.b16 %v286
    %v1397 = vunpack.c.l.b16 %v287
    %v1398 = vunpack.c.h.b16 %v287
    %v1399 = vunpack.c.l.b16 %v288
    %v1400 = vunpack.c.h.b16 %v288
    %v1401 = vunpack.c.l.b16 %v289
    %v1402 = vunpack.c.h.b16 %v289
    %v1403 = vunpack.c.l.b16 %v290
    %v1404 = vunpack.c.h.b16 %v290
    %v1405 = vunpack.c.l.b16 %v291
    %v1406 = vunpack.c.h.b16 %v291
    %v1407 = vunpack.c.l.b16 %v292
    %v1408 = vunpack.c.h.b16 %v292
    %v1409 = vunpack.c.l.b16 %v293
    %v1410 = vunpack.c.h.b16 %v293
    %v1411 = vunpack.c.l.b16 %v294
    %v1412 = vunpack.c.h.b16 %v294
    %v1413 = vunpack.c.l.b16 %v295
    %v1414 = vunpack.c.h.b16 %v295
    %v1415 = vunpack.c.l.b16 %v296
    %v1416 = vunpack.c.h.b16 %v296
    %v1417 = vunpack.c.l.b16 %v297
    %v1418 = vunpack.c.h.b16 %v297
    %v1419 = vunpack.c.l.b16 %v298
    %v1420 = vunpack.c.h.b16 %v298
    %v1421 = vunpack.c.l.b16 %v299
    %v1422 = vunpack.c.h.b16 %v299
    %v1423 = vunpack.c.l.b16 %v300
    %v1424 = vunpack.c.h.b16 %v300
    %v1425 = vunpack.c.l.b16 %v301
    %v1426 = vunpack.c.h.b16 %v301
    %v1427 = vunpack.c.l.b16 %v302
    %v1428 = vunpack.c.h.b16 %v302
    %v1429 = vunpack.c.l.b16 %v303
    %v1430 = vunpack.c.h.b16 %v303
    %v1431 = vunpack.c.l.b16 %v304
    %v1432 = vunpack.c.h.b16 %v304
    %v1433 = vunpack.c.l.b16 %v305
    %v1434 = vunpack.c.h.b16 %v305
    %v1435 = vunpack.c.l.b16 %v306
    %v1436 = vunpack.c.h.b16 %v306
    %v1437 = vunpack.c.l.b16 %v307
    %v1438 = vunpack.c.h.b16 %v307
    %v1439 = vunpack.c.l.b16 %v308
    %v1440 = vunpack.c.h.b16 %v308
    %v1441 = vunpack.c.l.b16 %v309
    %v1442 = vunpack.c.h.b16 %v309
    %v1443 = vunpack.c.l.b16 %v310
    %v1444 = vunpack.c.h.b16 %v310
    %v1445 = vunpack.c.l.b16 %v311
    %v1446 = vunpack.c.h.b16 %v311
    %v1447 = vunpack.c.l.b16 %v312
    %v1448 = vunpack.c.h.b16 %v312
    %v1449 = vunpack.c.l.b16 %v313
    %v1450 = vunpack.c.h.b16 %v313
    %v1451 = vunpack.c.l.b16 %v314
    %v1452 = vunpack.c.h.b16 %v314
    %v1453 = vunpack.c.l.b16 %v315
    %v1454 = vunpack.c.h.b16 %v315
    %v1455 = vunpack.c.l.b16 %v316
    %v1456 = vunpack.c.h.b16 %v316
    %v1457 = vunpack.c.l.b16 %v317
    %v1458 = vunpack.c.h.b16 %v317
    %v1459 = vunpack.c.l.b16 %v318
    %v1460 = vunpack.c.h.b16 %v318
    %v1461 = vunpack.c.l.b16 %v319
    %v1462 = vunpack.c.h.b16 %v319
    %v1463 = vunpack.c.l.b16 %v320
    %v1464 = vunpack.c.h.b16 %v320
    %v1465 = vunpack.c.l.b16 %v321
    %v1466 = vunpack.c.h.b16 %v321
    %v1467 = vunpack.c.l.b16 %v322
    %v1468 = vunpack.c.h.b16 %v322
    %v1469 = vunpack.c.l.b16 %v323
    %v1470 = vunpack.c.h.b16 %v323
    %v1471 = vunpack.c.l.b16 %v324
    %v1472 = vunpack.c.h.b16 %v324
    %v1473 = vunpack.c.l.b16 %v325
    %v1474 = vunpack.c.h.b16 %v325
    %v1475 = vunpack.c.l.b16 %v326
    %v1476 = vunpack.c.h.b16 %v326
    %v1477 = vunpack.c.l.b16 %v327
    %v1478 = vunpack.c.h.b16 %v327
    %v1479 = vunpack.c.l.b16 %v328
    %v1480 = vunpack.c.h.b16 %v328
    %v1481 = vunpack.c.l.b16 %v329
    %v1482 = vunpack.c.h.b16 %v329
    %v1483 = vunpack.c.l.b16 %v330
    %v1484 = vunpack.c.h.b16 %v330
    %v1485 = vunpack.c.l.b16 %v331
    %v1486 = vunpack.c.h.b16 %v331
    %v1487 = vunpack.c.l.b16 %v332
    %v1488 = vunpack.c.h.b16 %v332
    %v1489 = vunpack.c.l.b16 %v333
    %v1490 = vunpack.c.h.b16 %v333
    %v1491 = vunpack.c.l.b16 %v334
    %v1492 = vunpack.c.h.b16 %v334
    %v1493 = vunpack.c.l.b16 %v335
    %v1494 = vunpack.c.h.b16 %v335
    %v1495 = vunpack.c.l.b16 %v336
    %v1496 = vunpack.c.h.b16 %v336
    %v1497 = vunpack.c.l.b16 %v337
    %v1498 = vunpack.c.h.b16 %v337
    %v1499 = vunpack.c.l.b16 %v338
    %v1500 = vunpack.c.h.b16 %v338
    %v1501 = vunpack.c.l.b16 %v339
    %v1502 = vunpack.c.h.b16 %v339
    %v1503 = vunpack.c.l.b16 %v340
    %v1504 = vunpack.c.h.b16 %v340
    %v1505 = vunpack.c.l.b16 %v341
    %v1506 = vunpack.c.h.b16 %v341
    %v1507 = vunpack.c.l.b16 %v342
    %v1508 = vunpack.c.h.b16 %v342
    %v1509 = vunpack.c.l.b16 %v343
    %v1510 = vunpack.c.h.b16 %v343
    %v1511 = vunpack.c.l.b16 %v344
    %v1512 = vunpack.c.h.b16 %v344
    %v1513 = vunpack.c.l.b16 %v345
    %v1514 = vunpack.c.h.b16 %v345
    %v1515 = vunpack.c.l.b16 %v346
    %v1516 = vunpack.c.h.b16 %v346
    %v1517 = vunpack.c.l.b16 %v347
    %v1518 = vunpack.c.h.b16 %v347
    %v1519 = vunpack.c.l.b16 %v348
    %v1520 = vunpack.c.h.b16 %v348
    %v1521 = vunpack.c.l.b16 %v349
    %v1522 = vunpack.c.h.b16 %v349
    %v1523 = vunpack.c.l.b16 %v350
    %v1524 = vunpack.c.h.b16 %v350
    %v1525 = vunpack.c.l.b16 %v351
    %v1526 = vunpack.c.h.b16 %v351
    %v1527 = vunpack.c.l.b16 %v352
    %v1528 = vunpack.c.h.b16 %v352
    %v1529 = vunpack.c.l.b16 %v353
    %v1530 = vunpack.c.h.b16 %v353
    %v1531 = vunpack.c.l.b16 %v354
    %v1532 = vunpack.c.h.b16 %v354
    %v1533 = vunpack.c.l.b16 %v355
    %v1534 = vunpack.c.h.b16 %v355
    %v1535 = vunpack.c.l.b16 %v356
    %v1536 = vunpack.c.h.b16 %v356
    %v1537 = vunpack.c.l.b16 %v357
    %v1538 = vunpack.c.h.b16 %v357
    %v1539 = vunpack.c.l.b16 %v358
    %v1540 = vunpack.c.h.b16 %v358
    %v1541 = vunpack.c.l.b16 %v359
    %v1542 = vunpack.c.h.b16 %v359
    %v1543 = vunpack.c.l.b16 %v360
    %v1544 = vunpack.c.h.b16 %v360
    %v1545 = vunpack.c.l.b16 %v361
    %v1546 = vunpack.c.h.b16 %v361
    %v1547 = vunpack.c.l.b16 %v362
    %v1548 = vunpack.c.h.b16 %v362
    %v1549 = vunpack.c.l.b16 %v363
    %v1550 = vunpack.c.h.b16 %v363
    %v1551 = vunpack.c.l.b16 %v364
    %v1552 = vunpack.c.h.b16 %v364
    %v1553 = vunpack.c.l.b16 %v365
    %v1554 = vunpack.c.h.b16 %v365
    %v1555 = vunpack.c.l.b16 %v366
    %v1556 = vunpack.c.h.b16 %v366
    %v1557 = vunpack.c.l.b16 %v367
    %v1558 = vunpack.c.h.b16 %v367
    %v1559 = vunpack.c.l.b16 %v368
    %v1560 = vunpack.c.h.b16 %v368
    %v1561 = vunpack.c.l.b16 %v369
    %v1562 = vunpack.c.h.b16 %v369
    %v1563 = vunpack.c.l.b16 %v370
    %v1564 = vunpack.c.h.b16 %v370
    %v1565 = vunpack.c.l.b16 %v371
    %v1566 = vunpack.c.h.b16 %v371
    %v1567 = vunpack.c.l.b16 %v372
    %v1568 = vunpack.c.h.b16 %v372
    %v1569 = vunpack.c.l.b16 %v373
    %v1570 = vunpack.c.h.b16 %v373
    %v1571 = vunpack.c.l.b16 %v374
    %v1572 = vunpack.c.h.b16 %v374
    %v1573 = vunpack.c.l.b16 %v375
    %v1574 = vunpack.c.h.b16 %v375
    %v1575 = vunpack.c.l.b16 %v376
    %v1576 = vunpack.c.h.b16 %v376
    %v1577 = vunpack.c.l.b16 %v377
    %v1578 = vunpack.c.h.b16 %v377
    %v1579 = vunpack.c.l.b16 %v378
    %v1580 = vunpack.c.h.b16 %v378
    %v1581 = vunpack.c.l.b16 %v379
    %v1582 = vunpack.c.h.b16 %v379
    %v1583 = vunpack.c.l.b16 %v380
    %v1584 = vunpack.c.h.b16 %v380
    %v1585 = vunpack.c.l.b16 %v381
    %v1586 = vunpack.c.h.b16 %v381
    %v1587 = vunpack.c.l.b16 %v382
    %v1588 = vunpack.c.h.b16 %v382
    %v1589 = vunpack.c.l.b16 %v383
    %v1590 = vunpack.c.h.b16 %v383
    %v1591 = vunpack.c.l.b16 %v384
    %v1592 = vunpack.c.h.b16 %v384
    %v1593 = vunpack.c.l.b16 %v385
    %v1594 = vunpack.c.h.b16 %v385
    %v1595 = vunpack.c.l.b16 %v386
    %v1596 = vunpack.c.h.b16 %v386
    %v1597 = vunpack.c.l.b16 %v387
    %v1598 = vunpack.c.h.b16 %v387
    %v1599 = vunpack.c.l.b16 %v388
    %v1600 = vunpack.c.h.b16 %v388
    %v1601 = vunpack.c.l.b16 %v389
    %v1602 = vunpack.c.h.b16 %v389
    %v1603 = vunpack.c.l.b16 %v390
    %v1604 = vunpack.c.h.b16 %v390
    %v1605 = vunpack.c.l.b16 %v391
    %v1606 = vunpack.c.h.b16 %v391
    %v1607 = vunpack.c.l.b16 %v392
    %v1608 = vunpack.c.h.b16 %v392
    %v1609 = vunpack.c.l.b16 %v393
    %v1610 = vunpack.c.h.b16 %v393
    %v1611 = vunpack.c.l.b16 %v394
    %v1612 = vunpack.c.h.b16 %v394
    %v1613 = vunpack.c.l.b16 %v395
    %v1614 = vunpack.c.h.b16 %v395
    %v1615 = vunpack.c.l.b16 %v396
    %v1616 = vunpack.c.h.b16 %v396
    %v1617 = vunpack.c.l.b16 %v397
    %v1618 = vunpack.c.h.b16 %v397
    %v1619 = vunpack.c.l.b16 %v398
    %v1620 = vunpack.c.h.b16 %v398
    %v1621 = vunpack.c.l.b16 %v399
    %v1622 = vunpack.c.h.b16 %v399
    %v1623 = vunpack.c.l.b16 %v400
    %v1624 = vunpack.c.h.b16 %v400
    %v1625 = vunpack.c.l.b16 %v401
    %v1626 = vunpack.c.h.b16 %v401
    %v1627 = vunpack.c.l.b16 %v402
    %v1628 = vunpack.c.h.b16 %v402
    %v1629 = vunpack.c.l.b16 %v403
    %v1630 = vunpack.c.h.b16 %v403
    %v1631 = vunpack.c.l.b16 %v404
    %v1632 = vunpack.c.h.b16 %v404
    %v1633 = vunpack.c.l.b16 %v405
    %v1634 = vunpack.c.h.b16 %v405
    %v1635 = vunpack.c.l.b16 %v406
    %v1636 = vunpack.c.h.b16 %v406
    %v1637 = vunpack.c.l.b16 %v407
    %v1638 = vunpack.c.h.b16 %v407
    %v1639 = vunpack.c.l.b16 %v408
    %v1640 = vunpack.c.h.b16 %v408
    %v1641 = vunpack.c.l.b16 %v409
    %v1642 = vunpack.c.h.b16 %v409
    %v1643 = vunpack.c.l.b16 %v410
    %v1644 = vunpack.c.h.b16 %v410
    %v1645 = vunpack.c.l.b16 %v411
    %v1646 = vunpack.c.h.b16 %v411
    %v1647 = vunpack.c.l.b16 %v412
    %v1648 = vunpack.c.h.b16 %v412
    %v1649 = vunpack.c.l.b16 %v413
    %v1650 = vunpack.c.h.b16 %v413
    %v1651 = vunpack.c.l.b16 %v414
    %v1652 = vunpack.c.h.b16 %v414
    %v1653 = vunpack.c.l.b16 %v415
    %v1654 = vunpack.c.h.b16 %v415
    %v1655 = vunpack.c.l.b16 %v416
    %v1656 = vunpack.c.h.b16 %v416
    %v1657 = vunpack.c.l.b16 %v417
    %v1658 = vunpack.c.h.b16 %v417
    %v1659 = vunpack.c.l.b16 %v418
    %v1660 = vunpack.c.h.b16 %v418
    %v1661 = vunpack.c.l.b16 %v419
    %v1662 = vunpack.c.h.b16 %v419
    %v1663 = vunpack.c.l.b16 %v420
    %v1664 = vunpack.c.h.b16 %v420
    %v1665 = vunpack.c.l.b16 %v421
    %v1666 = vunpack.c.h.b16 %v421
    %v1667 = vunpack.c.l.b16 %v422
    %v1668 = vunpack.c.h.b16 %v422
    %v1669 = vunpack.c.l.b16 %v423
    %v1670 = vunpack.c.h.b16 %v423
    %v1671 = vunpack.c.l.b16 %v424
    %v1672 = vunpack.c.h.b16 %v424
    %v1673 = vunpack.c.l.b16 %v425
    %v1674 = vunpack.c.h.b16 %v425
    %v1675 = vunpack.c.l.b16 %v426
    %v1676 = vunpack.c.h.b16 %v426
    %v1677 = vunpack.c.l.b16 %v427
    %v1678 = vunpack.c.h.b16 %v427
    %v1679 = vunpack.c.l.b16 %v428
    %v1680 = vunpack.c.h.b16 %v428
    %v1681 = vunpack.c.l.b16 %v429
    %v1682 = vunpack.c.h.b16 %v429
    %v1683 = vunpack.c.l.b16 %v430
    %v1684 = vunpack.c.h.b16 %v430
    %v1685 = vunpack.c.l.b16 %v431
    %v1686 = vunpack.c.h.b16 %v431
    %v1687 = vunpack.c.l.b16 %v432
    %v1688 = vunpack.c.h.b16 %v432
    %v1689 = vunpack.c.l.b16 %v433
    %v1690 = vunpack.c.h.b16 %v433
    %v1691 = vunpack.c.l.b16 %v434
    %v1692 = vunpack.c.h.b16 %v434
    %v1693 = vunpack.c.l.b16 %v435
    %v1694 = vunpack.c.h.b16 %v435
    %v1695 = vunpack.c.l.b16 %v436
    %v1696 = vunpack.c.h.b16 %v436
    %v1697 = vunpack.c.l.b16 %v437
    %v1698 = vunpack.c.h.b16 %v437
    %v1699 = vunpack.c.l.b16 %v438
    %v1700 = vunpack.c.h.b16 %v438
    %v1701 = vunpack.c.l.b16 %v439
    %v1702 = vunpack.c.h.b16 %v439
    %v1703 = vunpack.c.l.b16 %v440
    %v1704 = vunpack.c.h.b16 %v440
    %v1705 = vunpack.c.l.b16 %v441
    %v1706 = vunpack.c.h.b16 %v441
    %v1707 = vunpack.c.l.b16 %v442
    %v1708 = vunpack.c.h.b16 %v442
    %v1709 = vunpack.c.l.b16 %v443
    %v1710 = vunpack.c.h.b16 %v443
    %v1711 = vunpack.c.l.b16 %v444
    %v1712 = vunpack.c.h.b16 %v444
    %v1713 = vunpack.c.l.b16 %v445
    %v1714 = vunpack.c.h.b16 %v445
    %v1715 = vunpack.c.l.b16 %v446
    %v1716 = vunpack.c.h.b16 %v446
    %v1717 = vunpack.c.l.b16 %v447
    %v1718 = vunpack.c.h.b16 %v447
    %v1719 = vunpack.c.l.b16 %v448
    %v1720 = vunpack.c.h.b16 %v448
    %v1721 = vunpack.c.l.b16 %v449
    %v1722 = vunpack.c.h.b16 %v449
    %v1723 = vunpack.c.l.b16 %v450
    %v1724 = vunpack.c.h.b16 %v450
    %v1725 = vunpack.c.l.b16 %v451
    %v1726 = vunpack.c.h.b16 %v451
    %v1727 = vunpack.c.l.b16 %v452
    %v1728 = vunpack.c.h.b16 %v452
    %v1729 = vunpack.c.l.b16 %v453
    %v1730 = vunpack.c.h.b16 %v453
    %v1731 = vunpack.c.l.b16 %v454
    %v1732 = vunpack.c.h.b16 %v454
    %v1733 = vunpack.c.l.b16 %v455
    %v1734 = vunpack.c.h.b16 %v455
    %v1735 = vunpack.c.l.b16 %v456
    %v1736 = vunpack.c.h.b16 %v456
    %v1737 = vunpack.c.l.b16 %v457
    %v1738 = vunpack.c.h.b16 %v457
    %v1739 = vunpack.c.l.b16 %v458
    %v1740 = vunpack.c.h.b16 %v458
    %v1741 = vunpack.c.l.b16 %v459
    %v1742 = vunpack.c.h.b16 %v459
    %v1743 = vunpack.c.l.b16 %v460
    %v1744 = vunpack.c.h.b16 %v460
    %v1745 = vunpack.c.l.b16 %v461
    %v1746 = vunpack.c.h.b16 %v461
    %v1747 = vunpack.c.l.b16 %v462
    %v1748 = vunpack.c.h.b16 %v462
    %v1749 = vunpack.c.l.b16 %v463
    %v1750 = vunpack.c.h.b16 %v463
    %v1751 = vunpack.c.l.b16 %v464
    %v1752 = vunpack.c.h.b16 %v464
    %v1753 = vunpack.c.l.b16 %v465
    %v1754 = vunpack.c.h.b16 %v465
    %v1755 = vunpack.c.l.b16 %v466
    %v1756 = vunpack.c.h.b16 %v466
    %v1757 = vunpack.c.l.b16 %v467
    %v1758 = vunpack.c.h.b16 %v467
    %v1759 = vunpack.c.l.b16 %v468
    %v1760 = vunpack.c.h.b16 %v468
    %v1761 = vunpack.c.l.b16 %v469
    %v1762 = vunpack.c.h.b16 %v469
    %v1763 = vunpack.c.l.b16 %v470
    %v1764 = vunpack.c.h.b16 %v470
    %v1765 = vunpack.c.l.b16 %v471
    %v1766 = vunpack.c.h.b16 %v471
    %v1767 = vunpack.c.l.b16 %v472
    %v1768 = vunpack.c.h.b16 %v472
    %v1769 = vunpack.c.l.b16 %v473
    %v1770 = vunpack.c.h.b16 %v473
    %v1771 = vunpack.c.l.b16 %v474
    %v1772 = vunpack.c.h.b16 %v474
    %v1773 = vunpack.c.l.b16 %v475
    %v1774 = vunpack.c.h.b16 %v475
    %v1775 = vunpack.c.l.b16 %v476
    %v1776 = vunpack.c.h.b16 %v476
    %v1777 = vunpack.c.l.b16 %v477
    %v1778 = vunpack.c.h.b16 %v477
    %v1779 = vunpack.c.l.b16 %v478
    %v1780 = vunpack.c.h.b16 %v478
    %v1781 = vunpack.c.l.b16 %v479
    %v1782 = vunpack.c.h.b16 %v479
    %v1783 = vunpack.c.l.b16 %v480
    %v1784 = vunpack.c.h.b16 %v480
    %v1785 = vunpack.c.l.b16 %v481
    %v1786 = vunpack.c.h.b16 %v481
    %v1787 = vunpack.c.l.b16 %v482
    %v1788 = vunpack.c.h.b16 %v482
    %v1789 = vunpack.c.l.b16 %v483
    %v1790 = vunpack.c.h.b16 %v483
    %v1791 = vunpack.c.l.b16 %v484
    %v1792 = vunpack.c.h.b16 %v484
    %v1793 = vunpack.c.l.b16 %v485
    %v1794 = vunpack.c.h.b16 %v485
    %v1795 = vunpack.c.l.b16 %v486
    %v1796 = vunpack.c.h.b16 %v486
    %v1797 = vunpack.c.l.b16 %v487
    %v1798 = vunpack.c.h.b16 %v487
    %v1799 = vunpack.c.l.b16 %v488
    %v1800 = vunpack.c.h.b16 %v488
    %v1801 = vunpack.c.l.b16 %v489
    %v1802 = vunpack.c.h.b16 %v489
    %v1803 = vunpack.c.l.b16 %v490
    %v1804 = vunpack.c.h.b16 %v490
    %v1805 = vunpack.c.l.b16 %v491
    %v1806 = vunpack.c.h.b16 %v491
    %v1807 = vunpack.c.l.b16 %v492
    %v1808 = vunpack.c.h.b16 %v492
    %v1809 = vunpack.c.l.b16 %v493
    %v1810 = vunpack.c.h.b16 %v493
    %v1811 = vunpack.c.l.b16 %v494
    %v1812 = vunpack.c.h.b16 %v494
    %v1813 = vunpack.c.l.b16 %v495
    %v1814 = vunpack.c.h.b16 %v495
    %v1815 = vunpack.c.l.b16 %v496
    %v1816 = vunpack.c.h.b16 %v496
    %v1817 = vunpack.c.l.b16 %v497
    %v1818 = vunpack.c.h.b16 %v497
    %v1819 = vunpack.c.l.b16 %v498
    %v1820 = vunpack.c.h.b16 %v498
    %v1821 = vunpack.c.l.b16 %v499
    %v1822 = vunpack.c.h.b16 %v499
    %v1823 = vunpack.c.l.b16 %v500
    %v1824 = vunpack.c.h.b16 %v500
    %v1825 = vunpack.c.l.b16 %v501
    %v1826 = vunpack.c.h.b16 %v501
    %v1827 = vunpack.c.l.b16 %v502
    %v1828 = vunpack.c.h.b16 %v502
    %v1829 = vunpack.c.l.b16 %v503
    %v1830 = vunpack.c.h.b16 %v503
    %v1831 = vunpack.c.l.b16 %v504
    %v1832 = vunpack.c.h.b16 %v504
    %v1833 = vunpack.c.l.b16 %v505
    %v1834 = vunpack.c.h.b16 %v505
    %v1835 = vunpack.c.l.b16 %v506
    %v1836 = vunpack.c.h.b16 %v506
    %v1837 = vunpack.c.l.b16 %v507
    %v1838 = vunpack.c.h.b16 %v507
    %v1839 = vunpack.c.l.b16 %v508
    %v1840 = vunpack.c.h.b16 %v508
    %v1841 = vunpack.c.l.b16 %v509
    %v1842 = vunpack.c.h.b16 %v509
    %v1843 = vunpack.c.l.b16 %v510
    %v1844 = vunpack.c.h.b16 %v510
    %v1845 = vunpack.c.l.b16 %v511
    %v1846 = vunpack.c.h.b16 %v511
    %v1847 = vunpack.c.l.b16 %v512
    %v1848 = vunpack.c.h.b16 %v512
    %v1849 = vunpack.c.l.b16 %v513
    %v1850 = vunpack.c.h.b16 %v513
    %v1851 = vunpack.c.l.b16 %v514
    %v1852 = vunpack.c.h.b16 %v514
    %v1853 = vunpack.c.l.b16 %v515
    %v1854 = vunpack.c.h.b16 %v515
    %v1855 = vunpack.c.l.b16 %v516
    %v1856 = vunpack.c.h.b16 %v516
    %v1857 = vunpack.c.l.b16 %v517
    %v1858 = vunpack.c.h.b16 %v517
    %v1859 = vunpack.c.l.b16 %v518
    %v1860 = vunpack.c.h.b16 %v518
    %v1861 = vunpack.c.l.b16 %v519
    %v1862 = vunpack.c.h.b16 %v519
    %v1863 = vunpack.c.l.b16 %v520
    %v1864 = vunpack.c.h.b16 %v520
    %v1865 = vunpack.c.l.b16 %v521
    %v1866 = vunpack.c.h.b16 %v521
    %v1867 = vunpack.c.l.b16 %v522
    %v1868 = vunpack.c.h.b16 %v522
    %v1869 = vunpack.c.l.b16 %v523
    %v1870 = vunpack.c.h.b16 %v523
    %v1871 = vunpack.c.l.b16 %v524
    %v1872 = vunpack.c.h.b16 %v524
    %v1873 = vunpack.c.l.b16 %v525
    %v1874 = vunpack.c.h.b16 %v525
    %v1875 = vunpack.c.l.b16 %v526
    %v1876 = vunpack.c.h.b16 %v526
    %v1877 = vunpack.c.l.b16 %v527
    %v1878 = vunpack.c.h.b16 %v527
    %v1879 = vunpack.c.l.b16 %v528
    %v1880 = vunpack.c.h.b16 %v528
    %v1881 = vunpack.c.l.b16 %v529
    %v1882 = vunpack.c.h.b16 %v529
    %v1883 = vunpack.c.l.b16 %v530
    %v1884 = vunpack.c.h.b16 %v530
    %v1885 = vunpack.c.l.b16 %v531
    %v1886 = vunpack.c.h.b16 %v531
    %v1887 = vunpack.c.l.b16 %v532
    %v1888 = vunpack.c.h.b16 %v532
    %v1889 = vunpack.c.l.b16 %v533
    %v1890 = vunpack.c.h.b16 %v533
    %v1891 = vunpack.c.l.b16 %v534
    %v1892 = vunpack.c.h.b16 %v534
    %v1893 = vunpack.c.l.b16 %v535
    %v1894 = vunpack.c.h.b16 %v535
    %v1895 = vunpack.c.l.b16 %v536
    %v1896 = vunpack.c.h.b16 %v536
    %v1897 = vunpack.c.l.b16 %v537
    %v1898 = vunpack.c.h.b16 %v537
    %v1899 = vunpack.c.l.b16 %v538
    %v1900 = vunpack.c.h.b16 %v538
    %v1901 = vunpack.c.l.b16 %v539
    %v1902 = vunpack.c.h.b16 %v539
    %v1903 = vunpack.c.l.b16 %v540
    %v1904 = vunpack.c.h.b16 %v540
    %v1905 = vunpack.c.l.b16 %v541
    %v1906 = vunpack.c.h.b16 %v541
    %v1907 = vunpack.c.l.b16 %v542
    %v1908 = vunpack.c.h.b16 %v542
    %v1909 = vunpack.c.l.b16 %v543
    %v1910 = vunpack.c.h.b16 %v543
    %v1911 = vunpack.c.l.b16 %v544
    %v1912 = vunpack.c.h.b16 %v544
    %v1913 = vunpack.c.l.b16 %v545
    %v1914 = vunpack.c.h.b16 %v545
    %v1915 = vunpack.c.l.b16 %v546
    %v1916 = vunpack.c.h.b16 %v546
    %v1917 = vunpack.c.l.b16 %v547
    %v1918 = vunpack.c.h.b16 %v547
    %v1919 = vunpack.c.l.b16 %v548
    %v1920 = vunpack.c.h.b16 %v548
    %v1921 = vunpack.c.l.b16 %v549
    %v1922 = vunpack.c.h.b16 %v549
    %v1923 = vunpack.c.l.b16 %v550
    %v1924 = vunpack.c.h.b16 %v550
    %v1925 = vunpack.c.l.b16 %v551
    %v1926 = vunpack.c.h.b16 %v551
    %v1927 = vunpack.c.l.b16 %v552
    %v1928 = vunpack.c.h.b16 %v552
    %v1929 = vunpack.c.l.b16 %v553
    %v1930 = vunpack.c.h.b16 %v553
    %v1931 = vunpack.c.l.b16 %v554
    %v1932 = vunpack.c.h.b16 %v554
    %v1933 = vunpack.c.l.b16 %v555
    %v1934 = vunpack.c.h.b16 %v555
    %v1935 = vunpack.c.l.b16 %v556
    %v1936 = vunpack.c.h.b16 %v556
    %v1937 = vunpack.c.l.b16 %v557
    %v1938 = vunpack.c.h.b16 %v557
    %v1939 = vunpack.c.l.b16 %v558
    %v1940 = vunpack.c.h.b16 %v558
    %v1941 = vunpack.c.l.b16 %v559
    %v1942 = vunpack.c.h.b16 %v559
    %v1943 = vunpack.c.l.b16 %v560
    %v1944 = vunpack.c.h.b16 %v560
    %v1945 = vunpack.c.l.b16 %v561
    %v1946 = vunpack.c.h.b16 %v561
    %v1947 = vunpack.c.l.b16 %v562
    %v1948 = vunpack.c.h.b16 %v562
    %v1949 = vunpack.c.l.b16 %v563
    %v1950 = vunpack.c.h.b16 %v563
    %v1951 = vunpack.c.l.b16 %v564
    %v1952 = vunpack.c.h.b16 %v564
    %v1953 = vunpack.c.l.b16 %v565
    %v1954 = vunpack.c.h.b16 %v565
    %v1955 = vunpack.c.l.b16 %v566
    %v1956 = vunpack.c.h.b16 %v566
    %v1957 = vunpack.c.l.b16 %v567
    %v1958 = vunpack.c.h.b16 %v567
    %v1959 = vunpack.c.l.b16 %v568
    %v1960 = vunpack.c.h.b16 %v568
    %v1961 = vunpack.c.l.b16 %v569
    %v1962 = vunpack.c.h.b16 %v569
    %v1963 = vunpack.c.l.b16 %v570
    %v1964 = vunpack.c.h.b16 %v570
    %v1965 = vunpack.c.l.b16 %v571
    %v1966 = vunpack.c.h.b16 %v571
    %v1967 = vunpack.c.l.b16 %v572
    %v1968 = vunpack.c.h.b16 %v572
    %v1969 = vunpack.c.l.b16 %v573
    %v1970 = vunpack.c.h.b16 %v573
    %v1971 = vunpack.c.l.b16 %v574
    %v1972 = vunpack.c.h.b16 %v574
    %v1973 = vunpack.c.l.b16 %v575
    %v1974 = vunpack.c.h.b16 %v575
    %v1975 = vunpack.c.l.b16 %v576
    %v1976 = vunpack.c.h.b16 %v576
    %v1977 = vunpack.c.l.b16 %v577
    %v1978 = vunpack.c.h.b16 %v577
    %v1979 = vunpack.c.l.b16 %v578
    %v1980 = vunpack.c.h.b16 %v578
    %v1981 = vunpack.c.l.b16 %v579
    %v1982 = vunpack.c.h.b16 %v579
    %v1983 = vunpack.c.l.b16 %v580
    %v1984 = vunpack.c.h.b16 %v580
    %v1985 = vunpack.c.l.b16 %v581
    %v1986 = vunpack.c.h.b16 %v581
    %v1987 = vunpack.c.l.b16 %v582
    %v1988 = vunpack.c.h.b16 %v582
    %v1989 = vunpack.c.l.b16 %v583
    %v1990 = vunpack.c.h.b16 %v583
    %v1991 = vunpack.c.l.b16 %v584
    %v1992 = vunpack.c.h.b16 %v584
    %v1993 = vunpack.c.l.b16 %v585
    %v1994 = vunpack.c.h.b16 %v585
    %v1995 = vunpack.c.l.b16 %v586
    %v1996 = vunpack.c.h.b16 %v586
    %v1997 = vunpack.c.l.b16 %v587
    %v1998 = vunpack.c.h.b16 %v587
    %v1999 = vunpack.c.l.b16 %v588
    %v2000 = vunpack.c.h.b16 %v588
    %v2001 = vunpack.c.l.b16 %v589
    %v2002 = vunpack.c.h.b16 %v589
    %v2003 = vunpack.c.l.b16 %v590
    %v2004 = vunpack.c.h.b16 %v590
    %v2005 = vunpack.c.l.b16 %v591
    %v2006 = vunpack.c.h.b16 %v591
    %v2007 = vunpack.c.l.b16 %v592
    %v2008 = vunpack.c.h.b16 %v592
    %v2009 = vunpack.c.l.b16 %v593
    %v2010 = vunpack.c.h.b16 %v593
    %v2011 = vunpack.c.l.b16 %v594
    %v2012 = vunpack.c.h.b16 %v594
    %v2013 = vunpack.c.l.b16 %v595
    %v2014 = vunpack.c.h.b16 %v595
    %v2015 = vunpack.c.l.b16 %v596
    %v2016 = vunpack.c.h.b16 %v596
    %v2017 = vunpack.c.l.b16 %v597
    %v2018 = vunpack.c.h.b16 %v597
    %v2019 = vunpack.c.l.b16 %v598
    %v2020 = vunpack.c.h.b16 %v598
    %v2021 = vunpack.c.l.b16 %v599
    %v2022 = vunpack.c.h.b16 %v599
    %v2023 = vunpack.c.l.b16 %v600
    %v2024 = vunpack.c.h.b16 %v600
    %v2025 = vunpack.c.l.b16 %v601
    %v2026 = vunpack.c.h.b16 %v601
    %v2027 = vunpack.c.l.b16 %v602
    %v2028 = vunpack.c.h.b16 %v602
    %v2029 = vunpack.c.l.b16 %v603
    %v2030 = vunpack.c.h.b16 %v603
    %v2031 = vunpack.c.l.b16 %v604
    %v2032 = vunpack.c.h.b16 %v604
    %v2033 = vunpack.c.l.b16 %v605
    %v2034 = vunpack.c.h.b16 %v605
    %v2035 = vunpack.c.l.b16 %v606
    %v2036 = vunpack.c.h.b16 %v606
    %v2037 = vunpack.c.l.b16 %v607
    %v2038 = vunpack.c.h.b16 %v607
    %v2039 = vunpack.c.l.b16 %v608
    %v2040 = vunpack.c.h.b16 %v608
    %v2041 = vunpack.c.l.b16 %v609
    %v2042 = vunpack.c.h.b16 %v609
    %v2043 = vunpack.c.l.b16 %v610
    %v2044 = vunpack.c.h.b16 %v610
    %v2045 = vunpack.c.l.b16 %v611
    %v2046 = vunpack.c.h.b16 %v611
    %v2047 = vunpack.c.l.b16 %v612
    %v2048 = vunpack.c.h.b16 %v612
    %v2049 = vunpack.c.l.b16 %v613
    %v2050 = vunpack.c.h.b16 %v613
    %v2051 = vunpack.c.l.b16 %v614
    %v2052 = vunpack.c.h.b16 %v614
    %v2053 = vunpack.c.l.b16 %v615
    %v2054 = vunpack.c.h.b16 %v615
    %v2055 = vunpack.c.l.b16 %v616
    %v2056 = vunpack.c.h.b16 %v616
    %v2057 = vunpack.c.l.b16 %v617
    %v2058 = vunpack.c.h.b16 %v617
    %v2059 = vunpack.c.l.b16 %v618
    %v2060 = vunpack.c.h.b16 %v618
    %v2061 = vunpack.c.l.b16 %v619
    %v2062 = vunpack.c.h.b16 %v619
    %v2063 = vunpack.c.l.b16 %v620
    %v2064 = vunpack.c.h.b16 %v620
    %v2065 = vunpack.c.l.b16 %v621
    %v2066 = vunpack.c.h.b16 %v621
    %v2067 = vunpack.c.l.b16 %v622
    %v2068 = vunpack.c.h.b16 %v622
    %v2069 = vunpack.c.l.b16 %v623
    %v2070 = vunpack.c.h.b16 %v623
    %v2071 = vunpack.c.l.b16 %v624
    %v2072 = vunpack.c.h.b16 %v624
    %v2073 = vunpack.c.l.b16 %v625
    %v2074 = vunpack.c.h.b16 %v625
    %v2075 = vunpack.c.l.b16 %v626
    %v2076 = vunpack.c.h.b16 %v626
    %v2077 = vunpack.c.l.b16 %v627
    %v2078 = vunpack.c.h.b16 %v627
    %v2079 = vunpack.c.l.b16 %v628
    %v2080 = vunpack.c.h.b16 %v628
    %v2081 = vunpack.c.l.b16 %v629
    %v2082 = vunpack.c.h.b16 %v629
    %v2083 = vunpack.c.l.b16 %v630
    %v2084 = vunpack.c.h.b16 %v630
    %v2085 = vunpack.c.l.b16 %v631
    %v2086 = vunpack.c.h.b16 %v631
    %v2087 = vunpack.c.l.b16 %v632
    %v2088 = vunpack.c.h.b16 %v632
    %v2089 = vunpack.c.l.b16 %v633
    %v2090 = vunpack.c.h.b16 %v633
    %v2091 = vunpack.c.l.b16 %v634
    %v2092 = vunpack.c.h.b16 %v634
    %v2093 = vunpack.c.l.b16 %v635
    %v2094 = vunpack.c.h.b16 %v635
    %v2095 = vunpack.c.l.b16 %v636
    %v2096 = vunpack.c.h.b16 %v636
    %v2097 = vunpack.c.l.b16 %v637
    %v2098 = vunpack.c.h.b16 %v637
    %v2099 = vunpack.c.l.b16 %v638
    %v2100 = vunpack.c.h.b16 %v638
    %v2101 = vunpack.c.l.b16 %v639
    %v2102 = vunpack.c.h.b16 %v639
    %v2103 = vunpack.c.l.b16 %v640
    %v2104 = vunpack.c.h.b16 %v640
    %v2105 = vunpack.c.l.b16 %v641
    %v2106 = vunpack.c.h.b16 %v641
    %v2107 = vunpack.c.l.b16 %v642
    %v2108 = vunpack.c.h.b16 %v642
    %v2109 = vunpack.c.l.b16 %v643
    %v2110 = vunpack.c.h.b16 %v643
    %v2111 = vunpack.c.l.b16 %v644
    %v2112 = vunpack.c.h.b16 %v644
    %v2113 = vunpack.c.l.b16 %v645
    %v2114 = vunpack.c.h.b16 %v645
    %v2115 = vunpack.c.l.b16 %v646
    %v2116 = vunpack.c.h.b16 %v646
    %v2117 = vunpack.c.l.b16 %v647
    %v2118 = vunpack.c.h.b16 %v647
    %v2119 = vunpack.c.l.b16 %v648
    %v2120 = vunpack.c.h.b16 %v648
    %v2121 = vunpack.c.l.b16 %v649
    %v2122 = vunpack.c.h.b16 %v649
    %v2123 = vunpack.c.l.b16 %v650
    %v2124 = vunpack.c.h.b16 %v650
    %v2125 = vunpack.c.l.b16 %v651
    %v2126 = vunpack.c.h.b16 %v651
    %v2127 = vunpack.c.l.b16 %v652
    %v2128 = vunpack.c.h.b16 %v652
    %v2129 = vunpack.c.l.b16 %v653
    %v2130 = vunpack.c.h.b16 %v653
    %v2131 = vunpack.c.l.b16 %v654
    %v2132 = vunpack.c.h.b16 %v654
    %v2133 = vunpack.c.l.b16 %v655
    %v2134 = vunpack.c.h.b16 %v655
    %v2135 = vunpack.c.l.b16 %v656
    %v2136 = vunpack.c.h.b16 %v656
    %v2137 = vunpack.c.l.b16 %v657
    %v2138 = vunpack.c.h.b16 %v657
    %v2139 = vunpack.c.l.b16 %v658
    %v2140 = vunpack.c.h.b16 %v658
    %v2141 = vunpack.c.l.b16 %v659
    %v2142 = vunpack.c.h.b16 %v659
    %v2143 = vunpack.c.l.b16 %v660
    %v2144 = vunpack.c.h.b16 %v660
    %v2145 = vunpack.c.l.b16 %v661
    %v2146 = vunpack.c.h.b16 %v661
    %v2147 = vunpack.c.l.b16 %v662
    %v2148 = vunpack.c.h.b16 %v662
    %v2149 = vunpack.c.l.b16 %v663
    %v2150 = vunpack.c.h.b16 %v663
    %v2151 = vunpack.c.l.b16 %v664
    %v2152 = vunpack.c.h.b16 %v664
    %v2153 = vunpack.c.l.b16 %v665
    %v2154 = vunpack.c.h.b16 %v665
    %v2155 = vunpack.c.l.b16 %v666
    %v2156 = vunpack.c.h.b16 %v666
    %v2157 = vunpack.c.l.b16 %v667
    %v2158 = vunpack.c.h.b16 %v667
    %v2159 = vunpack.c.l.b16 %v668
    %v2160 = vunpack.c.h.b16 %v668
    %v2161 = vunpack.c.l.b16 %v669
    %v2162 = vunpack.c.h.b16 %v669
    %v2163 = vunpack.c.l.b16 %v670
    %v2164 = vunpack.c.h.b16 %v670
    %v2165 = vunpack.c.l.b16 %v671
    %v2166 = vunpack.c.h.b16 %v671
    %v2167 = vunpack.c.l.b16 %v672
    %v2168 = vunpack.c.h.b16 %v672
    %v2169 = vunpack.c.l.b16 %v673
    %v2170 = vunpack.c.h.b16 %v673
    %v2171 = vunpack.c.l.b16 %v674
    %v2172 = vunpack.c.h.b16 %v674
    %v2173 = vunpack.c.l.b16 %v675
    %v2174 = vunpack.c.h.b16 %v675
    %v2175 = vunpack.c.l.b16 %v676
    %v2176 = vunpack.c.h.b16 %v676
    %v2177 = vunpack.c.l.b16 %v677
    %v2178 = vunpack.c.h.b16 %v677
    %v2179 = vunpack.c.l.b16 %v678
    %v2180 = vunpack.c.h.b16 %v678
    %v2181 = vunpack.c.l.b16 %v679
    %v2182 = vunpack.c.h.b16 %v679
    %v2183 = vunpack.c.l.b16 %v680
    %v2184 = vunpack.c.h.b16 %v680
    %v2185 = vunpack.c.l.b16 %v681
    %v2186 = vunpack.c.h.b16 %v681
    %v2187 = vunpack.c.l.b16 %v682
    %v2188 = vunpack.c.h.b16 %v682
    %v2189 = vunpack.c.l.b16 %v683
    %v2190 = vunpack.c.h.b16 %v683
    %v2191 = vunpack.c.l.b16 %v684
    %v2192 = vunpack.c.h.b16 %v684
    %v2193 = vunpack.c.l.b16 %v685
    %v2194 = vunpack.c.h.b16 %v685
    %v2195 = vunpack.c.l.b16 %v686
    %v2196 = vunpack.c.h.b16 %v686
    %v2197 = vunpack.c.l.b16 %v687
    %v2198 = vunpack.c.h.b16 %v687
    %v2199 = vunpack.c.l.b16 %v688
    %v2200 = vunpack.c.h.b16 %v688
    %v2201 = vunpack.c.l.b16 %v689
    %v2202 = vunpack.c.h.b16 %v689
    %v2203 = vunpack.c.l.b16 %v690
    %v2204 = vunpack.c.h.b16 %v690
    %v2205 = vunpack.c.l.b16 %v691
    %v2206 = vunpack.c.h.b16 %v691
    %v2207 = vunpack.c.l.b16 %v692
    %v2208 = vunpack.c.h.b16 %v692
    %v2209 = vunpack.c.l.b16 %v693
    %v2210 = vunpack.c.h.b16 %v693
    %v2211 = vunpack.c.l.b16 %v694
    %v2212 = vunpack.c.h.b16 %v694
    %v2213 = vunpack.c.l.b16 %v695
    %v2214 = vunpack.c.h.b16 %v695
    %v2215 = vunpack.c.l.b16 %v696
    %v2216 = vunpack.c.h.b16 %v696
    %v2217 = vunpack.c.l.b16 %v697
    %v2218 = vunpack.c.h.b16 %v697
    %v2219 = vunpack.c.l.b16 %v698
    %v2220 = vunpack.c.h.b16 %v698
    %v2221 = vunpack.c.l.b16 %v699
    %v2222 = vunpack.c.h.b16 %v699
    %v2223 = vunpack.c.l.b16 %v700
    %v2224 = vunpack.c.h.b16 %v700
    %v2225 = vunpack.c.l.b16 %v701
    %v2226 = vunpack.c.h.b16 %v701
    %v2227 = vunpack.c.l.b16 %v702
    %v2228 = vunpack.c.h.b16 %v702
    %v2229 = vunpack.c.l.b16 %v703
    %v2230 = vunpack.c.h.b16 %v703
    %v2231 = vunpack.c.l.b16 %v704
    %v2232 = vunpack.c.h.b16 %v704
    %v2233 = vunpack.c.l.b16 %v705
    %v2234 = vunpack.c.h.b16 %v705
    %v2235 = vunpack.c.l.b16 %v706
    %v2236 = vunpack.c.h.b16 %v706
    %v2237 = vunpack.c.l.b16 %v707
    %v2238 = vunpack.c.h.b16 %v707
    %v2239 = vunpack.c.l.b16 %v708
    %v2240 = vunpack.c.h.b16 %v708
    %v2241 = vunpack.c.l.b16 %v709
    %v2242 = vunpack.c.h.b16 %v709
    %v2243 = vunpack.c.l.b16 %v710
    %v2244 = vunpack.c.h.b16 %v710
    %v2245 = vunpack.c.l.b16 %v711
    %v2246 = vunpack.c.h.b16 %v711
    %v2247 = vunpack.c.l.b16 %v712
    %v2248 = vunpack.c.h.b16 %v712
    %v2249 = vunpack.c.l.b16 %v713
    %v2250 = vunpack.c.h.b16 %v713
    %v2251 = vunpack.c.l.b16 %v714
    %v2252 = vunpack.c.h.b16 %v714
    %v2253 = vunpack.c.l.b16 %v715
    %v2254 = vunpack.c.h.b16 %v715
    %v2255 = vunpack.c.l.b16 %v716
    %v2256 = vunpack.c.h.b16 %v716
    %v2257 = vunpack.c.l.b16 %v717
    %v2258 = vunpack.c.h.b16 %v717
    %v2259 = vunpack.c.l.b16 %v718
    %v2260 = vunpack.c.h.b16 %v718
    %v2261 = vunpack.c.l.b16 %v719
    %v2262 = vunpack.c.h.b16 %v719
    %v2263 = vunpack.c.l.b16 %v720
    %v2264 = vunpack.c.h.b16 %v720
    %v2265 = vunpack.c.l.b16 %v721
    %v2266 = vunpack.c.h.b16 %v721
    %v2267 = vunpack.c.l.b16 %v722
    %v2268 = vunpack.c.h.b16 %v722
    %v2269 = vunpack.c.l.b16 %v723
    %v2270 = vunpack.c.h.b16 %v723
    %v2271 = vunpack.c.l.b16 %v724
    %v2272 = vunpack.c.h.b16 %v724
    %v2273 = vpack.c.b16 %v1251, %v1249
    %v2274 = vpack.c.b16 %v1252, %v1250
    %v2275 = vpack.c.b16 %v1255, %v1253
    %v2276 = vpack.c.b16 %v1256, %v1254
    %v2277 = vpack.c.b16 %v1259, %v1257
    %v2278 = vpack.c.b16 %v1260, %v1258
    %v2279 = vpack.c.b16 %v1263, %v1261
    %v2280 = vpack.c.b16 %v1264, %v1262
    %v2281 = vpack.c.b16 %v1267, %v1265
    %v2282 = vpack.c.b16 %v1268, %v1266
    %v2283 = vpack.c.b16 %v1271, %v1269
    %v2284 = vpack.c.b16 %v1272, %v1270
    %v2285 = vpack.c.b16 %v1275, %v1273
    %v2286 = vpack.c.b16 %v1276, %v1274
    %v2287 = vpack.c.b16 %v1279, %v1277
    %v2288 = vpack.c.b16 %v1280, %v1278
    %v2289 = vpack.c.b16 %v1283, %v1281
    %v2290 = vpack.c.b16 %v1284, %v1282
    %v2291 = vpack.c.b16 %v1287, %v1285
    %v2292 = vpack.c.b16 %v1288, %v1286
    %v2293 = vpack.c.b16 %v1291, %v1289
    %v2294 = vpack.c.b16 %v1292, %v1290
    %v2295 = vpack.c.b16 %v1295, %v1293
    %v2296 = vpack.c.b16 %v1296, %v1294
    %v2297 = vpack.c.b16 %v1299, %v1297
    %v2298 = vpack.c.b16 %v1300, %v1298
    %v2299 = vpack.c.b16 %v1303, %v1301
    %v2300 = vpack.c.b16 %v1304, %v1302
    %v2301 = vpack.c.b16 %v1307, %v1305
    %v2302 = vpack.c.b16 %v1308, %v1306
    %v2303 = vpack.c.b16 %v1311, %v1309
    %v2304 = vpack.c.b16 %v1312, %v1310
    %v2305 = vpack.c.b16 %v1315, %v1313
    %v2306 = vpack.c.b16 %v1316, %v1314
    %v2307 = vpack.c.b16 %v1319, %v1317
    %v2308 = vpack.c.b16 %v1320, %v1318
    %v2309 = vpack.c.b16 %v1323, %v1321
    %v2310 = vpack.c.b16 %v1324, %v1322
    %v2311 = vpack.c.b16 %v1327, %v1325
    %v2312 = vpack.c.b16 %v1328, %v1326
    %v2313 = vpack.c.b16 %v1331, %v1329
    %v2314 = vpack.c.b16 %v1332, %v1330
    %v2315 = vpack.c.b16 %v1335, %v1333
    %v2316 = vpack.c.b16 %v1336, %v1334
    %v2317 = vpack.c.b16 %v1339, %v1337
    %v2318 = vpack.c.b16 %v1340, %v1338
    %v2319 = vpack.c.b16 %v1343, %v1341
    %v2320 = vpack.c.b16 %v1344, %v1342
    %v2321 = vpack.c.b16 %v1347, %v1345
    %v2322 = vpack.c.b16 %v1348, %v1346
    %v2323 = vpack.c.b16 %v1351, %v1349
    %v2324 = vpack.c.b16 %v1352, %v1350
    %v2325 = vpack.c.b16 %v1355, %v1353
    %v2326 = vpack.c.b16 %v1356, %v1354
    %v2327 = vpack.c.b16 %v1359, %v1357
    %v2328 = vpack.c.b16 %v1360, %v1358
    %v2329 = vpack.c.b16 %v1363, %v1361
    %v2330 = vpack.c.b16 %v1364, %v1362
    %v2331 = vpack.c.b16 %v1367, %v1365
    %v2332 = vpack.c.b16 %v1368, %v1366
    %v2333 = vpack.c.b16 %v1371, %v1369
    %v2334 = vpack.c.b16 %v1372, %v1370
    %v2335 = vpack.c.b16 %v1375, %v1373
    %v2336 = vpack.c.b16 %v1376, %v1374
    %v2337 = vpack.c.b16 %v1379, %v1377
    %v2338 = vpack.c.b16 %v1380, %v1378
    %v2339 = vpack.c.b16 %v1383, %v1381
    %v2340 = vpack.c.b16 %v1384, %v1382
    %v2341 = vpack.c.b16 %v1387, %v1385
    %v2342 = vpack.c.b16 %v1388, %v1386
    %v2343 = vpack.c.b16 %v1391, %v1389
    %v2344 = vpack.c.b16 %v1392, %v1390
    %v2345 = vpack.c.b16 %v1395, %v1393
    %v2346 = vpack.c.b16 %v1396, %v1394
    %v2347 = vpack.c.b16 %v1399, %v1397
    %v2348 = vpack.c.b16 %v1400, %v1398
    %v2349 = vpack.c.b16 %v1403, %v1401
    %v2350 = vpack.c.b16 %v1404, %v1402
    %v2351 = vpack.c.b16 %v1407, %v1405
    %v2352 = vpack.c.b16 %v1408, %v1406
    %v2353 = vpack.c.b16 %v1411, %v1409
    %v2354 = vpack.c.b16 %v1412, %v1410
    %v2355 = vpack.c.b16 %v1415, %v1413
    %v2356 = vpack.c.b16 %v1416, %v1414
    %v2357 = vpack.c.b16 %v1419, %v1417
    %v2358 = vpack.c.b16 %v1420, %v1418
    %v2359 = vpack.c.b16 %v1423, %v1421
    %v2360 = vpack.c.b16 %v1424, %v1422
    %v2361 = vpack.c.b16 %v1427, %v1425
    %v2362 = vpack.c.b16 %v1428, %v1426
    %v2363 = vpack.c.b16 %v1431, %v1429
    %v2364 = vpack.c.b16 %v1432, %v1430
    %v2365 = vpack.c.b16 %v1435, %v1433
    %v2366 = vpack.c.b16 %v1436, %v1434
    %v2367 = vpack.c.b16 %v1439, %v1437
    %v2368 = vpack.c.b16 %v1440, %v1438
    %v2369 = vpack.c.b16 %v1443, %v1441
    %v2370 = vpack.c.b16 %v1444, %v1442
    %v2371 = vpack.c.b16 %v1447, %v1445
    %v2372 = vpack.c.b16 %v1448, %v1446
    %v2373 = vpack.c.b16 %v1451, %v1449
    %v2374 = vpack.c.b16 %v1452, %v1450
    %v2375 = vpack.c.b16 %v1455, %v1453
    %v2376 = vpack.c.b16 %v1456, %v1454
    %v2377 = vpack.c.b16 %v1459, %v1457
    %v2378 = vpack.c.b16 %v1460, %v1458
    %v2379 = vpack.c.b16 %v1463, %v1461
    %v2380 = vpack.c.b16 %v1464, %v1462
    %v2381 = vpack.c.b16 %v1467, %v1465
    %v2382 = vpack.c.b16 %v1468, %v1466
    %v2383 = vpack.c.b16 %v1471, %v1469
    %v2384 = vpack.c.b16 %v1472, %v1470
    %v2385 = vpack.c.b16 %v1475, %v1473
    %v2386 = vpack.c.b16 %v1476, %v1474
    %v2387 = vpack.c.b16 %v1479, %v1477
    %v2388 = vpack.c.b16 %v1480, %v1478
    %v2389 = vpack.c.b16 %v1483, %v1481
    %v2390 = vpack.c.b16 %v1484, %v1482
    %v2391 = vpack.c.b16 %v1487, %v1485
    %v2392 = vpack.c.b16 %v1488, %v1486
    %v2393 = vpack.c.b16 %v1491, %v1489
    %v2394 = vpack.c.b16 %v1492, %v1490
    %v2395 = vpack.c.b16 %v1495, %v1493
    %v2396 = vpack.c.b16 %v1496, %v1494
    %v2397 = vpack.c.b16 %v1499, %v1497
    %v2398 = vpack.c.b16 %v1500, %v1498
    %v2399 = vpack.c.b16 %v1503, %v1501
    %v2400 = vpack.c.b16 %v1504, %v1502
    %v2401 = vpack.c.b16 %v1507, %v1505
    %v2402 = vpack.c.b16 %v1508, %v1506
    %v2403 = vpack.c.b16 %v1511, %v1509
    %v2404 = vpack.c.b16 %v1512, %v1510
    %v2405 = vpack.c.b16 %v1515, %v1513
    %v2406 = vpack.c.b16 %v1516, %v1514
    %v2407 = vpack.c.b16 %v1519, %v1517
    %v2408 = vpack.c.b16 %v1520, %v1518
    %v2409 = vpack.c.b16 %v1523, %v1521
    %v2410 = vpack.c.b16 %v1524, %v1522
    %v2411 = vpack.c.b16 %v1527, %v1525
    %v2412 = vpack.c.b16 %v1528, %v1526
    %v2413 = vpack.c.b16 %v1531, %v1529
    %v2414 = vpack.c.b16 %v1532, %v1530
    %v2415 = vpack.c.b16 %v1535, %v1533
    %v2416 = vpack.c.b16 %v1536, %v1534
    %v2417 = vpack.c.b16 %v1539, %v1537
    %v2418 = vpack.c.b16 %v1540, %v1538
    %v2419 = vpack.c.b16 %v1543, %v1541
    %v2420 = vpack.c.b16 %v1544, %v1542
    %v2421 = vpack.c.b16 %v1547, %v1545
    %v2422 = vpack.c.b16 %v1548, %v1546
    %v2423 = vpack.c.b16 %v1551, %v1549
    %v2424 = vpack.c.b16 %v1552, %v1550
    %v2425 = vpack.c.b16 %v1555, %v1553
    %v2426 = vpack.c.b16 %v1556, %v1554
    %v2427 = vpack.c.b16 %v1559, %v1557
    %v2428 = vpack.c.b16 %v1560, %v1558
    %v2429 = vpack.c.b16 %v1563, %v1561
    %v2430 = vpack.c.b16 %v1564, %v1562
    %v2431 = vpack.c.b16 %v1567, %v1565
    %v2432 = vpack.c.b16 %v1568, %v1566
    %v2433 = vpack.c.b16 %v1571, %v1569
    %v2434 = vpack.c.b16 %v1572, %v1570
    %v2435 = vpack.c.b16 %v1575, %v1573
    %v2436 = vpack.c.b16 %v1576, %v1574
    %v2437 = vpack.c.b16 %v1579, %v1577
    %v2438 = vpack.c.b16 %v1580, %v1578
    %v2439 = vpack.c.b16 %v1583, %v1581
    %v2440 = vpack.c.b16 %v1584, %v1582
    %v2441 = vpack.c.b16 %v1587, %v1585
    %v2442 = vpack.c.b16 %v1588, %v1586
    %v2443 = vpack.c.b16 %v1591, %v1589
    %v2444 = vpack.c.b16 %v1592, %v1590
    %v2445 = vpack.c.b16 %v1595, %v1593
    %v2446 = vpack.c.b16 %v1596, %v1594
    %v2447 = vpack.c.b16 %v1599, %v1597
    %v2448 = vpack.c.b16 %v1600, %v1598
    %v2449 = vpack.c.b16 %v1603, %v1601
    %v2450 = vpack.c.b16 %v1604, %v1602
    %v2451 = vpack.c.b16 %v1607, %v1605
    %v2452 = vpack.c.b16 %v1608, %v1606
    %v2453 = vpack.c.b16 %v1611, %v1609
    %v2454 = vpack.c.b16 %v1612, %v1610
    %v2455 = vpack.c.b16 %v1615, %v1613
    %v2456 = vpack.c.b16 %v1616, %v1614
    %v2457 = vpack.c.b16 %v1619, %v1617
    %v2458 = vpack.c.b16 %v1620, %v1618
    %v2459 = vpack.c.b16 %v1623, %v1621
    %v2460 = vpack.c.b16 %v1624, %v1622
    %v2461 = vpack.c.b16 %v1627, %v1625
    %v2462 = vpack.c.b16 %v1628, %v1626
    %v2463 = vpack.c.b16 %v1631, %v1629
    %v2464 = vpack.c.b16 %v1632, %v1630
    %v2465 = vpack.c.b16 %v1635, %v1633
    %v2466 = vpack.c.b16 %v1636, %v1634
    %v2467 = vpack.c.b16 %v1639, %v1637
    %v2468 = vpack.c.b16 %v1640, %v1638
    %v2469 = vpack.c.b16 %v1643, %v1641
    %v2470 = vpack.c.b16 %v1644, %v1642
    %v2471 = vpack.c.b16 %v1647, %v1645
    %v2472 = vpack.c.b16 %v1648, %v1646
    %v2473 = vpack.c.b16 %v1651, %v1649
    %v2474 = vpack.c.b16 %v1652, %v1650
    %v2475 = vpack.c.b16 %v1655, %v1653
    %v2476 = vpack.c.b16 %v1656, %v1654
    %v2477 = vpack.c.b16 %v1659, %v1657
    %v2478 = vpack.c.b16 %v1660, %v1658
    %v2479 = vpack.c.b16 %v1663, %v1661
    %v2480 = vpack.c.b16 %v1664, %v1662
    %v2481 = vpack.c.b16 %v1667, %v1665
    %v2482 = vpack.c.b16 %v1668, %v1666
    %v2483 = vpack.c.b16 %v1671, %v1669
    %v2484 = vpack.c.b16 %v1672, %v1670
    %v2485 = vpack.c.b16 %v1675, %v1673
    %v2486 = vpack.c.b16 %v1676, %v1674
    %v2487 = vpack.c.b16 %v1679, %v1677
    %v2488 = vpack.c.b16 %v1680, %v1678
    %v2489 = vpack.c.b16 %v1683, %v1681
    %v2490 = vpack.c.b16 %v1684, %v1682
    %v2491 = vpack.c.b16 %v1687, %v1685
    %v2492 = vpack.c.b16 %v1688, %v1686
    %v2493 = vpack.c.b16 %v1691, %v1689
    %v2494 = vpack.c.b16 %v1692, %v1690
    %v2495 = vpack.c.b16 %v1695, %v1693
    %v2496 = vpack.c.b16 %v1696, %v1694
    %v2497 = vpack.c.b16 %v1699, %v1697
    %v2498 = vpack.c.b16 %v1700, %v1698
    %v2499 = vpack.c.b16 %v1703, %v1701
    %v2500 = vpack.c.b16 %v1704, %v1702
    %v2501 = vpack.c.b16 %v1707, %v1705
    %v2502 = vpack.c.b16 %v1708, %v1706
    %v2503 = vpack.c.b16 %v1711, %v1709
    %v2504 = vpack.c.b16 %v1712, %v1710
    %v2505 = vpack.c.b16 %v1715, %v1713
    %v2506 = vpack.c.b16 %v1716, %v1714
    %v2507 = vpack.c.b16 %v1719, %v1717
    %v2508 = vpack.c.b16 %v1720, %v1718
    %v2509 = vpack.c.b16 %v1723, %v1721
    %v2510 = vpack.c.b16 %v1724, %v1722
    %v2511 = vpack.c.b16 %v1727, %v1725
    %v2512 = vpack.c.b16 %v1728, %v1726
    %v2513 = vpack.c.b16 %v1731, %v1729
    %v2514 = vpack.c.b16 %v1732, %v1730
    %v2515 = vpack.c.b16 %v1735, %v1733
    %v2516 = vpack.c.b16 %v1736, %v1734
    %v2517 = vpack.c.b16 %v1739, %v1737
    %v2518 = vpack.c.b16 %v1740, %v1738
    %v2519 = vpack.c.b16 %v1743, %v1741
    %v2520 = vpack.c.b16 %v1744, %v1742
    %v2521 = vpack.c.b16 %v1747, %v1745
    %v2522 = vpack.c.b16 %v1748, %v1746
    %v2523 = vpack.c.b16 %v1751, %v1749
    %v2524 = vpack.c.b16 %v1752, %v1750
    %v2525 = vpack.c.b16 %v1755, %v1753
    %v2526 = vpack.c.b16 %v1756, %v1754
    %v2527 = vpack.c.b16 %v1759, %v1757
    %v2528 = vpack.c.b16 %v1760, %v1758
    %v2529 = vpack.c.b16 %v1763, %v1761
    %v2530 = vpack.c.b16 %v1764, %v1762
    %v2531 = vpack.c.b16 %v1767, %v1765
    %v2532 = vpack.c.b16 %v1768, %v1766
    %v2533 = vpack.c.b16 %v1771, %v1769
    %v2534 = vpack.c.b16 %v1772, %v1770
    %v2535 = vpack.c.b16 %v1775, %v1773
    %v2536 = vpack.c.b16 %v1776, %v1774
    %v2537 = vpack.c.b16 %v1779, %v1777
    %v2538 = vpack.c.b16 %v1780, %v1778
    %v2539 = vpack.c.b16 %v1783, %v1781
    %v2540 = vpack.c.b16 %v1784, %v1782
    %v2541 = vpack.c.b16 %v1787, %v1785
    %v2542 = vpack.c.b16 %v1788, %v1786
    %v2543 = vpack.c.b16 %v1791, %v1789
    %v2544 = vpack.c.b16 %v1792, %v1790
    %v2545 = vpack.c.b16 %v1795, %v1793
    %v2546 = vpack.c.b16 %v1796, %v1794
    %v2547 = vpack.c.b16 %v1799, %v1797
    %v2548 = vpack.c.b16 %v1800, %v1798
    %v2549 = vpack.c.b16 %v1803, %v1801
    %v2550 = vpack.c.b16 %v1804, %v1802
    %v2551 = vpack.c.b16 %v1807, %v1805
    %v2552 = vpack.c.b16 %v1808, %v1806
    %v2553 = vpack.c.b16 %v1811, %v1809
    %v2554 = vpack.c.b16 %v1812, %v1810
    %v2555 = vpack.c.b16 %v1815, %v1813
    %v2556 = vpack.c.b16 %v1816, %v1814
    %v2557 = vpack.c.b16 %v1819, %v1817
    %v2558 = vpack.c.b16 %v1820, %v1818
    %v2559 = vpack.c.b16 %v1823, %v1821
    %v2560 = vpack.c.b16 %v1824, %v1822
    %v2561 = vpack.c.b16 %v1827, %v1825
    %v2562 = vpack.c.b16 %v1828, %v1826
    %v2563 = vpack.c.b16 %v1831, %v1829
    %v2564 = vpack.c.b16 %v1832, %v1830
    %v2565 = vpack.c.b16 %v1835, %v1833
    %v2566 = vpack.c.b16 %v1836, %v1834
    %v2567 = vpack.c.b16 %v1839, %v1837
    %v2568 = vpack.c.b16 %v1840, %v1838
    %v2569 = vpack.c.b16 %v1843, %v1841
    %v2570 = vpack.c.b16 %v1844, %v1842
    %v2571 = vpack.c.b16 %v1847, %v1845
    %v2572 = vpack.c.b16 %v1848, %v1846
    %v2573 = vpack.c.b16 %v1851, %v1849
    %v2574 = vpack.c.b16 %v1852, %v1850
    %v2575 = vpack.c.b16 %v1855, %v1853
    %v2576 = vpack.c.b16 %v1856, %v1854
    %v2577 = vpack.c.b16 %v1859, %v1857
    %v2578 = vpack.c.b16 %v1860, %v1858
    %v2579 = vpack.c.b16 %v1863, %v1861
    %v2580 = vpack.c.b16 %v1864, %v1862
    %v2581 = vpack.c.b16 %v1867, %v1865
    %v2582 = vpack.c.b16 %v1868, %v1866
    %v2583 = vpack.c.b16 %v1871, %v1869
    %v2584 = vpack.c.b16 %v1872, %v1870
    %v2585 = vpack.c.b16 %v1875, %v1873
    %v2586 = vpack.c.b16 %v1876, %v1874
    %v2587 = vpack.c.b16 %v1879, %v1877
    %v2588 = vpack.c.b16 %v1880, %v1878
    %v2589 = vpack.c.b16 %v1883, %v1881
    %v2590 = vpack.c.b16 %v1884, %v1882
    %v2591 = vpack.c.b16 %v1887, %v1885
    %v2592 = vpack.c.b16 %v1888, %v1886
    %v2593 = vpack.c.b16 %v1891, %v1889
    %v2594 = vpack.c.b16 %v1892, %v1890
    %v2595 = vpack.c.b16 %v1895, %v1893
    %v2596 = vpack.c.b16 %v1896, %v1894
    %v2597 = vpack.c.b16 %v1899, %v1897
    %v2598 = vpack.c.b16 %v1900, %v1898
    %v2599 = vpack.c.b16 %v1903, %v1901
    %v2600 = vpack.c.b16 %v1904, %v1902
    %v2601 = vpack.c.b16 %v1907, %v1905
    %v2602 = vpack.c.b16 %v1908, %v1906
    %v2603 = vpack.c.b16 %v1911, %v1909
    %v2604 = vpack.c.b16 %v1912, %v1910
    %v2605 = vpack.c.b16 %v1915, %v1913
    %v2606 = vpack.c.b16 %v1916, %v1914
    %v2607 = vpack.c.b16 %v1919, %v1917
    %v2608 = vpack.c.b16 %v1920, %v1918
    %v2609 = vpack.c.b16 %v1923, %v1921
    %v2610 = vpack.c.b16 %v1924, %v1922
    %v2611 = vpack.c.b16 %v1927, %v1925
    %v2612 = vpack.c.b16 %v1928, %v1926
    %v2613 = vpack.c.b16 %v1931, %v1929
    %v2614 = vpack.c.b16 %v1932, %v1930
    %v2615 = vpack.c.b16 %v1935, %v1933
    %v2616 = vpack.c.b16 %v1936, %v1934
    %v2617 = vpack.c.b16 %v1939, %v1937
    %v2618 = vpack.c.b16 %v1940, %v1938
    %v2619 = vpack.c.b16 %v1943, %v1941
    %v2620 = vpack.c.b16 %v1944, %v1942
    %v2621 = vpack.c.b16 %v1947, %v1945
    %v2622 = vpack.c.b16 %v1948, %v1946
    %v2623 = vpack.c.b16 %v1951, %v1949
    %v2624 = vpack.c.b16 %v1952, %v1950
    %v2625 = vpack.c.b16 %v1955, %v1953
    %v2626 = vpack.c.b16 %v1956, %v1954
    %v2627 = vpack.c.b16 %v1959, %v1957
    %v2628 = vpack.c.b16 %v1960, %v1958
    %v2629 = vpack.c.b16 %v1963, %v1961
    %v2630 = vpack.c.b16 %v1964, %v1962
    %v2631 = vpack.c.b16 %v1967, %v1965
    %v2632 = vpack.c.b16 %v1968, %v1966
    %v2633 = vpack.c.b16 %v1971, %v1969
    %v2634 = vpack.c.b16 %v1972, %v1970
    %v2635 = vpack.c.b16 %v1975, %v1973
    %v2636 = vpack.c.b16 %v1976, %v1974
    %v2637 = vpack.c.b16 %v1979, %v1977
    %v2638 = vpack.c.b16 %v1980, %v1978
    %v2639 = vpack.c.b16 %v1983, %v1981
    %v2640 = vpack.c.b16 %v1984, %v1982
    %v2641 = vpack.c.b16 %v1987, %v1985
    %v2642 = vpack.c.b16 %v1988, %v1986
    %v2643 = vpack.c.b16 %v1991, %v1989
    %v2644 = vpack.c.b16 %v1992, %v1990
    %v2645 = vpack.c.b16 %v1995, %v1993
    %v2646 = vpack.c.b16 %v1996, %v1994
    %v2647 = vpack.c.b16 %v1999, %v1997
    %v2648 = vpack.c.b16 %v2000, %v1998
    %v2649 = vpack.c.b16 %v2003, %v2001
    %v2650 = vpack.c.b16 %v2004, %v2002
    %v2651 = vpack.c.b16 %v2007, %v2005
    %v2652 = vpack.c.b16 %v2008, %v2006
    %v2653 = vpack.c.b16 %v2011, %v2009
    %v2654 = vpack.c.b16 %v2012, %v2010
    %v2655 = vpack.c.b16 %v2015, %v2013
    %v2656 = vpack.c.b16 %v2016, %v2014
    %v2657 = vpack.c.b16 %v2019, %v2017
    %v2658 = vpack.c.b16 %v2020, %v2018
    %v2659 = vpack.c.b16 %v2023, %v2021
    %v2660 = vpack.c.b16 %v2024, %v2022
    %v2661 = vpack.c.b16 %v2027, %v2025
    %v2662 = vpack.c.b16 %v2028, %v2026
    %v2663 = vpack.c.b16 %v2031, %v2029
    %v2664 = vpack.c.b16 %v2032, %v2030
    %v2665 = vpack.c.b16 %v2035, %v2033
    %v2666 = vpack.c.b16 %v2036, %v2034
    %v2667 = vpack.c.b16 %v2039, %v2037
    %v2668 = vpack.c.b16 %v2040, %v2038
    %v2669 = vpack.c.b16 %v2043, %v2041
    %v2670 = vpack.c.b16 %v2044, %v2042
    %v2671 = vpack.c.b16 %v2047, %v2045
    %v2672 = vpack.c.b16 %v2048, %v2046
    %v2673 = vpack.c.b16 %v2051, %v2049
    %v2674 = vpack.c.b16 %v2052, %v2050
    %v2675 = vpack.c.b16 %v2055, %v2053
    %v2676 = vpack.c.b16 %v2056, %v2054
    %v2677 = vpack.c.b16 %v2059, %v2057
    %v2678 = vpack.c.b16 %v2060, %v2058
    %v2679 = vpack.c.b16 %v2063, %v2061
    %v2680 = vpack.c.b16 %v2064, %v2062
    %v2681 = vpack.c.b16 %v2067, %v2065
    %v2682 = vpack.c.b16 %v2068, %v2066
    %v2683 = vpack.c.b16 %v2071, %v2069
    %v2684 = vpack.c.b16 %v2072, %v2070
    %v2685 = vpack.c.b16 %v2075, %v2073
    %v2686 = vpack.c.b16 %v2076, %v2074
    %v2687 = vpack.c.b16 %v2079, %v2077
    %v2688 = vpack.c.b16 %v2080, %v2078
    %v2689 = vpack.c.b16 %v2083, %v2081
    %v2690 = vpack.c.b16 %v2084, %v2082
    %v2691 = vpack.c.b16 %v2087, %v2085
    %v2692 = vpack.c.b16 %v2088, %v2086
    %v2693 = vpack.c.b16 %v2091, %v2089
    %v2694 = vpack.c.b16 %v2092, %v2090
    %v2695 = vpack.c.b16 %v2095, %v2093
    %v2696 = vpack.c.b16 %v2096, %v2094
    %v2697 = vpack.c.b16 %v2099, %v2097
    %v2698 = vpack.c.b16 %v2100, %v2098
    %v2699 = vpack.c.b16 %v2103, %v2101
    %v2700 = vpack.c.b16 %v2104, %v2102
    %v2701 = vpack.c.b16 %v2107, %v2105
    %v2702 = vpack.c.b16 %v2108, %v2106
    %v2703 = vpack.c.b16 %v2111, %v2109
    %v2704 = vpack.c.b16 %v2112, %v2110
    %v2705 = vpack.c.b16 %v2115, %v2113
    %v2706 = vpack.c.b16 %v2116, %v2114
    %v2707 = vpack.c.b16 %v2119, %v2117
    %v2708 = vpack.c.b16 %v2120, %v2118
    %v2709 = vpack.c.b16 %v2123, %v2121
    %v2710 = vpack.c.b16 %v2124, %v2122
    %v2711 = vpack.c.b16 %v2127, %v2125
    %v2712 = vpack.c.b16 %v2128, %v2126
    %v2713 = vpack.c.b16 %v2131, %v2129
    %v2714 = vpack.c.b16 %v2132, %v2130
    %v2715 = vpack.c.b16 %v2135, %v2133
    %v2716 = vpack.c.b16 %v2136, %v2134
    %v2717 = vpack.c.b16 %v2139, %v2137
    %v2718 = vpack.c.b16 %v2140, %v2138
    %v2719 = vpack.c.b16 %v2143, %v2141
    %v2720 = vpack.c.b16 %v2144, %v2142
    %v2721 = vpack.c.b16 %v2147, %v2145
    %v2722 = vpack.c.b16 %v2148, %v2146
    %v2723 = vpack.c.b16 %v2151, %v2149
    %v2724 = vpack.c.b16 %v2152, %v2150
    %v2725 = vpack.c.b16 %v2155, %v2153
    %v2726 = vpack.c.b16 %v2156, %v2154
    %v2727 = vpack.c.b16 %v2159, %v2157
    %v2728 = vpack.c.b16 %v2160, %v2158
    %v2729 = vpack.c.b16 %v2163, %v2161
    %v2730 = vpack.c.b16 %v2164, %v2162
    %v2731 = vpack.c.b16 %v2167, %v2165
    %v2732 = vpack.c.b16 %v2168, %v2166
    %v2733 = vpack.c.b16 %v2171, %v2169
    %v2734 = vpack.c.b16 %v2172, %v2170
    %v2735 = vpack.c.b16 %v2175, %v2173
    %v2736 = vpack.c.b16 %v2176, %v2174
    %v2737 = vpack.c.b16 %v2179, %v2177
    %v2738 = vpack.c.b16 %v2180, %v2178
    %v2739 = vpack.c.b16 %v2183, %v2181
    %v2740 = vpack.c.b16 %v2184, %v2182
    %v2741 = vpack.c.b16 %v2187, %v2185
    %v2742 = vpack.c.b16 %v2188, %v2186
    %v2743 = vpack.c.b16 %v2191, %v2189
    %v2744 = vpack.c.b16 %v2192, %v2190
    %v2745 = vpack.c.b16 %v2195, %v2193
    %v2746 = vpack.c.b16 %v2196, %v2194
    %v2747 = vpack.c.b16 %v2199, %v2197
    %v2748 = vpack.c.b16 %v2200, %v2198
    %v2749 = vpack.c.b16 %v2203, %v2201
    %v2750 = vpack.c.b16 %v2204, %v2202
    %v2751 = vpack.c.b16 %v2207, %v2205
    %v2752 = vpack.c.b16 %v2208, %v2206
    %v2753 = vpack.c.b16 %v2211, %v2209
    %v2754 = vpack.c.b16 %v2212, %v2210
    %v2755 = vpack.c.b16 %v2215, %v2213
    %v2756 = vpack.c.b16 %v2216, %v2214
    %v2757 = vpack.c.b16 %v2219, %v2217
    %v2758 = vpack.c.b16 %v2220, %v2218
    %v2759 = vpack.c.b16 %v2223, %v2221
    %v2760 = vpack.c.b16 %v2224, %v2222
    %v2761 = vpack.c.b16 %v2227, %v2225
    %v2762 = vpack.c.b16 %v2228, %v2226
    %v2763 = vpack.c.b16 %v2231, %v2229
    %v2764 = vpack.c.b16 %v2232, %v2230
    %v2765 = vpack.c.b16 %v2235, %v2233
    %v2766 = vpack.c.b16 %v2236, %v2234
    %v2767 = vpack.c.b16 %v2239, %v2237
    %v2768 = vpack.c.b16 %v2240, %v2238
    %v2769 = vpack.c.b16 %v2243, %v2241
    %v2770 = vpack.c.b16 %v2244, %v2242
    %v2771 = vpack.c.b16 %v2247, %v2245
    %v2772 = vpack.c.b16 %v2248, %v2246
    %v2773 = vpack.c.b16 %v2251, %v2249
    %v2774 = vpack.c.b16 %v2252, %v2250
    %v2775 = vpack.c.b16 %v2255, %v2253
    %v2776 = vpack.c.b16 %v2256, %v2254
    %v2777 = vpack.c.b16 %v2259, %v2257
    %v2778 = vpack.c.b16 %v2260, %v2258
    %v2779 = vpack.c.b16 %v2263, %v2261
    %v2780 = vpack.c.b16 %v2264, %v2262
    %v2781 = vpack.c.b16 %v2267, %v2265
    %v2782 = vpack.c.b16 %v2268, %v2266
    %v2783 = vpack.c.b16 %v2271, %v2269
    %v2784 = vpack.c.b16 %v2272, %v2270
    %3297 = vmatprep.subr.bf16.mxu0 %v2274
    %3298 = vmatpush1.bf16.msra.mxu0 %v2273
    %3299 = vmatprep.subr.bf16.mxu0 %v2276
    %3300 = vmatpush1.bf16.msra.mxu0 %v2275
    %3301 = vmatprep.subr.bf16.mxu0 %v2278
    %3302 = vmatpush1.bf16.msra.mxu0 %v2277
    %3303 = vmatprep.subr.bf16.mxu0 %v2280
    %3304 = vmatpush1.bf16.msra.mxu0 %v2279
    %3305 = vmatprep.subr.bf16.mxu0 %v2282
    %3306 = vmatpush1.bf16.msra.mxu0 %v2281
    %3307 = vmatprep.subr.bf16.mxu0 %v2284
    %3308 = vmatpush1.bf16.msra.mxu0 %v2283
    %3309 = vmatprep.subr.bf16.mxu0 %v2286
    %3310 = vmatpush1.bf16.msra.mxu0 %v2285
    %3311 = vmatprep.subr.bf16.mxu0 %v2288
    %3312 = vmatpush1.bf16.msra.mxu0 %v2287
    %3313 = vmatprep.subr.bf16.mxu0 %v2290
    %3314 = vmatpush1.bf16.msra.mxu0 %v2289
    %3315 = vmatprep.subr.bf16.mxu0 %v2292
    %3316 = vmatpush1.bf16.msra.mxu0 %v2291
    %3317 = vmatprep.subr.bf16.mxu0 %v2294
    %3318 = vmatpush1.bf16.msra.mxu0 %v2293
    %3319 = vmatprep.subr.bf16.mxu0 %v2296
    %3320 = vmatpush1.bf16.msra.mxu0 %v2295
    %3321 = vmatprep.subr.bf16.mxu0 %v2298
    %3322 = vmatpush1.bf16.msra.mxu0 %v2297
    %3323 = vmatprep.subr.bf16.mxu0 %v2300
    %3324 = vmatpush1.bf16.msra.mxu0 %v2299
    %3325 = vmatprep.subr.bf16.mxu0 %v2302
    %3326 = vmatpush1.bf16.msra.mxu0 %v2301
    %3327 = vmatprep.subr.bf16.mxu0 %v2304
    %3328 = vmatpush1.bf16.msra.mxu0 %v2303
    %3329 = vmatprep.mubr.bf16.mxu0 %v182
    %3330 = vmatmul.mubr.bf16.gmra.mrb[0].mxu0 %v181
    %v3331 = vpop.f32.mrb[0].mxu0
    %v3332 = vadd.f32 %v730, %v3331
    %v3333 = vpop.f32.mrb[0].mxu0
    %v3334 = vadd.f32 %v734, %v3333
    %v3335 = vpop.f32.mrb[0].mxu0
    %v3336 = vadd.f32 %v730, %v3335
    %v3337 = vpop.f32.mrb[0].mxu0
    %v3338 = vadd.f32 %v734, %v3337
    %3339 = vdwg.mxu0
    %3340 = vmatprep.subr.bf16.mxu0 %v2306
    %3341 = vmatpush1.bf16.msra.mxu0 %v2305
    %3342 = vmatprep.subr.bf16.mxu0 %v2308
    %3343 = vmatpush1.bf16.msra.mxu0 %v2307
    %3344 = vmatprep.subr.bf16.mxu0 %v2310
    %3345 = vmatpush1.bf16.msra.mxu0 %v2309
    %3346 = vmatprep.subr.bf16.mxu0 %v2312
    %3347 = vmatpush1.bf16.msra.mxu0 %v2311
    %3348 = vmatprep.subr.bf16.mxu0 %v2314
    %3349 = vmatpush1.bf16.msra.mxu0 %v2313
    %3350 = vmatprep.subr.bf16.mxu0 %v2316
    %3351 = vmatpush1.bf16.msra.mxu0 %v2315
    %3352 = vmatprep.subr.bf16.mxu0 %v2318
    %3353 = vmatpush1.bf16.msra.mxu0 %v2317
    %3354 = vmatprep.subr.bf16.mxu0 %v2320
    %3355 = vmatpush1.bf16.msra.mxu0 %v2319
    %3356 = vmatprep.subr.bf16.mxu0 %v2322
    %3357 = vmatpush1.bf16.msra.mxu0 %v2321
    %3358 = vmatprep.subr.bf16.mxu0 %v2324
    %3359 = vmatpush1.bf16.msra.mxu0 %v2323
    %3360 = vmatprep.subr.bf16.mxu0 %v2326
    %3361 = vmatpush1.bf16.msra.mxu0 %v2325
    %3362 = vmatprep.subr.bf16.mxu0 %v2328
    %3363 = vmatpush1.bf16.msra.mxu0 %v2327
    %3364 = vmatprep.subr.bf16.mxu0 %v2330
    %3365 = vmatpush1.bf16.msra.mxu0 %v2329
    %3366 = vmatprep.subr.bf16.mxu0 %v2332
    %3367 = vmatpush1.bf16.msra.mxu0 %v2331
    %3368 = vmatprep.subr.bf16.mxu0 %v2334
    %3369 = vmatpush1.bf16.msra.mxu0 %v2333
    %3370 = vmatprep.subr.bf16.mxu0 %v2336
    %3371 = vmatpush1.bf16.msra.mxu0 %v2335
    %3372 = vmatprep.mubr.bf16.mxu0 %v184
    %3373 = vmatmul.mubr.bf16.gmra.mrb[0].mxu0 %v183
    %v3374 = vpop.f32.mrb[0].mxu0
    %v3375 = vadd.f32 %v3332, %v3374
    %v3376 = vpop.f32.mrb[0].mxu0
    %v3377 = vadd.f32 %v3334, %v3376
    %v3378 = vpop.f32.mrb[0].mxu0
    %v3379 = vadd.f32 %v3336, %v3378
    %v3380 = vpop.f32.mrb[0].mxu0
    %v3381 = vadd.f32 %v3338, %v3380
    %3382 = vdwg.mxu0
    %3383 = vmatprep.subr.bf16.mxu0 %v2338
    %3384 = vmatpush1.bf16.msra.mxu0 %v2337
    %3385 = vmatprep.subr.bf16.mxu0 %v2340
    %3386 = vmatpush1.bf16.msra.mxu0 %v2339
    %3387 = vmatprep.subr.bf16.mxu0 %v2342
    %3388 = vmatpush1.bf16.msra.mxu0 %v2341
    %3389 = vmatprep.subr.bf16.mxu0 %v2344
    %3390 = vmatpush1.bf16.msra.mxu0 %v2343
    %3391 = vmatprep.subr.bf16.mxu0 %v2346
    %3392 = vmatpush1.bf16.msra.mxu0 %v2345
    %3393 = vmatprep.subr.bf16.mxu0 %v2348
    %3394 = vmatpush1.bf16.msra.mxu0 %v2347
    %3395 = vmatprep.subr.bf16.mxu0 %v2350
    %3396 = vmatpush1.bf16.msra.mxu0 %v2349
    %3397 = vmatprep.subr.bf16.mxu0 %v2352
    %3398 = vmatpush1.bf16.msra.mxu0 %v2351
    %3399 = vmatprep.subr.bf16.mxu0 %v2354
    %3400 = vmatpush1.bf16.msra.mxu0 %v2353
    %3401 = vmatprep.subr.bf16.mxu0 %v2356
    %3402 = vmatpush1.bf16.msra.mxu0 %v2355
    %3403 = vmatprep.subr.bf16.mxu0 %v2358
    %3404 = vmatpush1.bf16.msra.mxu0 %v2357
    %3405 = vmatprep.subr.bf16.mxu0 %v2360
    %3406 = vmatpush1.bf16.msra.mxu0 %v2359
    %3407 = vmatprep.subr.bf16.mxu0 %v2362
    %3408 = vmatpush1.bf16.msra.mxu0 %v2361
    %3409 = vmatprep.subr.bf16.mxu0 %v2364
    %3410 = vmatpush1.bf16.msra.mxu0 %v2363
    %3411 = vmatprep.subr.bf16.mxu0 %v2366
    %3412 = vmatpush1.bf16.msra.mxu0 %v2365
    %3413 = vmatprep.subr.bf16.mxu0 %v2368
    %3414 = vmatpush1.bf16.msra.mxu0 %v2367
    %3415 = vmatprep.mubr.bf16.mxu0 %v186
    %3416 = vmatmul.mubr.bf16.gmra.mrb[0].mxu0 %v185
    %v3417 = vpop.f32.mrb[0].mxu0
    %v3418 = vadd.f32 %v3375, %v3417
    %v3419 = vpop.f32.mrb[0].mxu0
    %v3420 = vadd.f32 %v3377, %v3419
    %v3421 = vpop.f32.mrb[0].mxu0
    %v3422 = vadd.f32 %v3379, %v3421
    %v3423 = vpop.f32.mrb[0].mxu0
    %v3424 = vadd.f32 %v3381, %v3423
    %3425 = vdwg.mxu0
    %3426 = vmatprep.subr.bf16.mxu0 %v2370
    %3427 = vmatpush1.bf16.msra.mxu0 %v2369
    %3428 = vmatprep.subr.bf16.mxu0 %v2372
    %3429 = vmatpush1.bf16.msra.mxu0 %v2371
    %3430 = vmatprep.subr.bf16.mxu0 %v2374
    %3431 = vmatpush1.bf16.msra.mxu0 %v2373
    %3432 = vmatprep.subr.bf16.mxu0 %v2376
    %3433 = vmatpush1.bf16.msra.mxu0 %v2375
    %3434 = vmatprep.subr.bf16.mxu0 %v2378
    %3435 = vmatpush1.bf16.msra.mxu0 %v2377
    %3436 = vmatprep.subr.bf16.mxu0 %v2380
    %3437 = vmatpush1.bf16.msra.mxu0 %v2379
    %3438 = vmatprep.subr.bf16.mxu0 %v2382
    %3439 = vmatpush1.bf16.msra.mxu0 %v2381
    %3440 = vmatprep.subr.bf16.mxu0 %v2384
    %3441 = vmatpush1.bf16.msra.mxu0 %v2383
    %3442 = vmatprep.subr.bf16.mxu0 %v2386
    %3443 = vmatpush1.bf16.msra.mxu0 %v2385
    %3444 = vmatprep.subr.bf16.mxu0 %v2388
    %3445 = vmatpush1.bf16.msra.mxu0 %v2387
    %3446 = vmatprep.subr.bf16.mxu0 %v2390
    %3447 = vmatpush1.bf16.msra.mxu0 %v2389
    %3448 = vmatprep.subr.bf16.mxu0 %v2392
    %3449 = vmatpush1.bf16.msra.mxu0 %v2391
    %3450 = vmatprep.subr.bf16.mxu0 %v2394
    %3451 = vmatpush1.bf16.msra.mxu0 %v2393
    %3452 = vmatprep.subr.bf16.mxu0 %v2396
    %3453 = vmatpush1.bf16.msra.mxu0 %v2395
    %3454 = vmatprep.subr.bf16.mxu0 %v2398
    %3455 = vmatpush1.bf16.msra.mxu0 %v2397
    %3456 = vmatprep.subr.bf16.mxu0 %v2400
    %3457 = vmatpush1.bf16.msra.mxu0 %v2399
    %3458 = vmatprep.mubr.bf16.mxu0 %v188
    %3459 = vmatmul.mubr.bf16.gmra.mrb[0].mxu0 %v187
    %v3460 = vpop.f32.mrb[0].mxu0
    %v3461 = vadd.f32 %v3418, %v3460
    %v3462 = vpop.f32.mrb[0].mxu0
    %v3463 = vadd.f32 %v3420, %v3462
    %v3464 = vpop.f32.mrb[0].mxu0
    %v3465 = vadd.f32 %v3422, %v3464
    %v3466 = vpop.f32.mrb[0].mxu0
    %v3467 = vadd.f32 %v3424, %v3466
    %3468 = vdwg.mxu0
    %3469 = vmatprep.subr.bf16.mxu0 %v2402
    %3470 = vmatpush1.bf16.msra.mxu0 %v2401
    %3471 = vmatprep.subr.bf16.mxu0 %v2404
    %3472 = vmatpush1.bf16.msra.mxu0 %v2403
    %3473 = vmatprep.subr.bf16.mxu0 %v2406
    %3474 = vmatpush1.bf16.msra.mxu0 %v2405
    %3475 = vmatprep.subr.bf16.mxu0 %v2408
    %3476 = vmatpush1.bf16.msra.mxu0 %v2407
    %3477 = vmatprep.subr.bf16.mxu0 %v2410
    %3478 = vmatpush1.bf16.msra.mxu0 %v2409
    %3479 = vmatprep.subr.bf16.mxu0 %v2412
    %3480 = vmatpush1.bf16.msra.mxu0 %v2411
    %3481 = vmatprep.subr.bf16.mxu0 %v2414
    %3482 = vmatpush1.bf16.msra.mxu0 %v2413
    %3483 = vmatprep.subr.bf16.mxu0 %v2416
    %3484 = vmatpush1.bf16.msra.mxu0 %v2415
    %3485 = vmatprep.subr.bf16.mxu0 %v2418
    %3486 = vmatpush1.bf16.msra.mxu0 %v2417
    %3487 = vmatprep.subr.bf16.mxu0 %v2420
    %3488 = vmatpush1.bf16.msra.mxu0 %v2419
    %3489 = vmatprep.subr.bf16.mxu0 %v2422
    %3490 = vmatpush1.bf16.msra.mxu0 %v2421
    %3491 = vmatprep.subr.bf16.mxu0 %v2424
    %3492 = vmatpush1.bf16.msra.mxu0 %v2423
    %3493 = vmatprep.subr.bf16.mxu0 %v2426
    %3494 = vmatpush1.bf16.msra.mxu0 %v2425
    %3495 = vmatprep.subr.bf16.mxu0 %v2428
    %3496 = vmatpush1.bf16.msra.mxu0 %v2427
    %3497 = vmatprep.subr.bf16.mxu0 %v2430
    %3498 = vmatpush1.bf16.msra.mxu0 %v2429
    %3499 = vmatprep.subr.bf16.mxu0 %v2432
    %3500 = vmatpush1.bf16.msra.mxu0 %v2431
    %3501 = vmatprep.mubr.bf16.mxu0 %v190
    %3502 = vmatmul.mubr.bf16.gmra.mrb[0].mxu0 %v189
    %v3503 = vpop.f32.mrb[0].mxu0
    %v3504 = vadd.f32 %v3461, %v3503
    %v3505 = vpop.f32.mrb[0].mxu0
    %v3506 = vadd.f32 %v3463, %v3505
    %v3507 = vpop.f32.mrb[0].mxu0
    %v3508 = vadd.f32 %v3465, %v3507
    %v3509 = vpop.f32.mrb[0].mxu0
    %v3510 = vadd.f32 %v3467, %v3509
    %3511 = vdwg.mxu0
    %3512 = vmatprep.subr.bf16.mxu0 %v2434
    %3513 = vmatpush1.bf16.msra.mxu0 %v2433
    %3514 = vmatprep.subr.bf16.mxu0 %v2436
    %3515 = vmatpush1.bf16.msra.mxu0 %v2435
    %3516 = vmatprep.subr.bf16.mxu0 %v2438
    %3517 = vmatpush1.bf16.msra.mxu0 %v2437
    %3518 = vmatprep.subr.bf16.mxu0 %v2440
    %3519 = vmatpush1.bf16.msra.mxu0 %v2439
    %3520 = vmatprep.subr.bf16.mxu0 %v2442
    %3521 = vmatpush1.bf16.msra.mxu0 %v2441
    %3522 = vmatprep.subr.bf16.mxu0 %v2444
    %3523 = vmatpush1.bf16.msra.mxu0 %v2443
    %3524 = vmatprep.subr.bf16.mxu0 %v2446
    %3525 = vmatpush1.bf16.msra.mxu0 %v2445
    %3526 = vmatprep.subr.bf16.mxu0 %v2448
    %3527 = vmatpush1.bf16.msra.mxu0 %v2447
    %3528 = vmatprep.subr.bf16.mxu0 %v2450
    %3529 = vmatpush1.bf16.msra.mxu0 %v2449
    %3530 = vmatprep.subr.bf16.mxu0 %v2452
    %3531 = vmatpush1.bf16.msra.mxu0 %v2451
    %3532 = vmatprep.subr.bf16.mxu0 %v2454
    %3533 = vmatpush1.bf16.msra.mxu0 %v2453
    %3534 = vmatprep.subr.bf16.mxu0 %v2456
    %3535 = vmatpush1.bf16.msra.mxu0 %v2455
    %3536 = vmatprep.subr.bf16.mxu0 %v2458
    %3537 = vmatpush1.bf16.msra.mxu0 %v2457
    %3538 = vmatprep.subr.bf16.mxu0 %v2460
    %3539 = vmatpush1.bf16.msra.mxu0 %v2459
    %3540 = vmatprep.subr.bf16.mxu0 %v2462
    %3541 = vmatpush1.bf16.msra.mxu0 %v2461
    %3542 = vmatprep.subr.bf16.mxu0 %v2464
    %3543 = vmatpush1.bf16.msra.mxu0 %v2463
    %3544 = vmatprep.mubr.bf16.mxu0 %v192
    %3545 = vmatmul.mubr.bf16.gmra.mrb[0].mxu0 %v191
    %v3546 = vpop.f32.mrb[0].mxu0
    %v3547 = vadd.f32 %v3504, %v3546
    %v3548 = vpop.f32.mrb[0].mxu0
    %v3549 = vadd.f32 %v3506, %v3548
    %v3550 = vpop.f32.mrb[0].mxu0
    %v3551 = vadd.f32 %v3508, %v3550
    %v3552 = vpop.f32.mrb[0].mxu0
    %v3553 = vadd.f32 %v3510, %v3552
    %3554 = vdwg.mxu0
    %3555 = vmatprep.subr.bf16.mxu0 %v2466
    %3556 = vmatpush1.bf16.msra.mxu0 %v2465
    %3557 = vmatprep.subr.bf16.mxu0 %v2468
    %3558 = vmatpush1.bf16.msra.mxu0 %v2467
    %3559 = vmatprep.subr.bf16.mxu0 %v2470
    %3560 = vmatpush1.bf16.msra.mxu0 %v2469
    %3561 = vmatprep.subr.bf16.mxu0 %v2472
    %3562 = vmatpush1.bf16.msra.mxu0 %v2471
    %3563 = vmatprep.subr.bf16.mxu0 %v2474
    %3564 = vmatpush1.bf16.msra.mxu0 %v2473
    %3565 = vmatprep.subr.bf16.mxu0 %v2476
    %3566 = vmatpush1.bf16.msra.mxu0 %v2475
    %3567 = vmatprep.subr.bf16.mxu0 %v2478
    %3568 = vmatpush1.bf16.msra.mxu0 %v2477
    %3569 = vmatprep.subr.bf16.mxu0 %v2480
    %3570 = vmatpush1.bf16.msra.mxu0 %v2479
    %3571 = vmatprep.subr.bf16.mxu0 %v2482
    %3572 = vmatpush1.bf16.msra.mxu0 %v2481
    %3573 = vmatprep.subr.bf16.mxu0 %v2484
    %3574 = vmatpush1.bf16.msra.mxu0 %v2483
    %3575 = vmatprep.subr.bf16.mxu0 %v2486
    %3576 = vmatpush1.bf16.msra.mxu0 %v2485
    %3577 = vmatprep.subr.bf16.mxu0 %v2488
    %3578 = vmatpush1.bf16.msra.mxu0 %v2487
    %3579 = vmatprep.subr.bf16.mxu0 %v2490
    %3580 = vmatpush1.bf16.msra.mxu0 %v2489
    %3581 = vmatprep.subr.bf16.mxu0 %v2492
    %3582 = vmatpush1.bf16.msra.mxu0 %v2491
    %3583 = vmatprep.subr.bf16.mxu0 %v2494
    %3584 = vmatpush1.bf16.msra.mxu0 %v2493
    %3585 = vmatprep.subr.bf16.mxu0 %v2496
    %3586 = vmatpush1.bf16.msra.mxu0 %v2495
    %3587 = vmatprep.mubr.bf16.mxu0 %v194
    %3588 = vmatmul.mubr.bf16.gmra.mrb[0].mxu0 %v193
    %v3589 = vpop.f32.mrb[0].mxu0
    %v3590 = vadd.f32 %v3547, %v3589
    %v3591 = vpop.f32.mrb[0].mxu0
    %v3592 = vadd.f32 %v3549, %v3591
    %v3593 = vpop.f32.mrb[0].mxu0
    %v3594 = vadd.f32 %v3551, %v3593
    %v3595 = vpop.f32.mrb[0].mxu0
    %v3596 = vadd.f32 %v3553, %v3595
    %3597 = vdwg.mxu0
    %3598 = vmatprep.subr.bf16.mxu0 %v2498
    %3599 = vmatpush1.bf16.msra.mxu0 %v2497
    %3600 = vmatprep.subr.bf16.mxu0 %v2500
    %3601 = vmatpush1.bf16.msra.mxu0 %v2499
    %3602 = vmatprep.subr.bf16.mxu0 %v2502
    %3603 = vmatpush1.bf16.msra.mxu0 %v2501
    %3604 = vmatprep.subr.bf16.mxu0 %v2504
    %3605 = vmatpush1.bf16.msra.mxu0 %v2503
    %3606 = vmatprep.subr.bf16.mxu0 %v2506
    %3607 = vmatpush1.bf16.msra.mxu0 %v2505
    %3608 = vmatprep.subr.bf16.mxu0 %v2508
    %3609 = vmatpush1.bf16.msra.mxu0 %v2507
    %3610 = vmatprep.subr.bf16.mxu0 %v2510
    %3611 = vmatpush1.bf16.msra.mxu0 %v2509
    %3612 = vmatprep.subr.bf16.mxu0 %v2512
    %3613 = vmatpush1.bf16.msra.mxu0 %v2511
    %3614 = vmatprep.subr.bf16.mxu0 %v2514
    %3615 = vmatpush1.bf16.msra.mxu0 %v2513
    %3616 = vmatprep.subr.bf16.mxu0 %v2516
    %3617 = vmatpush1.bf16.msra.mxu0 %v2515
    %3618 = vmatprep.subr.bf16.mxu0 %v2518
    %3619 = vmatpush1.bf16.msra.mxu0 %v2517
    %3620 = vmatprep.subr.bf16.mxu0 %v2520
    %3621 = vmatpush1.bf16.msra.mxu0 %v2519
    %3622 = vmatprep.subr.bf16.mxu0 %v2522
    %3623 = vmatpush1.bf16.msra.mxu0 %v2521
    %3624 = vmatprep.subr.bf16.mxu0 %v2524
    %3625 = vmatpush1.bf16.msra.mxu0 %v2523
    %3626 = vmatprep.subr.bf16.mxu0 %v2526
    %3627 = vmatpush1.bf16.msra.mxu0 %v2525
    %3628 = vmatprep.subr.bf16.mxu0 %v2528
    %3629 = vmatpush1.bf16.msra.mxu0 %v2527
    %3630 = vmatprep.mubr.bf16.mxu0 %v196
    %3631 = vmatmul.mubr.bf16.gmra.mrb[0].mxu0 %v195
    %v3632 = vpop.f32.mrb[0].mxu0
    %v3633 = vadd.f32 %v3590, %v3632
    %v3634 = vpop.f32.mrb[0].mxu0
    %v3635 = vadd.f32 %v3592, %v3634
    %v3636 = vpop.f32.mrb[0].mxu0
    %v3637 = vadd.f32 %v3594, %v3636
    %v3638 = vpop.f32.mrb[0].mxu0
    %v3639 = vadd.f32 %v3596, %v3638
    %3640 = vdwg.mxu0
    %3641 = vmatprep.subr.bf16.mxu0 %v2530
    %3642 = vmatpush1.bf16.msra.mxu0 %v2529
    %3643 = vmatprep.subr.bf16.mxu0 %v2532
    %3644 = vmatpush1.bf16.msra.mxu0 %v2531
    %3645 = vmatprep.subr.bf16.mxu0 %v2534
    %3646 = vmatpush1.bf16.msra.mxu0 %v2533
    %3647 = vmatprep.subr.bf16.mxu0 %v2536
    %3648 = vmatpush1.bf16.msra.mxu0 %v2535
    %3649 = vmatprep.subr.bf16.mxu0 %v2538
    %3650 = vmatpush1.bf16.msra.mxu0 %v2537
    %3651 = vmatprep.subr.bf16.mxu0 %v2540
    %3652 = vmatpush1.bf16.msra.mxu0 %v2539
    %3653 = vmatprep.subr.bf16.mxu0 %v2542
    %3654 = vmatpush1.bf16.msra.mxu0 %v2541
    %3655 = vmatprep.subr.bf16.mxu0 %v2544
    %3656 = vmatpush1.bf16.msra.mxu0 %v2543
    %3657 = vmatprep.subr.bf16.mxu0 %v2546
    %3658 = vmatpush1.bf16.msra.mxu0 %v2545
    %3659 = vmatprep.subr.bf16.mxu0 %v2548
    %3660 = vmatpush1.bf16.msra.mxu0 %v2547
    %3661 = vmatprep.subr.bf16.mxu0 %v2550
    %3662 = vmatpush1.bf16.msra.mxu0 %v2549
    %3663 = vmatprep.subr.bf16.mxu0 %v2552
    %3664 = vmatpush1.bf16.msra.mxu0 %v2551
    %3665 = vmatprep.subr.bf16.mxu0 %v2554
    %3666 = vmatpush1.bf16.msra.mxu0 %v2553
    %3667 = vmatprep.subr.bf16.mxu0 %v2556
    %3668 = vmatpush1.bf16.msra.mxu0 %v2555
    %3669 = vmatprep.subr.bf16.mxu0 %v2558
    %3670 = vmatpush1.bf16.msra.mxu0 %v2557
    %3671 = vmatprep.subr.bf16.mxu0 %v2560
    %3672 = vmatpush1.bf16.msra.mxu0 %v2559
    %3673 = vmatprep.mubr.bf16.mxu0 %v198
    %3674 = vmatmul.mubr.bf16.gmra.mrb[0].mxu0 %v197
    %v3675 = vpop.f32.mrb[0].mxu0
    %v3676 = vadd.f32 %v3633, %v3675
    %v3677 = vpop.f32.mrb[0].mxu0
    %v3678 = vadd.f32 %v3635, %v3677
    %v3679 = vpop.f32.mrb[0].mxu0
    %v3680 = vadd.f32 %v3637, %v3679
    %v3681 = vpop.f32.mrb[0].mxu0
    %v3682 = vadd.f32 %v3639, %v3681
    %3683 = vdwg.mxu0
    %3684 = vmatprep.subr.bf16.mxu0 %v2562
    %3685 = vmatpush1.bf16.msra.mxu0 %v2561
    %3686 = vmatprep.subr.bf16.mxu0 %v2564
    %3687 = vmatpush1.bf16.msra.mxu0 %v2563
    %3688 = vmatprep.subr.bf16.mxu0 %v2566
    %3689 = vmatpush1.bf16.msra.mxu0 %v2565
    %3690 = vmatprep.subr.bf16.mxu0 %v2568
    %3691 = vmatpush1.bf16.msra.mxu0 %v2567
    %3692 = vmatprep.subr.bf16.mxu0 %v2570
    %3693 = vmatpush1.bf16.msra.mxu0 %v2569
    %3694 = vmatprep.subr.bf16.mxu0 %v2572
    %3695 = vmatpush1.bf16.msra.mxu0 %v2571
    %3696 = vmatprep.subr.bf16.mxu0 %v2574
    %3697 = vmatpush1.bf16.msra.mxu0 %v2573
    %3698 = vmatprep.subr.bf16.mxu0 %v2576
    %3699 = vmatpush1.bf16.msra.mxu0 %v2575
    %3700 = vmatprep.subr.bf16.mxu0 %v2578
    %3701 = vmatpush1.bf16.msra.mxu0 %v2577
    %3702 = vmatprep.subr.bf16.mxu0 %v2580
    %3703 = vmatpush1.bf16.msra.mxu0 %v2579
    %3704 = vmatprep.subr.bf16.mxu0 %v2582
    %3705 = vmatpush1.bf16.msra.mxu0 %v2581
    %3706 = vmatprep.subr.bf16.mxu0 %v2584
    %3707 = vmatpush1.bf16.msra.mxu0 %v2583
    %3708 = vmatprep.subr.bf16.mxu0 %v2586
    %3709 = vmatpush1.bf16.msra.mxu0 %v2585
    %3710 = vmatprep.subr.bf16.mxu0 %v2588
    %3711 = vmatpush1.bf16.msra.mxu0 %v2587
    %3712 = vmatprep.subr.bf16.mxu0 %v2590
    %3713 = vmatpush1.bf16.msra.mxu0 %v2589
    %3714 = vmatprep.subr.bf16.mxu0 %v2592
    %3715 = vmatpush1.bf16.msra.mxu0 %v2591
    %3716 = vmatprep.mubr.bf16.mxu0 %v200
    %3717 = vmatmul.mubr.bf16.gmra.mrb[0].mxu0 %v199
    %v3718 = vpop.f32.mrb[0].mxu0
    %v3719 = vadd.f32 %v3676, %v3718
    %v3720 = vpop.f32.mrb[0].mxu0
    %v3721 = vadd.f32 %v3678, %v3720
    %v3722 = vpop.f32.mrb[0].mxu0
    %v3723 = vadd.f32 %v3680, %v3722
    %v3724 = vpop.f32.mrb[0].mxu0
    %v3725 = vadd.f32 %v3682, %v3724
    %3726 = vdwg.mxu0
    %3727 = vmatprep.subr.bf16.mxu0 %v2594
    %3728 = vmatpush1.bf16.msra.mxu0 %v2593
    %3729 = vmatprep.subr.bf16.mxu0 %v2596
    %3730 = vmatpush1.bf16.msra.mxu0 %v2595
    %3731 = vmatprep.subr.bf16.mxu0 %v2598
    %3732 = vmatpush1.bf16.msra.mxu0 %v2597
    %3733 = vmatprep.subr.bf16.mxu0 %v2600
    %3734 = vmatpush1.bf16.msra.mxu0 %v2599
    %3735 = vmatprep.subr.bf16.mxu0 %v2602
    %3736 = vmatpush1.bf16.msra.mxu0 %v2601
    %3737 = vmatprep.subr.bf16.mxu0 %v2604
    %3738 = vmatpush1.bf16.msra.mxu0 %v2603
    %3739 = vmatprep.subr.bf16.mxu0 %v2606
    %3740 = vmatpush1.bf16.msra.mxu0 %v2605
    %3741 = vmatprep.subr.bf16.mxu0 %v2608
    %3742 = vmatpush1.bf16.msra.mxu0 %v2607
    %3743 = vmatprep.subr.bf16.mxu0 %v2610
    %3744 = vmatpush1.bf16.msra.mxu0 %v2609
    %3745 = vmatprep.subr.bf16.mxu0 %v2612
    %3746 = vmatpush1.bf16.msra.mxu0 %v2611
    %3747 = vmatprep.subr.bf16.mxu0 %v2614
    %3748 = vmatpush1.bf16.msra.mxu0 %v2613
    %3749 = vmatprep.subr.bf16.mxu0 %v2616
    %3750 = vmatpush1.bf16.msra.mxu0 %v2615
    %3751 = vmatprep.subr.bf16.mxu0 %v2618
    %3752 = vmatpush1.bf16.msra.mxu0 %v2617
    %3753 = vmatprep.subr.bf16.mxu0 %v2620
    %3754 = vmatpush1.bf16.msra.mxu0 %v2619
    %3755 = vmatprep.subr.bf16.mxu0 %v2622
    %3756 = vmatpush1.bf16.msra.mxu0 %v2621
    %3757 = vmatprep.subr.bf16.mxu0 %v2624
    %3758 = vmatpush1.bf16.msra.mxu0 %v2623
    %3759 = vmatprep.mubr.bf16.mxu0 %v202
    %3760 = vmatmul.mubr.bf16.gmra.mrb[0].mxu0 %v201
    %v3761 = vpop.f32.mrb[0].mxu0
    %v3762 = vadd.f32 %v3719, %v3761
    %v3763 = vpop.f32.mrb[0].mxu0
    %v3764 = vadd.f32 %v3721, %v3763
    %v3765 = vpop.f32.mrb[0].mxu0
    %v3766 = vadd.f32 %v3723, %v3765
    %v3767 = vpop.f32.mrb[0].mxu0
    %v3768 = vadd.f32 %v3725, %v3767
    %3769 = vdwg.mxu0
    %3770 = vmatprep.subr.bf16.mxu0 %v2626
    %3771 = vmatpush1.bf16.msra.mxu0 %v2625
    %3772 = vmatprep.subr.bf16.mxu0 %v2628
    %3773 = vmatpush1.bf16.msra.mxu0 %v2627
    %3774 = vmatprep.subr.bf16.mxu0 %v2630
    %3775 = vmatpush1.bf16.msra.mxu0 %v2629
    %3776 = vmatprep.subr.bf16.mxu0 %v2632
    %3777 = vmatpush1.bf16.msra.mxu0 %v2631
    %3778 = vmatprep.subr.bf16.mxu0 %v2634
    %3779 = vmatpush1.bf16.msra.mxu0 %v2633
    %3780 = vmatprep.subr.bf16.mxu0 %v2636
    %3781 = vmatpush1.bf16.msra.mxu0 %v2635
    %3782 = vmatprep.subr.bf16.mxu0 %v2638
    %3783 = vmatpush1.bf16.msra.mxu0 %v2637
    %3784 = vmatprep.subr.bf16.mxu0 %v2640
    %3785 = vmatpush1.bf16.msra.mxu0 %v2639
    %3786 = vmatprep.subr.bf16.mxu0 %v2642
    %3787 = vmatpush1.bf16.msra.mxu0 %v2641
    %3788 = vmatprep.subr.bf16.mxu0 %v2644
    %3789 = vmatpush1.bf16.msra.mxu0 %v2643
    %3790 = vmatprep.subr.bf16.mxu0 %v2646
    %3791 = vmatpush1.bf16.msra.mxu0 %v2645
    %3792 = vmatprep.subr.bf16.mxu0 %v2648
    %3793 = vmatpush1.bf16.msra.mxu0 %v2647
    %3794 = vmatprep.subr.bf16.mxu0 %v2650
    %3795 = vmatpush1.bf16.msra.mxu0 %v2649
    %3796 = vmatprep.subr.bf16.mxu0 %v2652
    %3797 = vmatpush1.bf16.msra.mxu0 %v2651
    %3798 = vmatprep.subr.bf16.mxu0 %v2654
    %3799 = vmatpush1.bf16.msra.mxu0 %v2653
    %3800 = vmatprep.subr.bf16.mxu0 %v2656
    %3801 = vmatpush1.bf16.msra.mxu0 %v2655
    %3802 = vmatprep.mubr.bf16.mxu0 %v204
    %3803 = vmatmul.mubr.bf16.gmra.mrb[0].mxu0 %v203
    %v3804 = vpop.f32.mrb[0].mxu0
    %v3805 = vadd.f32 %v3762, %v3804
    %v3806 = vpop.f32.mrb[0].mxu0
    %v3807 = vadd.f32 %v3764, %v3806
    %v3808 = vpop.f32.mrb[0].mxu0
    %v3809 = vadd.f32 %v3766, %v3808
    %v3810 = vpop.f32.mrb[0].mxu0
    %v3811 = vadd.f32 %v3768, %v3810
    %3812 = vdwg.mxu0
    %3813 = vmatprep.subr.bf16.mxu0 %v2658
    %3814 = vmatpush1.bf16.msra.mxu0 %v2657
    %3815 = vmatprep.subr.bf16.mxu0 %v2660
    %3816 = vmatpush1.bf16.msra.mxu0 %v2659
    %3817 = vmatprep.subr.bf16.mxu0 %v2662
    %3818 = vmatpush1.bf16.msra.mxu0 %v2661
    %3819 = vmatprep.subr.bf16.mxu0 %v2664
    %3820 = vmatpush1.bf16.msra.mxu0 %v2663
    %3821 = vmatprep.subr.bf16.mxu0 %v2666
    %3822 = vmatpush1.bf16.msra.mxu0 %v2665
    %3823 = vmatprep.subr.bf16.mxu0 %v2668
    %3824 = vmatpush1.bf16.msra.mxu0 %v2667
    %3825 = vmatprep.subr.bf16.mxu0 %v2670
    %3826 = vmatpush1.bf16.msra.mxu0 %v2669
    %3827 = vmatprep.subr.bf16.mxu0 %v2672
    %3828 = vmatpush1.bf16.msra.mxu0 %v2671
    %3829 = vmatprep.subr.bf16.mxu0 %v2674
    %3830 = vmatpush1.bf16.msra.mxu0 %v2673
    %3831 = vmatprep.subr.bf16.mxu0 %v2676
    %3832 = vmatpush1.bf16.msra.mxu0 %v2675
    %3833 = vmatprep.subr.bf16.mxu0 %v2678
    %3834 = vmatpush1.bf16.msra.mxu0 %v2677
    %3835 = vmatprep.subr.bf16.mxu0 %v2680
    %3836 = vmatpush1.bf16.msra.mxu0 %v2679
    %3837 = vmatprep.subr.bf16.mxu0 %v2682
    %3838 = vmatpush1.bf16.msra.mxu0 %v2681
    %3839 = vmatprep.subr.bf16.mxu0 %v2684
    %3840 = vmatpush1.bf16.msra.mxu0 %v2683
    %3841 = vmatprep.subr.bf16.mxu0 %v2686
    %3842 = vmatpush1.bf16.msra.mxu0 %v2685
    %3843 = vmatprep.subr.bf16.mxu0 %v2688
    %3844 = vmatpush1.bf16.msra.mxu0 %v2687
    %3845 = vmatprep.mubr.bf16.mxu0 %v206
    %3846 = vmatmul.mubr.bf16.gmra.mrb[0].mxu0 %v205
    %v3847 = vpop.f32.mrb[0].mxu0
    %v3848 = vadd.f32 %v3805, %v3847
    %v3849 = vpop.f32.mrb[0].mxu0
    %v3850 = vadd.f32 %v3807, %v3849
    %v3851 = vpop.f32.mrb[0].mxu0
    %v3852 = vadd.f32 %v3809, %v3851
    %v3853 = vpop.f32.mrb[0].mxu0
    %v3854 = vadd.f32 %v3811, %v3853
    %3855 = vdwg.mxu0
    %3856 = vmatprep.subr.bf16.mxu0 %v2690
    %3857 = vmatpush1.bf16.msra.mxu0 %v2689
    %3858 = vmatprep.subr.bf16.mxu0 %v2692
    %3859 = vmatpush1.bf16.msra.mxu0 %v2691
    %3860 = vmatprep.subr.bf16.mxu0 %v2694
    %3861 = vmatpush1.bf16.msra.mxu0 %v2693
    %3862 = vmatprep.subr.bf16.mxu0 %v2696
    %3863 = vmatpush1.bf16.msra.mxu0 %v2695
    %3864 = vmatprep.subr.bf16.mxu0 %v2698
    %3865 = vmatpush1.bf16.msra.mxu0 %v2697
    %3866 = vmatprep.subr.bf16.mxu0 %v2700
    %3867 = vmatpush1.bf16.msra.mxu0 %v2699
    %3868 = vmatprep.subr.bf16.mxu0 %v2702
    %3869 = vmatpush1.bf16.msra.mxu0 %v2701
    %3870 = vmatprep.subr.bf16.mxu0 %v2704
    %3871 = vmatpush1.bf16.msra.mxu0 %v2703
    %3872 = vmatprep.subr.bf16.mxu0 %v2706
    %3873 = vmatpush1.bf16.msra.mxu0 %v2705
    %3874 = vmatprep.subr.bf16.mxu0 %v2708
    %3875 = vmatpush1.bf16.msra.mxu0 %v2707
    %3876 = vmatprep.subr.bf16.mxu0 %v2710
    %3877 = vmatpush1.bf16.msra.mxu0 %v2709
    %3878 = vmatprep.subr.bf16.mxu0 %v2712
    %3879 = vmatpush1.bf16.msra.mxu0 %v2711
    %3880 = vmatprep.subr.bf16.mxu0 %v2714
    %3881 = vmatpush1.bf16.msra.mxu0 %v2713
    %3882 = vmatprep.subr.bf16.mxu0 %v2716
    %3883 = vmatpush1.bf16.msra.mxu0 %v2715
    %3884 = vmatprep.subr.bf16.mxu0 %v2718
    %3885 = vmatpush1.bf16.msra.mxu0 %v2717
    %3886 = vmatprep.subr.bf16.mxu0 %v2720
    %3887 = vmatpush1.bf16.msra.mxu0 %v2719
    %3888 = vmatprep.mubr.bf16.mxu0 %v208
    %3889 = vmatmul.mubr.bf16.gmra.mrb[0].mxu0 %v207
    %v3890 = vpop.f32.mrb[0].mxu0
    %v3891 = vadd.f32 %v3848, %v3890
    %v3892 = vpop.f32.mrb[0].mxu0
    %v3893 = vadd.f32 %v3850, %v3892
    %v3894 = vpop.f32.mrb[0].mxu0
    %v3895 = vadd.f32 %v3852, %v3894
    %v3896 = vpop.f32.mrb[0].mxu0
    %v3897 = vadd.f32 %v3854, %v3896
    %3898 = vdwg.mxu0
    %3899 = vmatprep.subr.bf16.mxu0 %v2722
    %3900 = vmatpush1.bf16.msra.mxu0 %v2721
    %3901 = vmatprep.subr.bf16.mxu0 %v2724
    %3902 = vmatpush1.bf16.msra.mxu0 %v2723
    %3903 = vmatprep.subr.bf16.mxu0 %v2726
    %3904 = vmatpush1.bf16.msra.mxu0 %v2725
    %3905 = vmatprep.subr.bf16.mxu0 %v2728
    %3906 = vmatpush1.bf16.msra.mxu0 %v2727
    %3907 = vmatprep.subr.bf16.mxu0 %v2730
    %3908 = vmatpush1.bf16.msra.mxu0 %v2729
    %3909 = vmatprep.subr.bf16.mxu0 %v2732
    %3910 = vmatpush1.bf16.msra.mxu0 %v2731
    %3911 = vmatprep.subr.bf16.mxu0 %v2734
    %3912 = vmatpush1.bf16.msra.mxu0 %v2733
    %3913 = vmatprep.subr.bf16.mxu0 %v2736
    %3914 = vmatpush1.bf16.msra.mxu0 %v2735
    %3915 = vmatprep.subr.bf16.mxu0 %v2738
    %3916 = vmatpush1.bf16.msra.mxu0 %v2737
    %3917 = vmatprep.subr.bf16.mxu0 %v2740
    %3918 = vmatpush1.bf16.msra.mxu0 %v2739
    %3919 = vmatprep.subr.bf16.mxu0 %v2742
    %3920 = vmatpush1.bf16.msra.mxu0 %v2741
    %3921 = vmatprep.subr.bf16.mxu0 %v2744
    %3922 = vmatpush1.bf16.msra.mxu0 %v2743
    %3923 = vmatprep.subr.bf16.mxu0 %v2746
    %3924 = vmatpush1.bf16.msra.mxu0 %v2745
    %3925 = vmatprep.subr.bf16.mxu0 %v2748
    %3926 = vmatpush1.bf16.msra.mxu0 %v2747
    %3927 = vmatprep.subr.bf16.mxu0 %v2750
    %3928 = vmatpush1.bf16.msra.mxu0 %v2749
    %3929 = vmatprep.subr.bf16.mxu0 %v2752
    %3930 = vmatpush1.bf16.msra.mxu0 %v2751
    %3931 = vmatprep.mubr.bf16.mxu0 %v210
    %3932 = vmatmul.mubr.bf16.gmra.mrb[0].mxu0 %v209
    %v3933 = vpop.f32.mrb[0].mxu0
    %v3934 = vadd.f32 %v3891, %v3933
    %v3935 = vpop.f32.mrb[0].mxu0
    %v3936 = vadd.f32 %v3893, %v3935
    %v3937 = vpop.f32.mrb[0].mxu0
    %v3938 = vadd.f32 %v3895, %v3937
    %v3939 = vpop.f32.mrb[0].mxu0
    %v3940 = vadd.f32 %v3897, %v3939
    %3941 = vdwg.mxu0
    %3942 = vmatprep.subr.bf16.mxu0 %v2754
    %3943 = vmatpush1.bf16.msra.mxu0 %v2753
    %3944 = vmatprep.subr.bf16.mxu0 %v2756
    %3945 = vmatpush1.bf16.msra.mxu0 %v2755
    %3946 = vmatprep.subr.bf16.mxu0 %v2758
    %3947 = vmatpush1.bf16.msra.mxu0 %v2757
    %3948 = vmatprep.subr.bf16.mxu0 %v2760
    %3949 = vmatpush1.bf16.msra.mxu0 %v2759
    %3950 = vmatprep.subr.bf16.mxu0 %v2762
    %3951 = vmatpush1.bf16.msra.mxu0 %v2761
    %3952 = vmatprep.subr.bf16.mxu0 %v2764
    %3953 = vmatpush1.bf16.msra.mxu0 %v2763
    %3954 = vmatprep.subr.bf16.mxu0 %v2766
    %3955 = vmatpush1.bf16.msra.mxu0 %v2765
    %3956 = vmatprep.subr.bf16.mxu0 %v2768
    %3957 = vmatpush1.bf16.msra.mxu0 %v2767
    %3958 = vmatprep.subr.bf16.mxu0 %v2770
    %3959 = vmatpush1.bf16.msra.mxu0 %v2769
    %3960 = vmatprep.subr.bf16.mxu0 %v2772
    %3961 = vmatpush1.bf16.msra.mxu0 %v2771
    %3962 = vmatprep.subr.bf16.mxu0 %v2774
    %3963 = vmatpush1.bf16.msra.mxu0 %v2773
    %3964 = vmatprep.subr.bf16.mxu0 %v2776
    %3965 = vmatpush1.bf16.msra.mxu0 %v2775
    %3966 = vmatprep.subr.bf16.mxu0 %v2778
    %3967 = vmatpush1.bf16.msra.mxu0 %v2777
    %3968 = vmatprep.subr.bf16.mxu0 %v2780
    %3969 = vmatpush1.bf16.msra.mxu0 %v2779
    %3970 = vmatprep.subr.bf16.mxu0 %v2782
    %3971 = vmatpush1.bf16.msra.mxu0 %v2781
    %3972 = vmatprep.subr.bf16.mxu0 %v2784
    %3973 = vmatpush1.bf16.msra.mxu0 %v2783
    %3974 = vmatprep.mubr.bf16.mxu0 %v212
    %3975 = vmatmul.mubr.bf16.gmra.mrb[0].mxu0 %v211
    %v3976 = vpop.f32.mrb[0].mxu0
    %v3977 = vadd.f32 %v3934, %v3976
    %v3978 = vpop.f32.mrb[0].mxu0
    %v3979 = vadd.f32 %v3936, %v3978
    %v3980 = vpop.f32.mrb[0].mxu0
    %v3981 = vadd.f32 %v3938, %v3980
    %v3982 = vpop.f32.mrb[0].mxu0
    %v3983 = vadd.f32 %v3940, %v3982
    %3984 = vdwg.mxu0
    %v3985 = vmax.f32 %v3977, 0.0
    %v3986 = vmax.f32 %v3979, 0.0
    %v3987 = vmax.f32 %v3981, 0.0
    %v3988 = vmax.f32 %v3983, 0.0
    %v3989 = vpack.c.bf16 %v3987, %v3985
    %v3990 = vpack.c.bf16 %v3988, %v3986
    %v3991 = vld [vmem:[#allocation8] sm:$0xf]
    %v3992 = vld [vmem:[#allocation8 + $0x4] sm:$0xf]
    %v3993 = vld [vmem:[#allocation8 + $0x8] sm:$0xf]
    %v3994 = vld [vmem:[#allocation8 + $0xc] sm:$0xf]
    %v3995 = vld [vmem:[#allocation8 + $0x10] sm:$0xf]
    %v3996 = vld [vmem:[#allocation8 + $0x14] sm:$0xf]
    %v3997 = vld [vmem:[#allocation8 + $0x18] sm:$0xf]
    %v3998 = vld [vmem:[#allocation8 + $0x1c] sm:$0xf]
    %v3999 = vld [vmem:[#allocation8 + $0x20] sm:$0xf]
    %v4000 = vld [vmem:[#allocation8 + $0x24] sm:$0xf]
    %v4001 = vld [vmem:[#allocation8 + $0x28] sm:$0xf]
    %v4002 = vld [vmem:[#allocation8 + $0x2c] sm:$0xf]
    %v4003 = vld [vmem:[#allocation8 + $0x30] sm:$0xf]
    %v4004 = vld [vmem:[#allocation8 + $0x34] sm:$0xf]
    %v4005 = vld [vmem:[#allocation8 + $0x38] sm:$0xf]
    %v4006 = vld [vmem:[#allocation8 + $0x3c] sm:$0xf]
    %v4007 = vld [vmem:[#allocation8 + $0x40] sm:$0xf]
    %v4008 = vld [vmem:[#allocation8 + $0x44] sm:$0xf]
    %v4009 = vld [vmem:[#allocation8 + $0x48] sm:$0xf]
    %v4010 = vld [vmem:[#allocation8 + $0x4c] sm:$0xf]
    %v4011 = vld [vmem:[#allocation8 + $0x50] sm:$0xf]
    %v4012 = vld [vmem:[#allocation8 + $0x54] sm:$0xf]
    %v4013 = vld [vmem:[#allocation8 + $0x58] sm:$0xf]
    %v4014 = vld [vmem:[#allocation8 + $0x5c] sm:$0xf]
    %v4015 = vld [vmem:[#allocation8 + $0x60] sm:$0xf]
    %v4016 = vld [vmem:[#allocation8 + $0x64] sm:$0xf]
    %v4017 = vld [vmem:[#allocation8 + $0x68] sm:$0xf]
    %v4018 = vld [vmem:[#allocation8 + $0x6c] sm:$0xf]
    %v4019 = vld [vmem:[#allocation8 + $0x70] sm:$0xf]
    %v4020 = vld [vmem:[#allocation8 + $0x74] sm:$0xf]
    %v4021 = vld [vmem:[#allocation8 + $0x78] sm:$0xf]
    %v4022 = vld [vmem:[#allocation8 + $0x7c] sm:$0xf]
    %v4023 = vld [vmem:[#allocation10] sm:$0x1]
    %v4025 = vlaneseq
    %v4026 = vshrl.u32 %v4025, 7
    %v4027 = vsub.s32 0, %v4026
    %v4028 = vrot.slane %v4023, %v4027
    %v4062 = vunpack.c.l.b16 %v3991
    %v4063 = vunpack.c.l.b16 %v3992
    %v4064 = vunpack.c.l.b16 %v3993
    %v4065 = vunpack.c.l.b16 %v3994
    %v4066 = vunpack.c.l.b16 %v3995
    %v4067 = vunpack.c.l.b16 %v3996
    %v4068 = vunpack.c.l.b16 %v3997
    %v4069 = vunpack.c.l.b16 %v3998
    %v4070 = vunpack.c.l.b16 %v3999
    %v4071 = vunpack.c.l.b16 %v4000
    %v4072 = vunpack.c.l.b16 %v4001
    %v4073 = vunpack.c.l.b16 %v4002
    %v4074 = vunpack.c.l.b16 %v4003
    %v4075 = vunpack.c.l.b16 %v4004
    %v4076 = vunpack.c.l.b16 %v4005
    %v4077 = vunpack.c.l.b16 %v4006
    %v4078 = vunpack.c.l.b16 %v4007
    %v4079 = vunpack.c.l.b16 %v4008
    %v4080 = vunpack.c.l.b16 %v4009
    %v4081 = vunpack.c.l.b16 %v4010
    %v4082 = vunpack.c.l.b16 %v4011
    %v4083 = vunpack.c.l.b16 %v4012
    %v4084 = vunpack.c.l.b16 %v4013
    %v4085 = vunpack.c.l.b16 %v4014
    %v4086 = vunpack.c.l.b16 %v4015
    %v4087 = vunpack.c.l.b16 %v4016
    %v4088 = vunpack.c.l.b16 %v4017
    %v4089 = vunpack.c.l.b16 %v4018
    %v4090 = vunpack.c.l.b16 %v4019
    %v4091 = vunpack.c.l.b16 %v4020
    %v4092 = vunpack.c.l.b16 %v4021
    %v4093 = vunpack.c.l.b16 %v4022
    %v4094 = vpack.c.b16 %v4063, %v4062
    %v4095 = vpack.c.b16 %v4065, %v4064
    %v4096 = vpack.c.b16 %v4067, %v4066
    %v4097 = vpack.c.b16 %v4069, %v4068
    %v4098 = vpack.c.b16 %v4071, %v4070
    %v4099 = vpack.c.b16 %v4073, %v4072
    %v4100 = vpack.c.b16 %v4075, %v4074
    %v4101 = vpack.c.b16 %v4077, %v4076
    %v4102 = vpack.c.b16 %v4079, %v4078
    %v4103 = vpack.c.b16 %v4081, %v4080
    %v4104 = vpack.c.b16 %v4083, %v4082
    %v4105 = vpack.c.b16 %v4085, %v4084
    %v4106 = vpack.c.b16 %v4087, %v4086
    %v4107 = vpack.c.b16 %v4089, %v4088
    %v4108 = vpack.c.b16 %v4091, %v4090
    %v4109 = vpack.c.b16 %v4093, %v4092
    %4126 = vmatprep.subr.bf16.mxu0 0
    %4127 = vmatpush1.bf16.msra.mxu0 %v4094
    %4128 = vmatprep.subr.bf16.mxu0 0
    %4129 = vmatpush1.bf16.msra.mxu0 %v4095
    %4130 = vmatprep.subr.bf16.mxu0 0
    %4131 = vmatpush1.bf16.msra.mxu0 %v4096
    %4132 = vmatprep.subr.bf16.mxu0 0
    %4133 = vmatpush1.bf16.msra.mxu0 %v4097
    %4134 = vmatprep.subr.bf16.mxu0 0
    %4135 = vmatpush1.bf16.msra.mxu0 %v4098
    %4136 = vmatprep.subr.bf16.mxu0 0
    %4137 = vmatpush1.bf16.msra.mxu0 %v4099
    %4138 = vmatprep.subr.bf16.mxu0 0
    %4139 = vmatpush1.bf16.msra.mxu0 %v4100
    %4140 = vmatprep.subr.bf16.mxu0 0
    %4141 = vmatpush1.bf16.msra.mxu0 %v4101
    %4142 = vmatprep.subr.bf16.mxu0 0
    %4143 = vmatpush1.bf16.msra.mxu0 %v4102
    %4144 = vmatprep.subr.bf16.mxu0 0
    %4145 = vmatpush1.bf16.msra.mxu0 %v4103
    %4146 = vmatprep.subr.bf16.mxu0 0
    %4147 = vmatpush1.bf16.msra.mxu0 %v4104
    %4148 = vmatprep.subr.bf16.mxu0 0
    %4149 = vmatpush1.bf16.msra.mxu0 %v4105
    %4150 = vmatprep.subr.bf16.mxu0 0
    %4151 = vmatpush1.bf16.msra.mxu0 %v4106
    %4152 = vmatprep.subr.bf16.mxu0 0
    %4153 = vmatpush1.bf16.msra.mxu0 %v4107
    %4154 = vmatprep.subr.bf16.mxu0 0
    %4155 = vmatpush1.bf16.msra.mxu0 %v4108
    %4156 = vmatprep.subr.bf16.mxu0 0
    %4157 = vmatpush1.bf16.msra.mxu0 %v4109
    %4158 = vmatprep.mubr.bf16.mxu0 %v3990
    %4159 = vmatmul.mubr.bf16.gmra.mrb[0].mxu0 %v3989
    %v4160 = vpop.f32.mrb[0].mxu0
    %v4161 = vadd.f32 %v4028, %v4160
    %v4162 = vpop.f32.mrb[0].mxu0
    %v4163 = vpop.f32.mrb[0].mxu0
    %v4164 = vadd.f32 %v4028, %v4163
    %v4165 = vpop.f32.mrb[0].mxu0
    %4166 = vdwg.mxu0
    %v4167 = vmax.f32 %v4161, 0.0
    %v4168 = vmax.f32 %v4164, 0.0
    %v4169 = vpack.c.bf16 %v4168, %v4167
    %v4170 = vld [vmem:[#allocation11] sm:$0xf]
    %v4171 = vld [vmem:[#allocation11 + $0x4] sm:$0xf]
    %v4172 = vld [vmem:[#allocation11 + $0x8] sm:$0xf]
    %v4173 = vld [vmem:[#allocation11 + $0xc] sm:$0xf]
    %v4174 = vld [vmem:[#allocation11 + $0x10] sm:$0xf]
    %v4175 = vld [vmem:[#allocation11 + $0x14] sm:$0xf]
    %v4176 = vld [vmem:[#allocation11 + $0x18] sm:$0xf]
    %v4177 = vld [vmem:[#allocation11 + $0x1c] sm:$0xf]
    %v4178 = vld [vmem:[#allocation11 + $0x20] sm:$0xf]
    %v4179 = vld [vmem:[#allocation11 + $0x24] sm:$0xf]
    %v4180 = vld [vmem:[#allocation11 + $0x28] sm:$0xf]
    %v4181 = vld [vmem:[#allocation11 + $0x2c] sm:$0xf]
    %v4182 = vld [vmem:[#allocation11 + $0x30] sm:$0xf]
    %v4183 = vld [vmem:[#allocation11 + $0x34] sm:$0xf]
    %v4184 = vld [vmem:[#allocation11 + $0x38] sm:$0xf]
    %v4185 = vld [vmem:[#allocation11 + $0x3c] sm:$0xf]
    %v4186 = vld [vmem:[#allocation13] sm:$0x1]
    %v4188 = vlaneseq
    %v4189 = vshrl.u32 %v4188, 7
    %v4190 = vsub.s32 0, %v4189
    %v4191 = vrot.slane %v4186, %v4190
    %v4209 = vunpack.c.l.b16 %v4170
    %v4210 = vunpack.c.l.b16 %v4171
    %v4211 = vunpack.c.l.b16 %v4172
    %v4212 = vunpack.c.l.b16 %v4173
    %v4213 = vunpack.c.l.b16 %v4174
    %v4214 = vunpack.c.l.b16 %v4175
    %v4215 = vunpack.c.l.b16 %v4176
    %v4216 = vunpack.c.l.b16 %v4177
    %v4217 = vunpack.c.l.b16 %v4178
    %v4218 = vunpack.c.l.b16 %v4179
    %v4219 = vunpack.c.l.b16 %v4180
    %v4220 = vunpack.c.l.b16 %v4181
    %v4221 = vunpack.c.l.b16 %v4182
    %v4222 = vunpack.c.l.b16 %v4183
    %v4223 = vunpack.c.l.b16 %v4184
    %v4224 = vunpack.c.l.b16 %v4185
    %v4225 = vpack.c.b16 %v4210, %v4209
    %v4226 = vpack.c.b16 %v4212, %v4211
    %v4227 = vpack.c.b16 %v4214, %v4213
    %v4228 = vpack.c.b16 %v4216, %v4215
    %v4229 = vpack.c.b16 %v4218, %v4217
    %v4230 = vpack.c.b16 %v4220, %v4219
    %v4231 = vpack.c.b16 %v4222, %v4221
    %v4232 = vpack.c.b16 %v4224, %v4223
    %4241 = vmatprep.subr.bf16.mxu0 0
    %4242 = vmatpush1.bf16.msra.mxu0 %v4225
    %4243 = vmatprep.subr.bf16.mxu0 0
    %4244 = vmatpush1.bf16.msra.mxu0 %v4226
    %4245 = vmatprep.subr.bf16.mxu0 0
    %4246 = vmatpush1.bf16.msra.mxu0 %v4227
    %4247 = vmatprep.subr.bf16.mxu0 0
    %4248 = vmatpush1.bf16.msra.mxu0 %v4228
    %4249 = vmatprep.subr.bf16.mxu0 0
    %4250 = vmatpush1.bf16.msra.mxu0 %v4229
    %4251 = vmatprep.subr.bf16.mxu0 0
    %4252 = vmatpush1.bf16.msra.mxu0 %v4230
    %4253 = vmatprep.subr.bf16.mxu0 0
    %4254 = vmatpush1.bf16.msra.mxu0 %v4231
    %4255 = vmatprep.subr.bf16.mxu0 0
    %4256 = vmatpush1.bf16.msra.mxu0 %v4232
    %4257 = vmatprep.subr.bf16.mxu0 0
    %4258 = vmatpush1.bf16.msra.mxu0 0
    %4259 = vmatprep.subr.bf16.mxu0 0
    %4260 = vmatpush1.bf16.msra.mxu0 0
    %4261 = vmatprep.subr.bf16.mxu0 0
    %4262 = vmatpush1.bf16.msra.mxu0 0
    %4263 = vmatprep.subr.bf16.mxu0 0
    %4264 = vmatpush1.bf16.msra.mxu0 0
    %4265 = vmatprep.subr.bf16.mxu0 0
    %4266 = vmatpush1.bf16.msra.mxu0 0
    %4267 = vmatprep.subr.bf16.mxu0 0
    %4268 = vmatpush1.bf16.msra.mxu0 0
    %4269 = vmatprep.subr.bf16.mxu0 0
    %4270 = vmatpush1.bf16.msra.mxu0 0
    %4271 = vmatprep.subr.bf16.mxu0 0
    %4272 = vmatpush1.bf16.msra.mxu0 0
    %4273 = vmatprep.mubr.bf16.mxu0 0
    %4274 = vmatmul.mubr.bf16.gmra.mrb[0].mxu0 %v4169
    %v4275 = vpop.f32.mrb[0].mxu0
    %v4276 = vadd.f32 %v4191, %v4275
    %v4277 = vpop.f32.mrb[0].mxu0
    %v4278 = vpop.f32.mrb[0].mxu0
    %v4279 = vadd.f32 %v4191, %v4278
    %v4280 = vpop.f32.mrb[0].mxu0
    %4281 = vdwg.mxu0
    %v4282 = vpack.c.bf16 %v4279, %v4276
    %v4284 = vunpack.c.l.b16 %v4282
    %v4285 = vunpack.c.h.b16 %v4282
    %v4286 = vpack.c.b16 %v4284, %v4284
    %v4287 = vpack.c.b16 %v4285, %v4285
    %4290 = vst [vmem:[#allocation14] sm:$0xf] %v4286
    %4291 = vst [vmem:[#allocation14 + $0x4] sm:$0xf] %v4287
    // Predicated region
    $region58: #{tpu_custom_call.1} parent=1 // pred_check
      _
    $region59: #{tpu_custom_call.1} parent=1 // pred_check_branch
      %4293 = sbr.rel (0) target = $region61
    $region60: #{tpu_custom_call.1} parent=1 // pred_region
      %s4295 = ssub.s32 128, 128
      %4296 = vsyncadd [#allocation4], %s4295
      %s4297 = sshll.u32 [#allocation14], 4
      %s4298 = int_to_ptr.vmem [resolvable:$true] %s4297
      %4303 = dma.vmem_to_hbm [thread:$0]  %s4298, 128, %s7, [#allocation4], 64, 64, 4
    $region61: #{tpu_custom_call.1} parent=1 // pred_fallthru
      _
    // Predicated region
    $region62: #{tpu_custom_call.1} parent=1 // pred_check
      _
    $region63: #{tpu_custom_call.1} parent=1 // pred_check_branch
      %4305 = sbr.rel (0) target = $region65
    $region64: #{tpu_custom_call.1} parent=1 // pred_region
      %4306 = dma.done [#allocation4], 128
    $region65: #{tpu_custom_call.1} parent=1 // pred_fallthru
      _
    %4307 = vsyncpa [#allocation3], 1
    %4308 = vsyncpa [#allocation6], 1
    %4309 = vsyncpa [#allocation9], 1
    %4310 = vsyncpa [#allocation12], 1
    %4311 = vsyncpa [#allocation4], 1

</llo_original>
